<compile_context>
chip_gen: v7x
topology: tpu7x:2x2x1
jax: 0.10.0
libtpu: 0.0.40
codegen_flags: <defaults>
</compile_context>

<pallas_src>
import math
import functools

import jax
import jax.numpy as jnp
from jax.experimental import pallas as pl
from jax.experimental.pallas import tpu as pltpu


def _round_up(x, m):
    return (x + m - 1) // m * m


# --------------------------------------------------------------------------
# Tiled, pipelined GEMM (+ bias) with fused GDN / IGDN / round epilogues
# --------------------------------------------------------------------------

def _gemm_kernel(x_ref, w_ref, b_ref, o_ref, acc_ref, *, epilogue):
    k = pl.program_id(2)

    @pl.when(k == 0)
    def _():
        acc_ref[...] = jnp.zeros_like(acc_ref)

    acc_ref[...] += jnp.dot(x_ref[...], w_ref[...],
                            preferred_element_type=jnp.float32)

    @pl.when(k == pl.num_programs(2) - 1)
    def _():
        y = acc_ref[...] + b_ref[...]
        if epilogue == "round":
            y = jnp.round(y)          # round-half-to-even, same as torch.round
        o_ref[...] = y


def _gemm_gdn_kernel(x_ref, w_ref, b_ref, g_ref, beta_ref, o_ref, acc_ref, *,
                     inverse):
    k = pl.program_id(2)

    @pl.when(k == 0)
    def _():
        acc_ref[...] = jnp.zeros_like(acc_ref)

    acc_ref[...] += jnp.dot(x_ref[...], w_ref[...],
                            preferred_element_type=jnp.float32)

    @pl.when(k == pl.num_programs(2) - 1)
    def _():
        y = acc_ref[...] + b_ref[...]
        # GDN denominator: beta_c + sum_i gamma[i,c] * y_i^2  (1x1 conv == matmul)
        var = jnp.dot(y * y, g_ref[...],
                      preferred_element_type=jnp.float32) + beta_ref[...]
        if inverse:
            o_ref[...] = y * jnp.sqrt(var)        # IGDN
        else:
            o_ref[...] = y * jax.lax.rsqrt(var)   # GDN (rsqrt -> free EUP slot)


def gemm_bias(x, w, b, *, epilogue="none", gamma=None, beta=None):
    """(M,K) @ (K,N) + b with an optional fused epilogue ('gdn','igdn','round').

    bf16 operands / f32 accumulation; operands zero-padded to lane-dense tiles.
    """
    M, K = x.shape
    Kw, N = w.shape
    assert Kw == K

    Np = _round_up(N, 128)
    if epilogue in ("gdn", "igdn"):
        tn = Np                        # GDN mixes all output channels: 1 N-tile
    else:
        tn = min(256, Np)
        Np = _round_up(Np, tn)
    Kp = _round_up(K, 128)
    tk = min(512, Kp)
    Kp = _round_up(Kp, tk)
    tm = min(512, _round_up(M, 8))
    Mp = _round_up(M, tm)

    xp = jnp.pad(x, ((0, Mp - M), (0, Kp - K))).astype(jnp.bfloat16)
    wp = jnp.pad(w, ((0, Kp - K), (0, Np - N))).astype(jnp.bfloat16)
    bp = jnp.pad(b.reshape(1, N).astype(jnp.float32), ((0, 0), (0, Np - N)))

    grid = (Mp // tm, Np // tn, Kp // tk)
    in_specs = [
        pl.BlockSpec((tm, tk), lambda i, j, k: (i, k)),
        pl.BlockSpec((tk, tn), lambda i, j, k: (k, j)),
        pl.BlockSpec((1, tn), lambda i, j, k: (0, j)),
    ]
    args = [xp, wp, bp]

    if epilogue in ("gdn", "igdn"):
        gp = jnp.pad(gamma.astype(jnp.float32), ((0, Np - N), (0, Np - N)))
        betap = jnp.pad(beta.reshape(1, N).astype(jnp.float32),
                        ((0, 0), (0, Np - N)), constant_values=1.0)
        in_specs += [
            pl.BlockSpec((Np, Np), lambda i, j, k: (0, 0)),
            pl.BlockSpec((1, Np), lambda i, j, k: (0, 0)),
        ]
        args += [gp, betap]
        kernel = functools.partial(_gemm_gdn_kernel,
                                   inverse=(epilogue == "igdn"))
    else:
        kernel = functools.partial(_gemm_kernel, epilogue=epilogue)

    out = pl.pallas_call(
        kernel,
        out_shape=jax.ShapeDtypeStruct((Mp, Np), jnp.float32),
        grid_spec=pltpu.PrefetchScalarGridSpec(
            num_scalar_prefetch=0,
            grid=grid,
            in_specs=in_specs,
            out_specs=pl.BlockSpec((tm, tn), lambda i, j, k: (i, j)),
            scratch_shapes=[pltpu.VMEM((tm, tn), jnp.float32)],
        ),
        compiler_params=pltpu.CompilerParams(
            dimension_semantics=("parallel", "parallel", "arbitrary")),
    )(*args)
    return out[:M, :N]


# --------------------------------------------------------------------------
# Conv / transposed conv lowered to the fused Pallas GEMM
# --------------------------------------------------------------------------

def conv2d(x, w_hwio, b, stride, pad, *, epilogue="none", gamma=None, beta=None):
    """NHWC conv (cross-correlation, matching nn.Conv2d) via im2col + GEMM."""
    B, H, W, cin = x.shape
    kh, kw, _, cout = w_hwio.shape
    xp = jnp.pad(x, ((0, 0), (pad, pad), (pad, pad), (0, 0)))
    oh = (H + 2 * pad - kh) // stride + 1
    ow = (W + 2 * pad - kw) // stride + 1
    # TODO(synk): im2col patches are still materialized in HBM (~kh*kw/stride^2
    # x input size); next step is gathering windows inside the Pallas pipeline
    # with manual DMA instead of a materialized patch array.
    cols = []
    for i in range(kh):
        for j in range(kw):
            cols.append(xp[:, i:i + stride * oh:stride,
                           j:j + stride * ow:stride, :])
    patches = jnp.stack(cols, axis=3).reshape(B * oh * ow, kh * kw * cin)
    out = gemm_bias(patches, w_hwio.reshape(kh * kw * cin, cout), b,
                    epilogue=epilogue, gamma=gamma, beta=beta)
    return out.reshape(B, oh, ow, cout)


def _deconv_phase_groups(k, s, pad):
    """Group the s output phases of a stride-s transposed conv by the dense
    input window (taps, base offset) they read; phases in a group share
    im2col patches and can be merged into one GEMM."""
    groups = {}
    for ph in range(s):
        r = (k - 1 - pad - ph) % s            # first kernel tap for this phase
        taps = -(-(k - r) // s)               # ceil((k - r) / s)
        base = (ph + r - (k - 1 - pad)) // s  # exact division by construction
        groups.setdefault((taps, base), []).append((ph, r))
    return groups


def conv_transpose2d(x, w_t, b, stride, pad, out_pad, *, epilogue="none",
                     gamma=None, beta=None):
    """NHWC ConvTranspose2d (PyTorch weight layout (Cin, Cout, kh, kw)),
    decomposed into stride^2 dense output phases over the undilated input."""
    B, H, W, cin = x.shape
    _, cout, kh, kw = w_t.shape
    s = stride
    OH = (H - 1) * s - 2 * pad + kh + out_pad
    OW = (W - 1) * s - 2 * pad + kw + out_pad
    assert OH % s == 0 and OW % s == 0
    Qy, Qx = OH // s, OW // s

    # equivalent direct-conv kernel: flip spatially, convert to HWIO
    wf = jnp.transpose(w_t[:, :, ::-1, ::-1], (2, 3, 0, 1))   # (kh,kw,cin,cout)

    out = jnp.zeros((B, OH, OW, cout), jnp.float32)
    for (ty_n, by), ylist in _deconv_phase_groups(kh, s, pad).items():
        for (tx_n, bx), xlist in _deconv_phase_groups(kw, s, pad).items():
            # dense input window shared by every phase of this group
            ply = max(0, -by)
            phy = max(0, (Qy - 1) + (ty_n - 1) + by - (H - 1))
            plx = max(0, -bx)
            phx = max(0, (Qx - 1) + (tx_n - 1) + bx - (W - 1))
            xp = jnp.pad(x, ((0, 0), (ply, phy), (plx, phx), (0, 0)))
            cols = []
            for ty in range(ty_n):
                oy = ty + by + ply
                for tx in range(tx_n):
                    ox = tx + bx + plx
                    cols.append(xp[:, oy:oy + Qy, ox:ox + Qx, :])
            patches = jnp.stack(cols, axis=3).reshape(
                B * Qy * Qx, ty_n * tx_n * cin)

            phases = [(py, ry, px, rx) for (py, ry) in ylist
                      for (px, rx) in xlist]
            G = len(phases)
            wsubs = [wf[ry::s, rx::s][:ty_n, :tx_n].reshape(
                ty_n * tx_n * cin, cout) for (_, ry, _, rx) in phases]
            wg = jnp.concatenate(wsubs, axis=1)            # (K, G*cout)
            bg = jnp.tile(b, (G,))
            if epilogue in ("gdn", "igdn"):
                gg = jnp.kron(jnp.eye(G, dtype=jnp.float32), gamma)
                btg = jnp.tile(beta, (G,))
            else:
                gg = btg = None

            y = gemm_bias(patches, wg, bg, epilogue=epilogue,
                          gamma=gg, beta=btg)
            y = y.reshape(B, Qy, Qx, G, cout)
            for gi, (py, _, px, _) in enumerate(phases):
                out = out.at[:, py::s, px::s, :].set(y[:, :, :, gi, :])
    return out


# --------------------------------------------------------------------------
# Tiled reductions: clip + sum-of-squared-error, BitEstimator bit count
# --------------------------------------------------------------------------

def _clip_mse_kernel(r_ref, x_ref, clip_ref, sse_ref):
    i = pl.program_id(0)
    r = r_ref[...]
    clip_ref[...] = jnp.clip(r, 0.0, 1.0)
    d = r - x_ref[...]
    part = jnp.sum(jnp.sum(d * d, axis=0, keepdims=True), axis=1, keepdims=True)

    @pl.when(i == 0)
    def _():
        sse_ref[...] = jnp.zeros_like(sse_ref)

    sse_ref[...] += part


def pallas_clip_mse(recon, x):
    """Returns (clip(recon, 0, 1), sum((recon - x)^2)) with lane-dense tiles."""
    shape = recon.shape
    n = recon.size
    npad = _round_up(n, 8 * 128)
    r2d = jnp.pad(recon.reshape(-1), (0, npad - n)).reshape(npad // 128, 128)
    x2d = jnp.pad(x.reshape(-1), (0, npad - n)).reshape(npad // 128, 128)
    R = npad // 128
    tm = min(256, R)
    Rp = _round_up(R, tm)
    if Rp != R:
        r2d = jnp.pad(r2d, ((0, Rp - R), (0, 0)))
        x2d = jnp.pad(x2d, ((0, Rp - R), (0, 0)))

    clipped, sse = pl.pallas_call(
        _clip_mse_kernel,
        out_shape=(jax.ShapeDtypeStruct((Rp, 128), jnp.float32),
                   jax.ShapeDtypeStruct((1, 1), jnp.float32)),
        grid_spec=pltpu.PrefetchScalarGridSpec(
            num_scalar_prefetch=0,
            grid=(Rp // tm,),
            in_specs=[pl.BlockSpec((tm, 128), lambda i: (i, 0)),
                      pl.BlockSpec((tm, 128), lambda i: (i, 0))],
            out_specs=(pl.BlockSpec((tm, 128), lambda i: (i, 0)),
                       pl.BlockSpec((1, 1), lambda i: (0, 0))),
        ),
        compiler_params=pltpu.CompilerParams(
            dimension_semantics=("arbitrary",)),
    )(r2d, x2d)
    clipped = clipped.reshape(-1)[:n].reshape(shape)
    return clipped, sse[0, 0]


def _bits_kernel(z_ref, sh1, bb1, ta1, sh2, bb2, ta2, sh3, bb3, ta3, sh4, bb4,
                 out_ref, *, n_valid, tm):
    i = pl.program_id(0)
    z = z_ref[...]

    def bitparm(v, sh, bb, ta):
        v = v * sh[...] + bb[...]
        return v + jnp.tanh(v) * ta[...]

    def cdf(v):
        v = bitparm(v, sh1, bb1, ta1)
        v = bitparm(v, sh2, bb2, ta2)
        v = bitparm(v, sh3, bb3, ta3)
        return jax.nn.sigmoid(v * sh4[...] + bb4[...])

    prob = cdf(z + 0.5) - cdf(z - 0.5)
    bits = jnp.clip(-jnp.log(prob + 1e-10) * (1.0 / math.log(2.0)), 0.0, 50.0)

    # mask out padded elements (row-major flat index >= n_valid)
    rows = jax.lax.broadcasted_iota(jnp.int32, z.shape, 0)
    lanes = jax.lax.broadcasted_iota(jnp.int32, z.shape, 1)
    flat = (i * tm + rows) * z.shape[1] + lanes
    bits = jnp.where(flat < n_valid, bits, 0.0)

    part = jnp.sum(jnp.sum(bits, axis=0, keepdims=True), axis=1, keepdims=True)

    @pl.when(i == 0)
    def _():
        out_ref[...] = jnp.zeros_like(out_ref)

    out_ref[...] += part


def pallas_total_bits(z2d, p):
    """Total bits of the rounded feature (M, C) under the BitEstimator."""
    M, C = z2d.shape
    group = 128 // C if 128 % C == 0 else 1   # pack rows along lanes when possible
    Cb = group * C
    rows = _round_up(M, group) // group
    tm = min(256, _round_up(rows, 8))
    Rp = _round_up(rows, tm)
    zp = jnp.pad(z2d, ((0, Rp * group - M), (0, 0))).reshape(Rp, Cb)

    def tile_p(v):
        return jnp.tile(v.astype(jnp.float32).reshape(1, C), (1, group))

    # hoist parameter-only transcendentals (stable softplus) out of the kernel
    args = [zp]
    for layer in (1, 2, 3):
        args += [tile_p(jax.nn.softplus(p[f"bit{layer}_h"])),
                 tile_p(p[f"bit{layer}_b"]),
                 tile_p(jnp.tanh(p[f"bit{layer}_a"]))]
    args += [tile_p(jax.nn.softplus(p["bit4_h"])), tile_p(p["bit4_b"])]

    in_specs = ([pl.BlockSpec((tm, Cb), lambda i: (i, 0))]
                + [pl.BlockSpec((1, Cb), lambda i: (0, 0))] * 11)
    total = pl.pallas_call(
        functools.partial(_bits_kernel, n_valid=M * C, tm=tm),
        out_shape=jax.ShapeDtypeStruct((1, 1), jnp.float32),
        grid_spec=pltpu.PrefetchScalarGridSpec(
            num_scalar_prefetch=0,
            grid=(Rp // tm,),
            in_specs=in_specs,
            out_specs=pl.BlockSpec((1, 1), lambda i: (0, 0)),
        ),
        compiler_params=pltpu.CompilerParams(
            dimension_semantics=("arbitrary",)),
    )(*args)
    return total[0, 0]


# --------------------------------------------------------------------------
# Parameters (deterministic, synthetic)
# --------------------------------------------------------------------------

def init_params(key, out_channel_n=8):
    N = out_channel_n
    ks = jax.random.split(key, 20)

    def w(k, shape, scale=0.05):
        return scale * jax.random.normal(k, shape, jnp.float32)

    p = {}
    # Analysis_net_17 (weights stored HWIO)
    p["e1_w"] = w(ks[0], (9, 9, 3, N)); p["e1_b"] = jnp.full((N,), 0.01, jnp.float32)
    p["e2_w"] = w(ks[1], (5, 5, N, N)); p["e2_b"] = jnp.full((N,), 0.01, jnp.float32)
    p["e3_w"] = w(ks[2], (5, 5, N, N)); p["e3_b"] = jnp.full((N,), 0.01, jnp.float32)
    # GDN / IGDN (forward-semantics parameterization: beta>0, gamma>=0)
    eye = jnp.eye(N, dtype=jnp.float32)
    for name in ("g1", "g2", "ig1", "ig2"):
        p[f"{name}_gamma"] = 0.1 * eye
        p[f"{name}_beta"] = jnp.ones((N,), jnp.float32)
    # Synthesis_net_17 (ConvTranspose2d layout: (Cin, Cout, kh, kw))
    p["d1_w"] = w(ks[3], (N, N, 5, 5)); p["d1_b"] = jnp.full((N,), 0.01, jnp.float32)
    p["d2_w"] = w(ks[4], (N, N, 5, 5)); p["d2_b"] = jnp.full((N,), 0.01, jnp.float32)
    p["d3_w"] = w(ks[5], (N, 3, 9, 9)); p["d3_b"] = jnp.full((3,), 0.01, jnp.float32)
    # BitEstimator (4 Bitparm layers; last one has no 'a'), params shape (1, C)
    ki = 6
    for layer in range(1, 5):
        for name in ("h", "b", "a"):
            if layer == 4 and name == "a":
                continue
            p[f"bit{layer}_{name}"] = 0.01 * jax.random.normal(ks[ki], (1, N), jnp.float32)
            ki += 1
    return p


# --------------------------------------------------------------------------
# Forward (mirrors ImageCompressorSteganography.forward with stega=False)
# --------------------------------------------------------------------------

def image_compressor_forward(x_nchw, params):
    x = jnp.transpose(x_nchw, (0, 2, 3, 1)).astype(jnp.float32)  # -> NHWC
    B, H, W, _ = x.shape

    # NOTE: the reference builds quant_noise_feature but never uses it -> skipped.

    # Encoder: conv(9,s4)+GDN -> conv(5,s2)+GDN -> conv(5,s2)+round (all fused)
    f = conv2d(x, params["e1_w"], params["e1_b"], stride=4, pad=4,
               epilogue="gdn", gamma=params["g1_gamma"], beta=params["g1_beta"])
    f = conv2d(f, params["e2_w"], params["e2_b"], stride=2, pad=2,
               epilogue="gdn", gamma=params["g2_gamma"], beta=params["g2_beta"])
    feature_q = conv2d(f, params["e3_w"], params["e3_b"], stride=2, pad=2,
                       epilogue="round")   # torch.round fused into the GEMM
    # TODO(synk): stega=True branch uses torch.multinomial perturbation; the
    # default forward (stega=False, p=0.0) does not exercise it.

    # Decoder: deconv(5,s2)+IGDN -> deconv(5,s2)+IGDN -> deconv(9,s4)
    d = conv_transpose2d(feature_q, params["d1_w"], params["d1_b"], 2, 2, 1,
                         epilogue="igdn", gamma=params["ig1_gamma"],
                         beta=params["ig1_beta"])
    d = conv_transpose2d(d, params["d2_w"], params["d2_b"], 2, 2, 1,
                         epilogue="igdn", gamma=params["ig2_gamma"],
                         beta=params["ig2_beta"])
    recon = conv_transpose2d(d, params["d3_w"], params["d3_b"], 4, 4, 3)

    clipped, sse = pallas_clip_mse(recon, x)
    mse_loss = sse / recon.size

    fb, fh, fw, fc = feature_q.shape
    total_bits = pallas_total_bits(feature_q.reshape(fb * fh * fw, fc), params)
    bpp_feature = total_bits / (B * H * W)

    clipped_recon_nchw = jnp.transpose(clipped, (0, 3, 1, 2))
    return clipped_recon_nchw, mse_loss, bpp_feature


# --------------------------------------------------------------------------

if __name__ == "__main__":
    key = jax.random.PRNGKey(0)
    pkey, xkey = jax.random.split(key)

    out_channel_N = 8                       # small synthetic width (reference: 128)
    params = init_params(pkey, out_channel_N)
    input_image = jax.random.uniform(xkey, (2, 3, 32, 32), jnp.float32)  # NCHW

    fwd = jax.jit(image_compressor_forward)
    clipped_recon, mse_loss, bpp_feature = fwd(input_image, params)
    jax.block_until_ready((clipped_recon, mse_loss, bpp_feature))

    assert clipped_recon.shape == input_image.shape
    assert mse_loss.shape == () and bpp_feature.shape == ()
    assert bool(jnp.isfinite(mse_loss)) and bool(jnp.isfinite(bpp_feature))
    print("KERNEL_OK")
</pallas_src>

<mosaic_0001>
module attributes {stable_mosaic.version = 11 : i64} {
  func.func @_gemm_gdn_kernel(%arg0: i32, %arg1: i32, %arg2: i32, %arg3: memref<128x256xbf16, #tpu.memory_space<vmem>>, %arg4: memref<256x128xbf16, #tpu.memory_space<vmem>>, %arg5: memref<1x128xf32, #tpu.memory_space<vmem>>, %arg6: memref<128x128xf32, #tpu.memory_space<vmem>>, %arg7: memref<1x128xf32, #tpu.memory_space<vmem>>, %arg8: memref<128x128xf32, #tpu.memory_space<vmem>>, %arg9: memref<128x128xf32, #tpu.memory_space<vmem>>) attributes {dimension_semantics = [#tpu.dimension_semantics<parallel>, #tpu.dimension_semantics<parallel>, #tpu.dimension_semantics<arbitrary>], iteration_bounds = array<i64: 1, 1, 1>, scalar_prefetch = 0 : i64, scratch_operands = 1 : i64, tpu.core_type = #tpu.core_type<tc>, window_params = [{transform_indices = @transform_0, window_bounds = array<i64: 128, 256>}, {transform_indices = @transform_1, window_bounds = array<i64: 256, 128>}, {transform_indices = @transform_2, window_bounds = array<i64: 1, 128>}, {pipeline_mode = #tpu.pipeline_mode<synchronous>, transform_indices = @transform_3, window_bounds = array<i64: 128, 128>}, {pipeline_mode = #tpu.pipeline_mode<synchronous>, transform_indices = @transform_4, window_bounds = array<i64: 1, 128>}, {transform_indices = @transform_5, window_bounds = array<i64: 128, 128>}]} {
    %c0_i32 = arith.constant 0 : i32
    %0 = arith.cmpi eq, %arg2, %c0_i32 : i32
    %1 = arith.extui %0 : i1 to i32
    %c0_i32_0 = arith.constant 0 : i32
    %2 = arith.cmpi ne, %1, %c0_i32_0 : i32
    scf.if %2 {
      %cst_10 = arith.constant 0.000000e+00 : f32
      %12 = vector.broadcast %cst_10 : f32 to vector<128x128xf32>
      %c0_11 = arith.constant 0 : index
      %c0_12 = arith.constant 0 : index
      %13 = vector.load %arg9[%c0_11, %c0_12] : memref<128x128xf32, #tpu.memory_space<vmem>>, vector<128x128xf32>
      tpu.vector_store %arg9[%c0_11, %c0_12], %12 {strides = array<i32>} : memref<128x128xf32, #tpu.memory_space<vmem>>, vector<128x128xf32>,
    } else {
    }
    %c0 = arith.constant 0 : index
    %c0_1 = arith.constant 0 : index
    %3 = vector.load %arg9[%c0, %c0_1] : memref<128x128xf32, #tpu.memory_space<vmem>>, vector<128x128xf32>
    %c0_2 = arith.constant 0 : index
    %c0_3 = arith.constant 0 : index
    %4 = vector.load %arg3[%c0_2, %c0_3] : memref<128x256xbf16, #tpu.memory_space<vmem>>, vector<128x256xbf16>
    %c0_4 = arith.constant 0 : index
    %c0_5 = arith.constant 0 : index
    %5 = vector.load %arg4[%c0_4, %c0_5] : memref<256x128xbf16, #tpu.memory_space<vmem>>, vector<256x128xbf16>
    %cst = arith.constant dense<0.000000e+00> : vector<128x128xf32>
    %6 = tpu.matmul %4, %5, %cst {dimension_numbers = #tpu.dot_dimension_numbers<[1], [0], [0], [1], [0, 0, 1, 1], [], []>} : vector<128x256xbf16>, vector<256x128xbf16>, vector<128x128xf32> -> vector<128x128xf32>
    %7 = arith.addf %3, %6 : vector<128x128xf32>
    %c0_6 = arith.constant 0 : index
    %c0_7 = arith.constant 0 : index
    %8 = vector.load %arg9[%c0_6, %c0_7] : memref<128x128xf32, #tpu.memory_space<vmem>>, vector<128x128xf32>
    tpu.vector_store %arg9[%c0_6, %c0_7], %7 {strides = array<i32>} : memref<128x128xf32, #tpu.memory_space<vmem>>, vector<128x128xf32>,
    %c0_i32_8 = arith.constant 0 : i32
    %9 = arith.cmpi eq, %arg2, %c0_i32_8 : i32
    %10 = arith.extui %9 : i1 to i32
    %c0_i32_9 = arith.constant 0 : i32
    %11 = arith.cmpi ne, %10, %c0_i32_9 : i32
    scf.if %11 {
      %c0_10 = arith.constant 0 : index
      %c0_11 = arith.constant 0 : index
      %12 = vector.load %arg9[%c0_10, %c0_11] : memref<128x128xf32, #tpu.memory_space<vmem>>, vector<128x128xf32>
      %c0_12 = arith.constant 0 : index
      %c0_13 = arith.constant 0 : index
      %13 = vector.load %arg5[%c0_12, %c0_13] : memref<1x128xf32, #tpu.memory_space<vmem>>, vector<1x128xf32>
      %14 = vector.broadcast %13 : vector<1x128xf32> to vector<128x128xf32>
      %15 = arith.addf %12, %14 : vector<128x128xf32>
      %16 = arith.mulf %15, %15 : vector<128x128xf32>
      %c0_14 = arith.constant 0 : index
      %c0_15 = arith.constant 0 : index
      %17 = vector.load %arg6[%c0_14, %c0_15] : memref<128x128xf32, #tpu.memory_space<vmem>>, vector<128x128xf32>
      %cst_16 = arith.constant dense<0.000000e+00> : vector<128x128xf32>
      %18 = tpu.matmul %16, %17, %cst_16 {dimension_numbers = #tpu.dot_dimension_numbers<[1], [0], [0], [1], [0, 0, 1, 1], [], []>} : vector<128x128xf32>, vector<128x128xf32>, vector<128x128xf32> -> vector<128x128xf32>
      %c0_17 = arith.constant 0 : index
      %c0_18 = arith.constant 0 : index
      %19 = vector.load %arg7[%c0_17, %c0_18] : memref<1x128xf32, #tpu.memory_space<vmem>>, vector<1x128xf32>
      %20 = vector.broadcast %19 : vector<1x128xf32> to vector<128x128xf32>
      %21 = arith.addf %18, %20 : vector<128x128xf32>
      %22 = math.rsqrt %21 : vector<128x128xf32>
      %23 = arith.mulf %15, %22 : vector<128x128xf32>
      %c0_19 = arith.constant 0 : index
      %c0_20 = arith.constant 0 : index
      %24 = vector.load %arg8[%c0_19, %c0_20] : memref<128x128xf32, #tpu.memory_space<vmem>>, vector<128x128xf32>
      tpu.vector_store %arg8[%c0_19, %c0_20], %23 {strides = array<i32>} : memref<128x128xf32, #tpu.memory_space<vmem>>, vector<128x128xf32>,
    } else {
    }
    return
  }
  func.func @transform_0(%arg0: i32, %arg1: i32, %arg2: i32) -> (i32, i32) {
    %c0_i32 = arith.constant 0 : i32
    return %arg0, %arg2 : i32, i32
  }
  func.func @transform_1(%arg0: i32, %arg1: i32, %arg2: i32) -> (i32, i32) {
    %c0_i32 = arith.constant 0 : i32
    return %arg2, %arg1 : i32, i32
  }
  func.func @transform_2(%arg0: i32, %arg1: i32, %arg2: i32) -> (i32, i32) {
    %c0_i32 = arith.constant 0 : i32
    %c0_i32_0 = arith.constant 0 : i32
    return %c0_i32, %arg1 : i32, i32
  }
  func.func @transform_3(%arg0: i32, %arg1: i32, %arg2: i32) -> (i32, i32) {
    %c0_i32 = arith.constant 0 : i32
    %c0_i32_0 = arith.constant 0 : i32
    %c0_i32_1 = arith.constant 0 : i32
    return %c0_i32, %c0_i32_0 : i32, i32
  }
  func.func @transform_4(%arg0: i32, %arg1: i32, %arg2: i32) -> (i32, i32) {
    %c0_i32 = arith.constant 0 : i32
    %c0_i32_0 = arith.constant 0 : i32
    %c0_i32_1 = arith.constant 0 : i32
    return %c0_i32, %c0_i32_0 : i32, i32
  }
  func.func @transform_5(%arg0: i32, %arg1: i32, %arg2: i32) -> (i32, i32) {
    %c0_i32 = arith.constant 0 : i32
    return %arg0, %arg1 : i32, i32
  }
}

module attributes {stable_mosaic.version = 11 : i64} {
  func.func @_gemm_gdn_kernel(%arg0: i32, %arg1: i32, %arg2: i32, %arg3: memref<32x256xbf16, #tpu.memory_space<vmem>>, %arg4: memref<256x128xbf16, #tpu.memory_space<vmem>>, %arg5: memref<1x128xf32, #tpu.memory_space<vmem>>, %arg6: memref<128x128xf32, #tpu.memory_space<vmem>>, %arg7: memref<1x128xf32, #tpu.memory_space<vmem>>, %arg8: memref<32x128xf32, #tpu.memory_space<vmem>>, %arg9: memref<32x128xf32, #tpu.memory_space<vmem>>) attributes {dimension_semantics = [#tpu.dimension_semantics<parallel>, #tpu.dimension_semantics<parallel>, #tpu.dimension_semantics<arbitrary>], iteration_bounds = array<i64: 1, 1, 1>, scalar_prefetch = 0 : i64, scratch_operands = 1 : i64, tpu.core_type = #tpu.core_type<tc>, window_params = [{transform_indices = @transform_0, window_bounds = array<i64: 32, 256>}, {transform_indices = @transform_1, window_bounds = array<i64: 256, 128>}, {transform_indices = @transform_2, window_bounds = array<i64: 1, 128>}, {pipeline_mode = #tpu.pipeline_mode<synchronous>, transform_indices = @transform_3, window_bounds = array<i64: 128, 128>}, {pipeline_mode = #tpu.pipeline_mode<synchronous>, transform_indices = @transform_4, window_bounds = array<i64: 1, 128>}, {transform_indices = @transform_5, window_bounds = array<i64: 32, 128>}]} {
    %c0_i32 = arith.constant 0 : i32
    %0 = arith.cmpi eq, %arg2, %c0_i32 : i32
    %1 = arith.extui %0 : i1 to i32
    %c0_i32_0 = arith.constant 0 : i32
    %2 = arith.cmpi ne, %1, %c0_i32_0 : i32
    scf.if %2 {
      %cst_10 = arith.constant 0.000000e+00 : f32
      %12 = vector.broadcast %cst_10 : f32 to vector<32x128xf32>
      %c0_11 = arith.constant 0 : index
      %c0_12 = arith.constant 0 : index
      %13 = vector.load %arg9[%c0_11, %c0_12] : memref<32x128xf32, #tpu.memory_space<vmem>>, vector<32x128xf32>
      tpu.vector_store %arg9[%c0_11, %c0_12], %12 {strides = array<i32>} : memref<32x128xf32, #tpu.memory_space<vmem>>, vector<32x128xf32>,
    } else {
    }
    %c0 = arith.constant 0 : index
    %c0_1 = arith.constant 0 : index
    %3 = vector.load %arg9[%c0, %c0_1] : memref<32x128xf32, #tpu.memory_space<vmem>>, vector<32x128xf32>
    %c0_2 = arith.constant 0 : index
    %c0_3 = arith.constant 0 : index
    %4 = vector.load %arg3[%c0_2, %c0_3] : memref<32x256xbf16, #tpu.memory_space<vmem>>, vector<32x256xbf16>
    %c0_4 = arith.constant 0 : index
    %c0_5 = arith.constant 0 : index
    %5 = vector.load %arg4[%c0_4, %c0_5] : memref<256x128xbf16, #tpu.memory_space<vmem>>, vector<256x128xbf16>
    %cst = arith.constant dense<0.000000e+00> : vector<32x128xf32>
    %6 = tpu.matmul %4, %5, %cst {dimension_numbers = #tpu.dot_dimension_numbers<[1], [0], [0], [1], [0, 0, 1, 1], [], []>} : vector<32x256xbf16>, vector<256x128xbf16>, vector<32x128xf32> -> vector<32x128xf32>
    %7 = arith.addf %3, %6 : vector<32x128xf32>
    %c0_6 = arith.constant 0 : index
    %c0_7 = arith.constant 0 : index
    %8 = vector.load %arg9[%c0_6, %c0_7] : memref<32x128xf32, #tpu.memory_space<vmem>>, vector<32x128xf32>
    tpu.vector_store %arg9[%c0_6, %c0_7], %7 {strides = array<i32>} : memref<32x128xf32, #tpu.memory_space<vmem>>, vector<32x128xf32>,
    %c0_i32_8 = arith.constant 0 : i32
    %9 = arith.cmpi eq, %arg2, %c0_i32_8 : i32
    %10 = arith.extui %9 : i1 to i32
    %c0_i32_9 = arith.constant 0 : i32
    %11 = arith.cmpi ne, %10, %c0_i32_9 : i32
    scf.if %11 {
      %c0_10 = arith.constant 0 : index
      %c0_11 = arith.constant 0 : index
      %12 = vector.load %arg9[%c0_10, %c0_11] : memref<32x128xf32, #tpu.memory_space<vmem>>, vector<32x128xf32>
      %c0_12 = arith.constant 0 : index
      %c0_13 = arith.constant 0 : index
      %13 = vector.load %arg5[%c0_12, %c0_13] : memref<1x128xf32, #tpu.memory_space<vmem>>, vector<1x128xf32>
      %14 = vector.broadcast %13 : vector<1x128xf32> to vector<32x128xf32>
      %15 = arith.addf %12, %14 : vector<32x128xf32>
      %16 = arith.mulf %15, %15 : vector<32x128xf32>
      %c0_14 = arith.constant 0 : index
      %c0_15 = arith.constant 0 : index
      %17 = vector.load %arg6[%c0_14, %c0_15] : memref<128x128xf32, #tpu.memory_space<vmem>>, vector<128x128xf32>
      %cst_16 = arith.constant dense<0.000000e+00> : vector<32x128xf32>
      %18 = tpu.matmul %16, %17, %cst_16 {dimension_numbers = #tpu.dot_dimension_numbers<[1], [0], [0], [1], [0, 0, 1, 1], [], []>} : vector<32x128xf32>, vector<128x128xf32>, vector<32x128xf32> -> vector<32x128xf32>
      %c0_17 = arith.constant 0 : index
      %c0_18 = arith.constant 0 : index
      %19 = vector.load %arg7[%c0_17, %c0_18] : memref<1x128xf32, #tpu.memory_space<vmem>>, vector<1x128xf32>
      %20 = vector.broadcast %19 : vector<1x128xf32> to vector<32x128xf32>
      %21 = arith.addf %18, %20 : vector<32x128xf32>
      %22 = math.rsqrt %21 : vector<32x128xf32>
      %23 = arith.mulf %15, %22 : vector<32x128xf32>
      %c0_19 = arith.constant 0 : index
      %c0_20 = arith.constant 0 : index
      %24 = vector.load %arg8[%c0_19, %c0_20] : memref<32x128xf32, #tpu.memory_space<vmem>>, vector<32x128xf32>
      tpu.vector_store %arg8[%c0_19, %c0_20], %23 {strides = array<i32>} : memref<32x128xf32, #tpu.memory_space<vmem>>, vector<32x128xf32>,
    } else {
    }
    return
  }
  func.func @transform_0(%arg0: i32, %arg1: i32, %arg2: i32) -> (i32, i32) {
    %c0_i32 = arith.constant 0 : i32
    return %arg0, %arg2 : i32, i32
  }
  func.func @transform_1(%arg0: i32, %arg1: i32, %arg2: i32) -> (i32, i32) {
    %c0_i32 = arith.constant 0 : i32
    return %arg2, %arg1 : i32, i32
  }
  func.func @transform_2(%arg0: i32, %arg1: i32, %arg2: i32) -> (i32, i32) {
    %c0_i32 = arith.constant 0 : i32
    %c0_i32_0 = arith.constant 0 : i32
    return %c0_i32, %arg1 : i32, i32
  }
  func.func @transform_3(%arg0: i32, %arg1: i32, %arg2: i32) -> (i32, i32) {
    %c0_i32 = arith.constant 0 : i32
    %c0_i32_0 = arith.constant 0 : i32
    %c0_i32_1 = arith.constant 0 : i32
    return %c0_i32, %c0_i32_0 : i32, i32
  }
  func.func @transform_4(%arg0: i32, %arg1: i32, %arg2: i32) -> (i32, i32) {
    %c0_i32 = arith.constant 0 : i32
    %c0_i32_0 = arith.constant 0 : i32
    %c0_i32_1 = arith.constant 0 : i32
    return %c0_i32, %c0_i32_0 : i32, i32
  }
  func.func @transform_5(%arg0: i32, %arg1: i32, %arg2: i32) -> (i32, i32) {
    %c0_i32 = arith.constant 0 : i32
    return %arg0, %arg1 : i32, i32
  }
}

module attributes {stable_mosaic.version = 11 : i64} {
  func.func @_gemm_kernel(%arg0: i32, %arg1: i32, %arg2: i32, %arg3: memref<8x256xbf16, #tpu.memory_space<vmem>>, %arg4: memref<256x128xbf16, #tpu.memory_space<vmem>>, %arg5: memref<1x128xf32, #tpu.memory_space<vmem>>, %arg6: memref<8x128xf32, #tpu.memory_space<vmem>>, %arg7: memref<8x128xf32, #tpu.memory_space<vmem>>) attributes {dimension_semantics = [#tpu.dimension_semantics<parallel>, #tpu.dimension_semantics<parallel>, #tpu.dimension_semantics<arbitrary>], iteration_bounds = array<i64: 1, 1, 1>, scalar_prefetch = 0 : i64, scratch_operands = 1 : i64, tpu.core_type = #tpu.core_type<tc>, window_params = [{transform_indices = @transform_0, window_bounds = array<i64: 8, 256>}, {transform_indices = @transform_1, window_bounds = array<i64: 256, 128>}, {transform_indices = @transform_2, window_bounds = array<i64: 1, 128>}, {transform_indices = @transform_3, window_bounds = array<i64: 8, 128>}]} {
    %c0_i32 = arith.constant 0 : i32
    %0 = arith.cmpi eq, %arg2, %c0_i32 : i32
    %1 = arith.extui %0 : i1 to i32
    %c0_i32_0 = arith.constant 0 : i32
    %2 = arith.cmpi ne, %1, %c0_i32_0 : i32
    scf.if %2 {
      %cst_10 = arith.constant 0.000000e+00 : f32
      %12 = vector.broadcast %cst_10 : f32 to vector<8x128xf32>
      %c0_11 = arith.constant 0 : index
      %c0_12 = arith.constant 0 : index
      %13 = vector.load %arg7[%c0_11, %c0_12] : memref<8x128xf32, #tpu.memory_space<vmem>>, vector<8x128xf32>
      tpu.vector_store %arg7[%c0_11, %c0_12], %12 {strides = array<i32>} : memref<8x128xf32, #tpu.memory_space<vmem>>, vector<8x128xf32>,
    } else {
    }
    %c0 = arith.constant 0 : index
    %c0_1 = arith.constant 0 : index
    %3 = vector.load %arg7[%c0, %c0_1] : memref<8x128xf32, #tpu.memory_space<vmem>>, vector<8x128xf32>
    %c0_2 = arith.constant 0 : index
    %c0_3 = arith.constant 0 : index
    %4 = vector.load %arg3[%c0_2, %c0_3] : memref<8x256xbf16, #tpu.memory_space<vmem>>, vector<8x256xbf16>
    %c0_4 = arith.constant 0 : index
    %c0_5 = arith.constant 0 : index
    %5 = vector.load %arg4[%c0_4, %c0_5] : memref<256x128xbf16, #tpu.memory_space<vmem>>, vector<256x128xbf16>
    %cst = arith.constant dense<0.000000e+00> : vector<8x128xf32>
    %6 = tpu.matmul %4, %5, %cst {dimension_numbers = #tpu.dot_dimension_numbers<[1], [0], [0], [1], [0, 0, 1, 1], [], []>} : vector<8x256xbf16>, vector<256x128xbf16>, vector<8x128xf32> -> vector<8x128xf32>
    %7 = arith.addf %3, %6 : vector<8x128xf32>
    %c0_6 = arith.constant 0 : index
    %c0_7 = arith.constant 0 : index
    %8 = vector.load %arg7[%c0_6, %c0_7] : memref<8x128xf32, #tpu.memory_space<vmem>>, vector<8x128xf32>
    tpu.vector_store %arg7[%c0_6, %c0_7], %7 {strides = array<i32>} : memref<8x128xf32, #tpu.memory_space<vmem>>, vector<8x128xf32>,
    %c0_i32_8 = arith.constant 0 : i32
    %9 = arith.cmpi eq, %arg2, %c0_i32_8 : i32
    %10 = arith.extui %9 : i1 to i32
    %c0_i32_9 = arith.constant 0 : i32
    %11 = arith.cmpi ne, %10, %c0_i32_9 : i32
    scf.if %11 {
      %c0_10 = arith.constant 0 : index
      %c0_11 = arith.constant 0 : index
      %12 = vector.load %arg7[%c0_10, %c0_11] : memref<8x128xf32, #tpu.memory_space<vmem>>, vector<8x128xf32>
      %c0_12 = arith.constant 0 : index
      %c0_13 = arith.constant 0 : index
      %13 = vector.load %arg5[%c0_12, %c0_13] : memref<1x128xf32, #tpu.memory_space<vmem>>, vector<1x128xf32>
      %14 = vector.broadcast %13 : vector<1x128xf32> to vector<8x128xf32>
      %15 = arith.addf %12, %14 : vector<8x128xf32>
      %16 = math.roundeven %15 : vector<8x128xf32>
      %c0_14 = arith.constant 0 : index
      %c0_15 = arith.constant 0 : index
      %17 = vector.load %arg6[%c0_14, %c0_15] : memref<8x128xf32, #tpu.memory_space<vmem>>, vector<8x128xf32>
      tpu.vector_store %arg6[%c0_14, %c0_15], %16 {strides = array<i32>} : memref<8x128xf32, #tpu.memory_space<vmem>>, vector<8x128xf32>,
    } else {
    }
    return
  }
  func.func @transform_0(%arg0: i32, %arg1: i32, %arg2: i32) -> (i32, i32) {
    %c0_i32 = arith.constant 0 : i32
    return %arg0, %arg2 : i32, i32
  }
  func.func @transform_1(%arg0: i32, %arg1: i32, %arg2: i32) -> (i32, i32) {
    %c0_i32 = arith.constant 0 : i32
    return %arg2, %arg1 : i32, i32
  }
  func.func @transform_2(%arg0: i32, %arg1: i32, %arg2: i32) -> (i32, i32) {
    %c0_i32 = arith.constant 0 : i32
    %c0_i32_0 = arith.constant 0 : i32
    return %c0_i32, %arg1 : i32, i32
  }
  func.func @transform_3(%arg0: i32, %arg1: i32, %arg2: i32) -> (i32, i32) {
    %c0_i32 = arith.constant 0 : i32
    return %arg0, %arg1 : i32, i32
  }
}

module attributes {stable_mosaic.version = 11 : i64} {
  func.func @_gemm_gdn_kernel(%arg0: i32, %arg1: i32, %arg2: i32, %arg3: memref<8x128xbf16, #tpu.memory_space<vmem>>, %arg4: memref<128x128xbf16, #tpu.memory_space<vmem>>, %arg5: memref<1x128xf32, #tpu.memory_space<vmem>>, %arg6: memref<128x128xf32, #tpu.memory_space<vmem>>, %arg7: memref<1x128xf32, #tpu.memory_space<vmem>>, %arg8: memref<8x128xf32, #tpu.memory_space<vmem>>, %arg9: memref<8x128xf32, #tpu.memory_space<vmem>>) attributes {dimension_semantics = [#tpu.dimension_semantics<parallel>, #tpu.dimension_semantics<parallel>, #tpu.dimension_semantics<arbitrary>], iteration_bounds = array<i64: 1, 1, 1>, scalar_prefetch = 0 : i64, scratch_operands = 1 : i64, tpu.core_type = #tpu.core_type<tc>, window_params = [{transform_indices = @transform_0, window_bounds = array<i64: 8, 128>}, {transform_indices = @transform_1, window_bounds = array<i64: 128, 128>}, {transform_indices = @transform_2, window_bounds = array<i64: 1, 128>}, {pipeline_mode = #tpu.pipeline_mode<synchronous>, transform_indices = @transform_3, window_bounds = array<i64: 128, 128>}, {pipeline_mode = #tpu.pipeline_mode<synchronous>, transform_indices = @transform_4, window_bounds = array<i64: 1, 128>}, {transform_indices = @transform_5, window_bounds = array<i64: 8, 128>}]} {
    %c0_i32 = arith.constant 0 : i32
    %0 = arith.cmpi eq, %arg2, %c0_i32 : i32
    %1 = arith.extui %0 : i1 to i32
    %c0_i32_0 = arith.constant 0 : i32
    %2 = arith.cmpi ne, %1, %c0_i32_0 : i32
    scf.if %2 {
      %cst_10 = arith.constant 0.000000e+00 : f32
      %12 = vector.broadcast %cst_10 : f32 to vector<8x128xf32>
      %c0_11 = arith.constant 0 : index
      %c0_12 = arith.constant 0 : index
      %13 = vector.load %arg9[%c0_11, %c0_12] : memref<8x128xf32, #tpu.memory_space<vmem>>, vector<8x128xf32>
      tpu.vector_store %arg9[%c0_11, %c0_12], %12 {strides = array<i32>} : memref<8x128xf32, #tpu.memory_space<vmem>>, vector<8x128xf32>,
    } else {
    }
    %c0 = arith.constant 0 : index
    %c0_1 = arith.constant 0 : index
    %3 = vector.load %arg9[%c0, %c0_1] : memref<8x128xf32, #tpu.memory_space<vmem>>, vector<8x128xf32>
    %c0_2 = arith.constant 0 : index
    %c0_3 = arith.constant 0 : index
    %4 = vector.load %arg3[%c0_2, %c0_3] : memref<8x128xbf16, #tpu.memory_space<vmem>>, vector<8x128xbf16>
    %c0_4 = arith.constant 0 : index
    %c0_5 = arith.constant 0 : index
    %5 = vector.load %arg4[%c0_4, %c0_5] : memref<128x128xbf16, #tpu.memory_space<vmem>>, vector<128x128xbf16>
    %cst = arith.constant dense<0.000000e+00> : vector<8x128xf32>
    %6 = tpu.matmul %4, %5, %cst {dimension_numbers = #tpu.dot_dimension_numbers<[1], [0], [0], [1], [0, 0, 1, 1], [], []>} : vector<8x128xbf16>, vector<128x128xbf16>, vector<8x128xf32> -> vector<8x128xf32>
    %7 = arith.addf %3, %6 : vector<8x128xf32>
    %c0_6 = arith.constant 0 : index
    %c0_7 = arith.constant 0 : index
    %8 = vector.load %arg9[%c0_6, %c0_7] : memref<8x128xf32, #tpu.memory_space<vmem>>, vector<8x128xf32>
    tpu.vector_store %arg9[%c0_6, %c0_7], %7 {strides = array<i32>} : memref<8x128xf32, #tpu.memory_space<vmem>>, vector<8x128xf32>,
    %c0_i32_8 = arith.constant 0 : i32
    %9 = arith.cmpi eq, %arg2, %c0_i32_8 : i32
    %10 = arith.extui %9 : i1 to i32
    %c0_i32_9 = arith.constant 0 : i32
    %11 = arith.cmpi ne, %10, %c0_i32_9 : i32
    scf.if %11 {
      %c0_10 = arith.constant 0 : index
      %c0_11 = arith.constant 0 : index
      %12 = vector.load %arg9[%c0_10, %c0_11] : memref<8x128xf32, #tpu.memory_space<vmem>>, vector<8x128xf32>
      %c0_12 = arith.constant 0 : index
      %c0_13 = arith.constant 0 : index
      %13 = vector.load %arg5[%c0_12, %c0_13] : memref<1x128xf32, #tpu.memory_space<vmem>>, vector<1x128xf32>
      %14 = vector.broadcast %13 : vector<1x128xf32> to vector<8x128xf32>
      %15 = arith.addf %12, %14 : vector<8x128xf32>
      %16 = arith.mulf %15, %15 : vector<8x128xf32>
      %c0_14 = arith.constant 0 : index
      %c0_15 = arith.constant 0 : index
      %17 = vector.load %arg6[%c0_14, %c0_15] : memref<128x128xf32, #tpu.memory_space<vmem>>, vector<128x128xf32>
      %cst_16 = arith.constant dense<0.000000e+00> : vector<8x128xf32>
      %18 = tpu.matmul %16, %17, %cst_16 {dimension_numbers = #tpu.dot_dimension_numbers<[1], [0], [0], [1], [0, 0, 1, 1], [], []>} : vector<8x128xf32>, vector<128x128xf32>, vector<8x128xf32> -> vector<8x128xf32>
      %c0_17 = arith.constant 0 : index
      %c0_18 = arith.constant 0 : index
      %19 = vector.load %arg7[%c0_17, %c0_18] : memref<1x128xf32, #tpu.memory_space<vmem>>, vector<1x128xf32>
      %20 = vector.broadcast %19 : vector<1x128xf32> to vector<8x128xf32>
      %21 = arith.addf %18, %20 : vector<8x128xf32>
      %22 = math.sqrt %21 : vector<8x128xf32>
      %23 = arith.mulf %15, %22 : vector<8x128xf32>
      %c0_19 = arith.constant 0 : index
      %c0_20 = arith.constant 0 : index
      %24 = vector.load %arg8[%c0_19, %c0_20] : memref<8x128xf32, #tpu.memory_space<vmem>>, vector<8x128xf32>
      tpu.vector_store %arg8[%c0_19, %c0_20], %23 {strides = array<i32>} : memref<8x128xf32, #tpu.memory_space<vmem>>, vector<8x128xf32>,
    } else {
    }
    return
  }
  func.func @transform_0(%arg0: i32, %arg1: i32, %arg2: i32) -> (i32, i32) {
    %c0_i32 = arith.constant 0 : i32
    return %arg0, %arg2 : i32, i32
  }
  func.func @transform_1(%arg0: i32, %arg1: i32, %arg2: i32) -> (i32, i32) {
    %c0_i32 = arith.constant 0 : i32
    return %arg2, %arg1 : i32, i32
  }
  func.func @transform_2(%arg0: i32, %arg1: i32, %arg2: i32) -> (i32, i32) {
    %c0_i32 = arith.constant 0 : i32
    %c0_i32_0 = arith.constant 0 : i32
    return %c0_i32, %arg1 : i32, i32
  }
  func.func @transform_3(%arg0: i32, %arg1: i32, %arg2: i32) -> (i32, i32) {
    %c0_i32 = arith.constant 0 : i32
    %c0_i32_0 = arith.constant 0 : i32
    %c0_i32_1 = arith.constant 0 : i32
    return %c0_i32, %c0_i32_0 : i32, i32
  }
  func.func @transform_4(%arg0: i32, %arg1: i32, %arg2: i32) -> (i32, i32) {
    %c0_i32 = arith.constant 0 : i32
    %c0_i32_0 = arith.constant 0 : i32
    %c0_i32_1 = arith.constant 0 : i32
    return %c0_i32, %c0_i32_0 : i32, i32
  }
  func.func @transform_5(%arg0: i32, %arg1: i32, %arg2: i32) -> (i32, i32) {
    %c0_i32 = arith.constant 0 : i32
    return %arg0, %arg1 : i32, i32
  }
}

module attributes {stable_mosaic.version = 11 : i64} {
  func.func @_gemm_gdn_kernel(%arg0: i32, %arg1: i32, %arg2: i32, %arg3: memref<32x128xbf16, #tpu.memory_space<vmem>>, %arg4: memref<128x128xbf16, #tpu.memory_space<vmem>>, %arg5: memref<1x128xf32, #tpu.memory_space<vmem>>, %arg6: memref<128x128xf32, #tpu.memory_space<vmem>>, %arg7: memref<1x128xf32, #tpu.memory_space<vmem>>, %arg8: memref<32x128xf32, #tpu.memory_space<vmem>>, %arg9: memref<32x128xf32, #tpu.memory_space<vmem>>) attributes {dimension_semantics = [#tpu.dimension_semantics<parallel>, #tpu.dimension_semantics<parallel>, #tpu.dimension_semantics<arbitrary>], iteration_bounds = array<i64: 1, 1, 1>, scalar_prefetch = 0 : i64, scratch_operands = 1 : i64, tpu.core_type = #tpu.core_type<tc>, window_params = [{transform_indices = @transform_0, window_bounds = array<i64: 32, 128>}, {transform_indices = @transform_1, window_bounds = array<i64: 128, 128>}, {transform_indices = @transform_2, window_bounds = array<i64: 1, 128>}, {pipeline_mode = #tpu.pipeline_mode<synchronous>, transform_indices = @transform_3, window_bounds = array<i64: 128, 128>}, {pipeline_mode = #tpu.pipeline_mode<synchronous>, transform_indices = @transform_4, window_bounds = array<i64: 1, 128>}, {transform_indices = @transform_5, window_bounds = array<i64: 32, 128>}]} {
    %c0_i32 = arith.constant 0 : i32
    %0 = arith.cmpi eq, %arg2, %c0_i32 : i32
    %1 = arith.extui %0 : i1 to i32
    %c0_i32_0 = arith.constant 0 : i32
    %2 = arith.cmpi ne, %1, %c0_i32_0 : i32
    scf.if %2 {
      %cst_10 = arith.constant 0.000000e+00 : f32
      %12 = vector.broadcast %cst_10 : f32 to vector<32x128xf32>
      %c0_11 = arith.constant 0 : index
      %c0_12 = arith.constant 0 : index
      %13 = vector.load %arg9[%c0_11, %c0_12] : memref<32x128xf32, #tpu.memory_space<vmem>>, vector<32x128xf32>
      tpu.vector_store %arg9[%c0_11, %c0_12], %12 {strides = array<i32>} : memref<32x128xf32, #tpu.memory_space<vmem>>, vector<32x128xf32>,
    } else {
    }
    %c0 = arith.constant 0 : index
    %c0_1 = arith.constant 0 : index
    %3 = vector.load %arg9[%c0, %c0_1] : memref<32x128xf32, #tpu.memory_space<vmem>>, vector<32x128xf32>
    %c0_2 = arith.constant 0 : index
    %c0_3 = arith.constant 0 : index
    %4 = vector.load %arg3[%c0_2, %c0_3] : memref<32x128xbf16, #tpu.memory_space<vmem>>, vector<32x128xbf16>
    %c0_4 = arith.constant 0 : index
    %c0_5 = arith.constant 0 : index
    %5 = vector.load %arg4[%c0_4, %c0_5] : memref<128x128xbf16, #tpu.memory_space<vmem>>, vector<128x128xbf16>
    %cst = arith.constant dense<0.000000e+00> : vector<32x128xf32>
    %6 = tpu.matmul %4, %5, %cst {dimension_numbers = #tpu.dot_dimension_numbers<[1], [0], [0], [1], [0, 0, 1, 1], [], []>} : vector<32x128xbf16>, vector<128x128xbf16>, vector<32x128xf32> -> vector<32x128xf32>
    %7 = arith.addf %3, %6 : vector<32x128xf32>
    %c0_6 = arith.constant 0 : index
    %c0_7 = arith.constant 0 : index
    %8 = vector.load %arg9[%c0_6, %c0_7] : memref<32x128xf32, #tpu.memory_space<vmem>>, vector<32x128xf32>
    tpu.vector_store %arg9[%c0_6, %c0_7], %7 {strides = array<i32>} : memref<32x128xf32, #tpu.memory_space<vmem>>, vector<32x128xf32>,
    %c0_i32_8 = arith.constant 0 : i32
    %9 = arith.cmpi eq, %arg2, %c0_i32_8 : i32
    %10 = arith.extui %9 : i1 to i32
    %c0_i32_9 = arith.constant 0 : i32
    %11 = arith.cmpi ne, %10, %c0_i32_9 : i32
    scf.if %11 {
      %c0_10 = arith.constant 0 : index
      %c0_11 = arith.constant 0 : index
      %12 = vector.load %arg9[%c0_10, %c0_11] : memref<32x128xf32, #tpu.memory_space<vmem>>, vector<32x128xf32>
      %c0_12 = arith.constant 0 : index
      %c0_13 = arith.constant 0 : index
      %13 = vector.load %arg5[%c0_12, %c0_13] : memref<1x128xf32, #tpu.memory_space<vmem>>, vector<1x128xf32>
      %14 = vector.broadcast %13 : vector<1x128xf32> to vector<32x128xf32>
      %15 = arith.addf %12, %14 : vector<32x128xf32>
      %16 = arith.mulf %15, %15 : vector<32x128xf32>
      %c0_14 = arith.constant 0 : index
      %c0_15 = arith.constant 0 : index
      %17 = vector.load %arg6[%c0_14, %c0_15] : memref<128x128xf32, #tpu.memory_space<vmem>>, vector<128x128xf32>
      %cst_16 = arith.constant dense<0.000000e+00> : vector<32x128xf32>
      %18 = tpu.matmul %16, %17, %cst_16 {dimension_numbers = #tpu.dot_dimension_numbers<[1], [0], [0], [1], [0, 0, 1, 1], [], []>} : vector<32x128xf32>, vector<128x128xf32>, vector<32x128xf32> -> vector<32x128xf32>
      %c0_17 = arith.constant 0 : index
      %c0_18 = arith.constant 0 : index
      %19 = vector.load %arg7[%c0_17, %c0_18] : memref<1x128xf32, #tpu.memory_space<vmem>>, vector<1x128xf32>
      %20 = vector.broadcast %19 : vector<1x128xf32> to vector<32x128xf32>
      %21 = arith.addf %18, %20 : vector<32x128xf32>
      %22 = math.sqrt %21 : vector<32x128xf32>
      %23 = arith.mulf %15, %22 : vector<32x128xf32>
      %c0_19 = arith.constant 0 : index
      %c0_20 = arith.constant 0 : index
      %24 = vector.load %arg8[%c0_19, %c0_20] : memref<32x128xf32, #tpu.memory_space<vmem>>, vector<32x128xf32>
      tpu.vector_store %arg8[%c0_19, %c0_20], %23 {strides = array<i32>} : memref<32x128xf32, #tpu.memory_space<vmem>>, vector<32x128xf32>,
    } else {
    }
    return
  }
  func.func @transform_0(%arg0: i32, %arg1: i32, %arg2: i32) -> (i32, i32) {
    %c0_i32 = arith.constant 0 : i32
    return %arg0, %arg2 : i32, i32
  }
  func.func @transform_1(%arg0: i32, %arg1: i32, %arg2: i32) -> (i32, i32) {
    %c0_i32 = arith.constant 0 : i32
    return %arg2, %arg1 : i32, i32
  }
  func.func @transform_2(%arg0: i32, %arg1: i32, %arg2: i32) -> (i32, i32) {
    %c0_i32 = arith.constant 0 : i32
    %c0_i32_0 = arith.constant 0 : i32
    return %c0_i32, %arg1 : i32, i32
  }
  func.func @transform_3(%arg0: i32, %arg1: i32, %arg2: i32) -> (i32, i32) {
    %c0_i32 = arith.constant 0 : i32
    %c0_i32_0 = arith.constant 0 : i32
    %c0_i32_1 = arith.constant 0 : i32
    return %c0_i32, %c0_i32_0 : i32, i32
  }
  func.func @transform_4(%arg0: i32, %arg1: i32, %arg2: i32) -> (i32, i32) {
    %c0_i32 = arith.constant 0 : i32
    %c0_i32_0 = arith.constant 0 : i32
    %c0_i32_1 = arith.constant 0 : i32
    return %c0_i32, %c0_i32_0 : i32, i32
  }
  func.func @transform_5(%arg0: i32, %arg1: i32, %arg2: i32) -> (i32, i32) {
    %c0_i32 = arith.constant 0 : i32
    return %arg0, %arg1 : i32, i32
  }
}

module attributes {stable_mosaic.version = 11 : i64} {
  func.func @_gemm_kernel(%arg0: i32, %arg1: i32, %arg2: i32, %arg3: memref<128x128xbf16, #tpu.memory_space<vmem>>, %arg4: memref<128x128xbf16, #tpu.memory_space<vmem>>, %arg5: memref<1x128xf32, #tpu.memory_space<vmem>>, %arg6: memref<128x128xf32, #tpu.memory_space<vmem>>, %arg7: memref<128x128xf32, #tpu.memory_space<vmem>>) attributes {dimension_semantics = [#tpu.dimension_semantics<parallel>, #tpu.dimension_semantics<parallel>, #tpu.dimension_semantics<arbitrary>], iteration_bounds = array<i64: 1, 1, 1>, scalar_prefetch = 0 : i64, scratch_operands = 1 : i64, tpu.core_type = #tpu.core_type<tc>, window_params = [{transform_indices = @transform_0, window_bounds = array<i64: 128, 128>}, {transform_indices = @transform_1, window_bounds = array<i64: 128, 128>}, {transform_indices = @transform_2, window_bounds = array<i64: 1, 128>}, {transform_indices = @transform_3, window_bounds = array<i64: 128, 128>}]} {
    %c0_i32 = arith.constant 0 : i32
    %0 = arith.cmpi eq, %arg2, %c0_i32 : i32
    %1 = arith.extui %0 : i1 to i32
    %c0_i32_0 = arith.constant 0 : i32
    %2 = arith.cmpi ne, %1, %c0_i32_0 : i32
    scf.if %2 {
      %cst_10 = arith.constant 0.000000e+00 : f32
      %12 = vector.broadcast %cst_10 : f32 to vector<128x128xf32>
      %c0_11 = arith.constant 0 : index
      %c0_12 = arith.constant 0 : index
      %13 = vector.load %arg7[%c0_11, %c0_12] : memref<128x128xf32, #tpu.memory_space<vmem>>, vector<128x128xf32>
      tpu.vector_store %arg7[%c0_11, %c0_12], %12 {strides = array<i32>} : memref<128x128xf32, #tpu.memory_space<vmem>>, vector<128x128xf32>,
    } else {
    }
    %c0 = arith.constant 0 : index
    %c0_1 = arith.constant 0 : index
    %3 = vector.load %arg7[%c0, %c0_1] : memref<128x128xf32, #tpu.memory_space<vmem>>, vector<128x128xf32>
    %c0_2 = arith.constant 0 : index
    %c0_3 = arith.constant 0 : index
    %4 = vector.load %arg3[%c0_2, %c0_3] : memref<128x128xbf16, #tpu.memory_space<vmem>>, vector<128x128xbf16>
    %c0_4 = arith.constant 0 : index
    %c0_5 = arith.constant 0 : index
    %5 = vector.load %arg4[%c0_4, %c0_5] : memref<128x128xbf16, #tpu.memory_space<vmem>>, vector<128x128xbf16>
    %cst = arith.constant dense<0.000000e+00> : vector<128x128xf32>
    %6 = tpu.matmul %4, %5, %cst {dimension_numbers = #tpu.dot_dimension_numbers<[1], [0], [0], [1], [0, 0, 1, 1], [], []>} : vector<128x128xbf16>, vector<128x128xbf16>, vector<128x128xf32> -> vector<128x128xf32>
    %7 = arith.addf %3, %6 : vector<128x128xf32>
    %c0_6 = arith.constant 0 : index
    %c0_7 = arith.constant 0 : index
    %8 = vector.load %arg7[%c0_6, %c0_7] : memref<128x128xf32, #tpu.memory_space<vmem>>, vector<128x128xf32>
    tpu.vector_store %arg7[%c0_6, %c0_7], %7 {strides = array<i32>} : memref<128x128xf32, #tpu.memory_space<vmem>>, vector<128x128xf32>,
    %c0_i32_8 = arith.constant 0 : i32
    %9 = arith.cmpi eq, %arg2, %c0_i32_8 : i32
    %10 = arith.extui %9 : i1 to i32
    %c0_i32_9 = arith.constant 0 : i32
    %11 = arith.cmpi ne, %10, %c0_i32_9 : i32
    scf.if %11 {
      %c0_10 = arith.constant 0 : index
      %c0_11 = arith.constant 0 : index
      %12 = vector.load %arg7[%c0_10, %c0_11] : memref<128x128xf32, #tpu.memory_space<vmem>>, vector<128x128xf32>
      %c0_12 = arith.constant 0 : index
      %c0_13 = arith.constant 0 : index
      %13 = vector.load %arg5[%c0_12, %c0_13] : memref<1x128xf32, #tpu.memory_space<vmem>>, vector<1x128xf32>
      %14 = vector.broadcast %13 : vector<1x128xf32> to vector<128x128xf32>
      %15 = arith.addf %12, %14 : vector<128x128xf32>
      %c0_14 = arith.constant 0 : index
      %c0_15 = arith.constant 0 : index
      %16 = vector.load %arg6[%c0_14, %c0_15] : memref<128x128xf32, #tpu.memory_space<vmem>>, vector<128x128xf32>
      tpu.vector_store %arg6[%c0_14, %c0_15], %15 {strides = array<i32>} : memref<128x128xf32, #tpu.memory_space<vmem>>, vector<128x128xf32>,
    } else {
    }
    return
  }
  func.func @transform_0(%arg0: i32, %arg1: i32, %arg2: i32) -> (i32, i32) {
    %c0_i32 = arith.constant 0 : i32
    return %arg0, %arg2 : i32, i32
  }
  func.func @transform_1(%arg0: i32, %arg1: i32, %arg2: i32) -> (i32, i32) {
    %c0_i32 = arith.constant 0 : i32
    return %arg2, %arg1 : i32, i32
  }
  func.func @transform_2(%arg0: i32, %arg1: i32, %arg2: i32) -> (i32, i32) {
    %c0_i32 = arith.constant 0 : i32
    %c0_i32_0 = arith.constant 0 : i32
    return %c0_i32, %arg1 : i32, i32
  }
  func.func @transform_3(%arg0: i32, %arg1: i32, %arg2: i32) -> (i32, i32) {
    %c0_i32 = arith.constant 0 : i32
    return %arg0, %arg1 : i32, i32
  }
}

module attributes {stable_mosaic.version = 11 : i64} {
  func.func @_clip_mse_kernel(%arg0: i32, %arg1: memref<48x128xf32, #tpu.memory_space<vmem>>, %arg2: memref<48x128xf32, #tpu.memory_space<vmem>>, %arg3: memref<48x128xf32, #tpu.memory_space<vmem>>, %arg4: memref<1x1xf32, #tpu.memory_space<vmem>>) attributes {dimension_semantics = [#tpu.dimension_semantics<arbitrary>], iteration_bounds = array<i64: 1>, scalar_prefetch = 0 : i64, scratch_operands = 0 : i64, tpu.core_type = #tpu.core_type<tc>, window_params = [{transform_indices = @transform_0, window_bounds = array<i64: 48, 128>}, {transform_indices = @transform_1, window_bounds = array<i64: 48, 128>}, {transform_indices = @transform_2, window_bounds = array<i64: 48, 128>}, {pipeline_mode = #tpu.pipeline_mode<synchronous>, transform_indices = @transform_3, window_bounds = array<i64: 1, 1>}]} {
    %c0 = arith.constant 0 : index
    %c0_0 = arith.constant 0 : index
    %0 = vector.load %arg1[%c0, %c0_0] : memref<48x128xf32, #tpu.memory_space<vmem>>, vector<48x128xf32>
    %cst = arith.constant 0.000000e+00 : f32
    %cst_1 = arith.constant 1.000000e+00 : f32
    %1 = vector.broadcast %cst : f32 to vector<48x128xf32>
    %2 = arith.maximumf %1, %0 : vector<48x128xf32>
    %3 = vector.broadcast %cst_1 : f32 to vector<48x128xf32>
    %4 = arith.minimumf %3, %2 : vector<48x128xf32>
    %c0_2 = arith.constant 0 : index
    %c0_3 = arith.constant 0 : index
    %5 = vector.load %arg3[%c0_2, %c0_3] : memref<48x128xf32, #tpu.memory_space<vmem>>, vector<48x128xf32>
    tpu.vector_store %arg3[%c0_2, %c0_3], %4 {strides = array<i32>} : memref<48x128xf32, #tpu.memory_space<vmem>>, vector<48x128xf32>,
    %c0_4 = arith.constant 0 : index
    %c0_5 = arith.constant 0 : index
    %6 = vector.load %arg2[%c0_4, %c0_5] : memref<48x128xf32, #tpu.memory_space<vmem>>, vector<48x128xf32>
    %7 = arith.subf %0, %6 : vector<48x128xf32>
    %8 = arith.mulf %7, %7 : vector<48x128xf32>
    %cst_6 = arith.constant dense<0.000000e+00> : vector<128xf32>
    %9 = vector.multi_reduction <add>, %8, %cst_6 [0] : vector<48x128xf32> to vector<128xf32>
    %10 = vector.shape_cast %9 : vector<128xf32> to vector<1x128xf32>
    %cst_7 = arith.constant dense<0.000000e+00> : vector<1xf32>
    %11 = vector.multi_reduction <add>, %10, %cst_7 [1] : vector<1x128xf32> to vector<1xf32>
    %12 = vector.shape_cast %11 : vector<1xf32> to vector<1x1xf32>
    %c0_i32 = arith.constant 0 : i32
    %13 = arith.cmpi eq, %arg0, %c0_i32 : i32
    %14 = arith.extui %13 : i1 to i32
    %c0_i32_8 = arith.constant 0 : i32
    %15 = arith.cmpi ne, %14, %c0_i32_8 : i32
    scf.if %15 {
      %cst_13 = arith.constant 0.000000e+00 : f32
      %19 = vector.broadcast %cst_13 : f32 to vector<1x1xf32>
      %c0_14 = arith.constant 0 : index
      %c0_15 = arith.constant 0 : index
      %20 = vector.load %arg4[%c0_14, %c0_15] : memref<1x1xf32, #tpu.memory_space<vmem>>, vector<1x1xf32>
      tpu.vector_store %arg4[%c0_14, %c0_15], %19 {strides = array<i32>} : memref<1x1xf32, #tpu.memory_space<vmem>>, vector<1x1xf32>,
    } else {
    }
    %c0_9 = arith.constant 0 : index
    %c0_10 = arith.constant 0 : index
    %16 = vector.load %arg4[%c0_9, %c0_10] : memref<1x1xf32, #tpu.memory_space<vmem>>, vector<1x1xf32>
    %17 = arith.addf %16, %12 : vector<1x1xf32>
    %c0_11 = arith.constant 0 : index
    %c0_12 = arith.constant 0 : index
    %18 = vector.load %arg4[%c0_11, %c0_12] : memref<1x1xf32, #tpu.memory_space<vmem>>, vector<1x1xf32>
    tpu.vector_store %arg4[%c0_11, %c0_12], %17 {strides = array<i32>} : memref<1x1xf32, #tpu.memory_space<vmem>>, vector<1x1xf32>,
    return
  }
  func.func @transform_0(%arg0: i32) -> (i32, i32) {
    %c0_i32 = arith.constant 0 : i32
    %c0_i32_0 = arith.constant 0 : i32
    return %arg0, %c0_i32 : i32, i32
  }
  func.func @transform_1(%arg0: i32) -> (i32, i32) {
    %c0_i32 = arith.constant 0 : i32
    %c0_i32_0 = arith.constant 0 : i32
    return %arg0, %c0_i32 : i32, i32
  }
  func.func @transform_2(%arg0: i32) -> (i32, i32) {
    %c0_i32 = arith.constant 0 : i32
    %c0_i32_0 = arith.constant 0 : i32
    return %arg0, %c0_i32 : i32, i32
  }
  func.func @transform_3(%arg0: i32) -> (i32, i32) {
    %c0_i32 = arith.constant 0 : i32
    %c0_i32_0 = arith.constant 0 : i32
    %c0_i32_1 = arith.constant 0 : i32
    return %c0_i32, %c0_i32_0 : i32, i32
  }
}

module attributes {stable_mosaic.version = 11 : i64} {
  func.func @_bits_kernel(%arg0: i32, %arg1: memref<8x128xf32, #tpu.memory_space<vmem>>, %arg2: memref<1x128xf32, #tpu.memory_space<vmem>>, %arg3: memref<1x128xf32, #tpu.memory_space<vmem>>, %arg4: memref<1x128xf32, #tpu.memory_space<vmem>>, %arg5: memref<1x128xf32, #tpu.memory_space<vmem>>, %arg6: memref<1x128xf32, #tpu.memory_space<vmem>>, %arg7: memref<1x128xf32, #tpu.memory_space<vmem>>, %arg8: memref<1x128xf32, #tpu.memory_space<vmem>>, %arg9: memref<1x128xf32, #tpu.memory_space<vmem>>, %arg10: memref<1x128xf32, #tpu.memory_space<vmem>>, %arg11: memref<1x128xf32, #tpu.memory_space<vmem>>, %arg12: memref<1x128xf32, #tpu.memory_space<vmem>>, %arg13: memref<1x1xf32, #tpu.memory_space<vmem>>) attributes {dimension_semantics = [#tpu.dimension_semantics<arbitrary>], iteration_bounds = array<i64: 1>, scalar_prefetch = 0 : i64, scratch_operands = 0 : i64, tpu.core_type = #tpu.core_type<tc>, window_params = [{transform_indices = @transform_0, window_bounds = array<i64: 8, 128>}, {pipeline_mode = #tpu.pipeline_mode<synchronous>, transform_indices = @transform_1, window_bounds = array<i64: 1, 128>}, {pipeline_mode = #tpu.pipeline_mode<synchronous>, transform_indices = @transform_2, window_bounds = array<i64: 1, 128>}, {pipeline_mode = #tpu.pipeline_mode<synchronous>, transform_indices = @transform_3, window_bounds = array<i64: 1, 128>}, {pipeline_mode = #tpu.pipeline_mode<synchronous>, transform_indices = @transform_4, window_bounds = array<i64: 1, 128>}, {pipeline_mode = #tpu.pipeline_mode<synchronous>, transform_indices = @transform_5, window_bounds = array<i64: 1, 128>}, {pipeline_mode = #tpu.pipeline_mode<synchronous>, transform_indices = @transform_6, window_bounds = array<i64: 1, 128>}, {pipeline_mode = #tpu.pipeline_mode<synchronous>, transform_indices = @transform_7, window_bounds = array<i64: 1, 128>}, {pipeline_mode = #tpu.pipeline_mode<synchronous>, transform_indices = @transform_8, window_bounds = array<i64: 1, 128>}, {pipeline_mode = #tpu.pipeline_mode<synchronous>, transform_indices = @transform_9, window_bounds = array<i64: 1, 128>}, {pipeline_mode = #tpu.pipeline_mode<synchronous>, transform_indices = @transform_10, window_bounds = array<i64: 1, 128>}, {pipeline_mode = #tpu.pipeline_mode<synchronous>, transform_indices = @transform_11, window_bounds = array<i64: 1, 128>}, {pipeline_mode = #tpu.pipeline_mode<synchronous>, transform_indices = @transform_12, window_bounds = array<i64: 1, 1>}]} {
    %c0 = arith.constant 0 : index
    %c0_0 = arith.constant 0 : index
    %0 = vector.load %arg1[%c0, %c0_0] : memref<8x128xf32, #tpu.memory_space<vmem>>, vector<8x128xf32>
    %cst = arith.constant 5.000000e-01 : f32
    %1 = vector.broadcast %cst : f32 to vector<8x128xf32>
    %2 = arith.addf %0, %1 : vector<8x128xf32>
    %c0_1 = arith.constant 0 : index
    %c0_2 = arith.constant 0 : index
    %3 = vector.load %arg2[%c0_1, %c0_2] : memref<1x128xf32, #tpu.memory_space<vmem>>, vector<1x128xf32>
    %4 = vector.broadcast %3 : vector<1x128xf32> to vector<8x128xf32>
    %5 = arith.mulf %2, %4 : vector<8x128xf32>
    %c0_3 = arith.constant 0 : index
    %c0_4 = arith.constant 0 : index
    %6 = vector.load %arg3[%c0_3, %c0_4] : memref<1x128xf32, #tpu.memory_space<vmem>>, vector<1x128xf32>
    %7 = vector.broadcast %6 : vector<1x128xf32> to vector<8x128xf32>
    %8 = arith.addf %5, %7 : vector<8x128xf32>
    %9 = math.tanh %8 : vector<8x128xf32>
    %c0_5 = arith.constant 0 : index
    %c0_6 = arith.constant 0 : index
    %10 = vector.load %arg4[%c0_5, %c0_6] : memref<1x128xf32, #tpu.memory_space<vmem>>, vector<1x128xf32>
    %11 = vector.broadcast %10 : vector<1x128xf32> to vector<8x128xf32>
    %12 = arith.mulf %9, %11 : vector<8x128xf32>
    %13 = arith.addf %8, %12 : vector<8x128xf32>
    %c0_7 = arith.constant 0 : index
    %c0_8 = arith.constant 0 : index
    %14 = vector.load %arg5[%c0_7, %c0_8] : memref<1x128xf32, #tpu.memory_space<vmem>>, vector<1x128xf32>
    %15 = vector.broadcast %14 : vector<1x128xf32> to vector<8x128xf32>
    %16 = arith.mulf %13, %15 : vector<8x128xf32>
    %c0_9 = arith.constant 0 : index
    %c0_10 = arith.constant 0 : index
    %17 = vector.load %arg6[%c0_9, %c0_10] : memref<1x128xf32, #tpu.memory_space<vmem>>, vector<1x128xf32>
    %18 = vector.broadcast %17 : vector<1x128xf32> to vector<8x128xf32>
    %19 = arith.addf %16, %18 : vector<8x128xf32>
    %20 = math.tanh %19 : vector<8x128xf32>
    %c0_11 = arith.constant 0 : index
    %c0_12 = arith.constant 0 : index
    %21 = vector.load %arg7[%c0_11, %c0_12] : memref<1x128xf32, #tpu.memory_space<vmem>>, vector<1x128xf32>
    %22 = vector.broadcast %21 : vector<1x128xf32> to vector<8x128xf32>
    %23 = arith.mulf %20, %22 : vector<8x128xf32>
    %24 = arith.addf %19, %23 : vector<8x128xf32>
    %c0_13 = arith.constant 0 : index
    %c0_14 = arith.constant 0 : index
    %25 = vector.load %arg8[%c0_13, %c0_14] : memref<1x128xf32, #tpu.memory_space<vmem>>, vector<1x128xf32>
    %26 = vector.broadcast %25 : vector<1x128xf32> to vector<8x128xf32>
    %27 = arith.mulf %24, %26 : vector<8x128xf32>
    %c0_15 = arith.constant 0 : index
    %c0_16 = arith.constant 0 : index
    %28 = vector.load %arg9[%c0_15, %c0_16] : memref<1x128xf32, #tpu.memory_space<vmem>>, vector<1x128xf32>
    %29 = vector.broadcast %28 : vector<1x128xf32> to vector<8x128xf32>
    %30 = arith.addf %27, %29 : vector<8x128xf32>
    %31 = math.tanh %30 : vector<8x128xf32>
    %c0_17 = arith.constant 0 : index
    %c0_18 = arith.constant 0 : index
    %32 = vector.load %arg10[%c0_17, %c0_18] : memref<1x128xf32, #tpu.memory_space<vmem>>, vector<1x128xf32>
    %33 = vector.broadcast %32 : vector<1x128xf32> to vector<8x128xf32>
    %34 = arith.mulf %31, %33 : vector<8x128xf32>
    %35 = arith.addf %30, %34 : vector<8x128xf32>
    %c0_19 = arith.constant 0 : index
    %c0_20 = arith.constant 0 : index
    %36 = vector.load %arg11[%c0_19, %c0_20] : memref<1x128xf32, #tpu.memory_space<vmem>>, vector<1x128xf32>
    %37 = vector.broadcast %36 : vector<1x128xf32> to vector<8x128xf32>
    %38 = arith.mulf %35, %37 : vector<8x128xf32>
    %c0_21 = arith.constant 0 : index
    %c0_22 = arith.constant 0 : index
    %39 = vector.load %arg12[%c0_21, %c0_22] : memref<1x128xf32, #tpu.memory_space<vmem>>, vector<1x128xf32>
    %40 = vector.broadcast %39 : vector<1x128xf32> to vector<8x128xf32>
    %41 = arith.addf %38, %40 : vector<8x128xf32>
    %42 = arith.negf %41 : vector<8x128xf32>
    %43 = math.exp %42 : vector<8x128xf32>
    %cst_23 = arith.constant 1.000000e+00 : f32
    %44 = vector.broadcast %cst_23 : f32 to vector<8x128xf32>
    %45 = arith.addf %44, %43 : vector<8x128xf32>
    %46 = arith.divf %44, %45 : vector<8x128xf32>
    %cst_24 = arith.constant 5.000000e-01 : f32
    %47 = vector.broadcast %cst_24 : f32 to vector<8x128xf32>
    %48 = arith.subf %0, %47 : vector<8x128xf32>
    %c0_25 = arith.constant 0 : index
    %c0_26 = arith.constant 0 : index
    %49 = vector.load %arg2[%c0_25, %c0_26] : memref<1x128xf32, #tpu.memory_space<vmem>>, vector<1x128xf32>
    %50 = vector.broadcast %49 : vector<1x128xf32> to vector<8x128xf32>
    %51 = arith.mulf %48, %50 : vector<8x128xf32>
    %c0_27 = arith.constant 0 : index
    %c0_28 = arith.constant 0 : index
    %52 = vector.load %arg3[%c0_27, %c0_28] : memref<1x128xf32, #tpu.memory_space<vmem>>, vector<1x128xf32>
    %53 = vector.broadcast %52 : vector<1x128xf32> to vector<8x128xf32>
    %54 = arith.addf %51, %53 : vector<8x128xf32>
    %55 = math.tanh %54 : vector<8x128xf32>
    %c0_29 = arith.constant 0 : index
    %c0_30 = arith.constant 0 : index
    %56 = vector.load %arg4[%c0_29, %c0_30] : memref<1x128xf32, #tpu.memory_space<vmem>>, vector<1x128xf32>
    %57 = vector.broadcast %56 : vector<1x128xf32> to vector<8x128xf32>
    %58 = arith.mulf %55, %57 : vector<8x128xf32>
    %59 = arith.addf %54, %58 : vector<8x128xf32>
    %c0_31 = arith.constant 0 : index
    %c0_32 = arith.constant 0 : index
    %60 = vector.load %arg5[%c0_31, %c0_32] : memref<1x128xf32, #tpu.memory_space<vmem>>, vector<1x128xf32>
    %61 = vector.broadcast %60 : vector<1x128xf32> to vector<8x128xf32>
    %62 = arith.mulf %59, %61 : vector<8x128xf32>
    %c0_33 = arith.constant 0 : index
    %c0_34 = arith.constant 0 : index
    %63 = vector.load %arg6[%c0_33, %c0_34] : memref<1x128xf32, #tpu.memory_space<vmem>>, vector<1x128xf32>
    %64 = vector.broadcast %63 : vector<1x128xf32> to vector<8x128xf32>
    %65 = arith.addf %62, %64 : vector<8x128xf32>
    %66 = math.tanh %65 : vector<8x128xf32>
    %c0_35 = arith.constant 0 : index
    %c0_36 = arith.constant 0 : index
    %67 = vector.load %arg7[%c0_35, %c0_36] : memref<1x128xf32, #tpu.memory_space<vmem>>, vector<1x128xf32>
    %68 = vector.broadcast %67 : vector<1x128xf32> to vector<8x128xf32>
    %69 = arith.mulf %66, %68 : vector<8x128xf32>
    %70 = arith.addf %65, %69 : vector<8x128xf32>
    %c0_37 = arith.constant 0 : index
    %c0_38 = arith.constant 0 : index
    %71 = vector.load %arg8[%c0_37, %c0_38] : memref<1x128xf32, #tpu.memory_space<vmem>>, vector<1x128xf32>
    %72 = vector.broadcast %71 : vector<1x128xf32> to vector<8x128xf32>
    %73 = arith.mulf %70, %72 : vector<8x128xf32>
    %c0_39 = arith.constant 0 : index
    %c0_40 = arith.constant 0 : index
    %74 = vector.load %arg9[%c0_39, %c0_40] : memref<1x128xf32, #tpu.memory_space<vmem>>, vector<1x128xf32>
    %75 = vector.broadcast %74 : vector<1x128xf32> to vector<8x128xf32>
    %76 = arith.addf %73, %75 : vector<8x128xf32>
    %77 = math.tanh %76 : vector<8x128xf32>
    %c0_41 = arith.constant 0 : index
    %c0_42 = arith.constant 0 : index
    %78 = vector.load %arg10[%c0_41, %c0_42] : memref<1x128xf32, #tpu.memory_space<vmem>>, vector<1x128xf32>
    %79 = vector.broadcast %78 : vector<1x128xf32> to vector<8x128xf32>
    %80 = arith.mulf %77, %79 : vector<8x128xf32>
    %81 = arith.addf %76, %80 : vector<8x128xf32>
    %c0_43 = arith.constant 0 : index
    %c0_44 = arith.constant 0 : index
    %82 = vector.load %arg11[%c0_43, %c0_44] : memref<1x128xf32, #tpu.memory_space<vmem>>, vector<1x128xf32>
    %83 = vector.broadcast %82 : vector<1x128xf32> to vector<8x128xf32>
    %84 = arith.mulf %81, %83 : vector<8x128xf32>
    %c0_45 = arith.constant 0 : index
    %c0_46 = arith.constant 0 : index
    %85 = vector.load %arg12[%c0_45, %c0_46] : memref<1x128xf32, #tpu.memory_space<vmem>>, vector<1x128xf32>
    %86 = vector.broadcast %85 : vector<1x128xf32> to vector<8x128xf32>
    %87 = arith.addf %84, %86 : vector<8x128xf32>
    %88 = arith.negf %87 : vector<8x128xf32>
    %89 = math.exp %88 : vector<8x128xf32>
    %cst_47 = arith.constant 1.000000e+00 : f32
    %90 = vector.broadcast %cst_47 : f32 to vector<8x128xf32>
    %91 = arith.addf %90, %89 : vector<8x128xf32>
    %92 = arith.divf %90, %91 : vector<8x128xf32>
    %93 = arith.subf %46, %92 : vector<8x128xf32>
    %cst_48 = arith.constant 1.000000e-10 : f32
    %94 = vector.broadcast %cst_48 : f32 to vector<8x128xf32>
    %95 = arith.addf %93, %94 : vector<8x128xf32>
    %96 = math.log %95 : vector<8x128xf32>
    %cst_49 = arith.constant 0.000000e+00 : f32
    %97 = vector.broadcast %cst_49 : f32 to vector<8x128xf32>
    %98 = arith.subf %97, %96 : vector<8x128xf32>
    %cst_50 = arith.constant 1.44269502 : f32
    %99 = vector.broadcast %cst_50 : f32 to vector<8x128xf32>
    %100 = arith.mulf %98, %99 : vector<8x128xf32>
    %cst_51 = arith.constant 0.000000e+00 : f32
    %cst_52 = arith.constant 5.000000e+01 : f32
    %101 = vector.broadcast %cst_51 : f32 to vector<8x128xf32>
    %102 = arith.maximumf %101, %100 : vector<8x128xf32>
    %103 = vector.broadcast %cst_52 : f32 to vector<8x128xf32>
    %104 = arith.minimumf %103, %102 : vector<8x128xf32>
    %105 = tpu.iota {dimensions = array<i32: 0>} : vector<8x128xi32>
    %106 = tpu.iota {dimensions = array<i32: 1>} : vector<8x128xi32>
    %c8_i32 = arith.constant 8 : i32
    %107 = arith.muli %arg0, %c8_i32 : i32
    %108 = vector.broadcast %107 : i32 to vector<8x128xi32>
    %109 = arith.addi %108, %105 : vector<8x128xi32>
    %c128_i32 = arith.constant 128 : i32
    %110 = vector.broadcast %c128_i32 : i32 to vector<8x128xi32>
    %111 = arith.muli %109, %110 : vector<8x128xi32>
    %112 = arith.addi %111, %106 : vector<8x128xi32>
    %c64_i32 = arith.constant 64 : i32
    %113 = vector.broadcast %c64_i32 : i32 to vector<8x128xi32>
    %114 = arith.cmpi slt, %112, %113 : vector<8x128xi32>
    %cst_53 = arith.constant 0.000000e+00 : f32
    %115 = vector.broadcast %cst_53 : f32 to vector<8x128xf32>
    %116 = arith.select %114, %104, %115 : vector<8x128xi1>, vector<8x128xf32>
    %cst_54 = arith.constant dense<0.000000e+00> : vector<128xf32>
    %117 = vector.multi_reduction <add>, %116, %cst_54 [0] : vector<8x128xf32> to vector<128xf32>
    %118 = vector.shape_cast %117 : vector<128xf32> to vector<1x128xf32>
    %cst_55 = arith.constant dense<0.000000e+00> : vector<1xf32>
    %119 = vector.multi_reduction <add>, %118, %cst_55 [1] : vector<1x128xf32> to vector<1xf32>
    %120 = vector.shape_cast %119 : vector<1xf32> to vector<1x1xf32>
    %c0_i32 = arith.constant 0 : i32
    %121 = arith.cmpi eq, %arg0, %c0_i32 : i32
    %122 = arith.extui %121 : i1 to i32
    %c0_i32_56 = arith.constant 0 : i32
    %123 = arith.cmpi ne, %122, %c0_i32_56 : i32
    scf.if %123 {
      %cst_61 = arith.constant 0.000000e+00 : f32
      %127 = vector.broadcast %cst_61 : f32 to vector<1x1xf32>
      %c0_62 = arith.constant 0 : index
      %c0_63 = arith.constant 0 : index
      %128 = vector.load %arg13[%c0_62, %c0_63] : memref<1x1xf32, #tpu.memory_space<vmem>>, vector<1x1xf32>
      tpu.vector_store %arg13[%c0_62, %c0_63], %127 {strides = array<i32>} : memref<1x1xf32, #tpu.memory_space<vmem>>, vector<1x1xf32>,
    } else {
    }
    %c0_57 = arith.constant 0 : index
    %c0_58 = arith.constant 0 : index
    %124 = vector.load %arg13[%c0_57, %c0_58] : memref<1x1xf32, #tpu.memory_space<vmem>>, vector<1x1xf32>
    %125 = arith.addf %124, %120 : vector<1x1xf32>
    %c0_59 = arith.constant 0 : index
    %c0_60 = arith.constant 0 : index
    %126 = vector.load %arg13[%c0_59, %c0_60] : memref<1x1xf32, #tpu.memory_space<vmem>>, vector<1x1xf32>
    tpu.vector_store %arg13[%c0_59, %c0_60], %125 {strides = array<i32>} : memref<1x1xf32, #tpu.memory_space<vmem>>, vector<1x1xf32>,
    return
  }
  func.func @transform_0(%arg0: i32) -> (i32, i32) {
    %c0_i32 = arith.constant 0 : i32
    %c0_i32_0 = arith.constant 0 : i32
    return %arg0, %c0_i32 : i32, i32
  }
  func.func @transform_1(%arg0: i32) -> (i32, i32) {
    %c0_i32 = arith.constant 0 : i32
    %c0_i32_0 = arith.constant 0 : i32
    %c0_i32_1 = arith.constant 0 : i32
    return %c0_i32, %c0_i32_0 : i32, i32
  }
  func.func @transform_2(%arg0: i32) -> (i32, i32) {
    %c0_i32 = arith.constant 0 : i32
    %c0_i32_0 = arith.constant 0 : i32
    %c0_i32_1 = arith.constant 0 : i32
    return %c0_i32, %c0_i32_0 : i32, i32
  }
  func.func @transform_3(%arg0: i32) -> (i32, i32) {
    %c0_i32 = arith.constant 0 : i32
    %c0_i32_0 = arith.constant 0 : i32
    %c0_i32_1 = arith.constant 0 : i32
    return %c0_i32, %c0_i32_0 : i32, i32
  }
  func.func @transform_4(%arg0: i32) -> (i32, i32) {
    %c0_i32 = arith.constant 0 : i32
    %c0_i32_0 = arith.constant 0 : i32
    %c0_i32_1 = arith.constant 0 : i32
    return %c0_i32, %c0_i32_0 : i32, i32
  }
  func.func @transform_5(%arg0: i32) -> (i32, i32) {
    %c0_i32 = arith.constant 0 : i32
    %c0_i32_0 = arith.constant 0 : i32
    %c0_i32_1 = arith.constant 0 : i32
    return %c0_i32, %c0_i32_0 : i32, i32
  }
  func.func @transform_6(%arg0: i32) -> (i32, i32) {
    %c0_i32 = arith.constant 0 : i32
    %c0_i32_0 = arith.constant 0 : i32
    %c0_i32_1 = arith.constant 0 : i32
    return %c0_i32, %c0_i32_0 : i32, i32
  }
  func.func @transform_7(%arg0: i32) -> (i32, i32) {
    %c0_i32 = arith.constant 0 : i32
    %c0_i32_0 = arith.constant 0 : i32
    %c0_i32_1 = arith.constant 0 : i32
    return %c0_i32, %c0_i32_0 : i32, i32
  }
  func.func @transform_8(%arg0: i32) -> (i32, i32) {
    %c0_i32 = arith.constant 0 : i32
    %c0_i32_0 = arith.constant 0 : i32
    %c0_i32_1 = arith.constant 0 : i32
    return %c0_i32, %c0_i32_0 : i32, i32
  }
  func.func @transform_9(%arg0: i32) -> (i32, i32) {
    %c0_i32 = arith.constant 0 : i32
    %c0_i32_0 = arith.constant 0 : i32
    %c0_i32_1 = arith.constant 0 : i32
    return %c0_i32, %c0_i32_0 : i32, i32
  }
  func.func @transform_10(%arg0: i32) -> (i32, i32) {
    %c0_i32 = arith.constant 0 : i32
    %c0_i32_0 = arith.constant 0 : i32
    %c0_i32_1 = arith.constant 0 : i32
    return %c0_i32, %c0_i32_0 : i32, i32
  }
  func.func @transform_11(%arg0: i32) -> (i32, i32) {
    %c0_i32 = arith.constant 0 : i32
    %c0_i32_0 = arith.constant 0 : i32
    %c0_i32_1 = arith.constant 0 : i32
    return %c0_i32, %c0_i32_0 : i32, i32
  }
  func.func @transform_12(%arg0: i32) -> (i32, i32) {
    %c0_i32 = arith.constant 0 : i32
    %c0_i32_0 = arith.constant 0 : i32
    %c0_i32_1 = arith.constant 0 : i32
    return %c0_i32, %c0_i32_0 : i32, i32
  }
}

</mosaic_0001>

<llo_original>
// kernel: image_compressor_forward.17
$region0: #{image_compressor_forward.17}
  #allocation0 [shape = 'u32[]', space=smem, size = 0x4, offset = 0x4, fixed_abs, tag = 'smem constant byte address 0x4 - core index']
  #allocation1 [shape = 'u32[144,128]{1,0:T(1,128)}', space=vmem, size = 0x12000, scoped, tag = 'internal scratch']
  #allocation2 [shape = 'f32[128,128]{1,0:T(8,128)}', space=vmem, size = 0x10000, scoped, tag = 'scratch operand']
  %s0 = inlined_call_operand.vmem [shape: bf16[128,256], index: 0, kind: input, shape index: {}]
  %s1 = inlined_call_operand.vmem [shape: bf16[256,128], index: 1, kind: input, shape index: {}]
  %s2 = inlined_call_operand.vmem [shape: f32[1,128], index: 2, kind: input, shape index: {}]
  %s3 = inlined_call_operand.vmem [shape: f32[128,128], index: 3, kind: input, shape index: {}]
  %s4 = inlined_call_operand.vmem [shape: f32[1,128], index: 4, kind: input, shape index: {}]
  %s5 = inlined_call_operand.vmem [shape: f32[128,128], index: 5, kind: output, shape index: {}]
  %s6 = sld [smem:[#allocation0]]
  $region38: #{image_compressor_forward.17} parent=0
    _
  %s8 = ssub.s32 1, %s6
  %s9 = scalar_select 0, %s8, %s6
  // Predicated region
  $region2: #{image_compressor_forward.17} parent=0 // pred_check
    _
  $region3: #{image_compressor_forward.17} parent=0 // pred_check_branch
    %11 = sbr.rel (0) target = $region5
  $region4: #{image_compressor_forward.17} parent=0 // pred_region
    _
  $region5: #{image_compressor_forward.17} parent=0 // pred_fallthru
    _
  // Predicated region
  $region6: #{image_compressor_forward.17} parent=0 // pred_check
    _
  $region7: #{image_compressor_forward.17} parent=0 // pred_check_branch
    %13 = sbr.rel (0) target = $region9
  $region8: #{image_compressor_forward.17} parent=0 // pred_region
    _
  $region9: #{image_compressor_forward.17} parent=0 // pred_fallthru
    _
  // Predicated region
  $region10: #{image_compressor_forward.17} parent=0 // pred_check
    _
  $region11: #{image_compressor_forward.17} parent=0 // pred_check_branch
    %15 = sbr.rel (0) target = $region13
  $region12: #{image_compressor_forward.17} parent=0 // pred_region
    _
  $region13: #{image_compressor_forward.17} parent=0 // pred_fallthru
    _
  // Predicated region
  $region14: #{image_compressor_forward.17} parent=0 // pred_check
    _
  $region15: #{image_compressor_forward.17} parent=0 // pred_check_branch
    %17 = sbr.rel (0) target = $region17
  $region16: #{image_compressor_forward.17} parent=0 // pred_region
    _
  $region17: #{image_compressor_forward.17} parent=0 // pred_fallthru
    _
  // Predicated region
  $region18: #{image_compressor_forward.17} parent=0 // pred_check
    _
  $region19: #{image_compressor_forward.17} parent=0 // pred_check_branch
    %19 = sbr.rel (0) target = $region21
  $region20: #{image_compressor_forward.17} parent=0 // pred_region
    _
  $region21: #{image_compressor_forward.17} parent=0 // pred_fallthru
    _
  %p21 = scmp.eq.s32.totalorder 0, 0
  // Predicated region
  $region22: #{image_compressor_forward.17} parent=0 // pred_check
    %p22 = pneg %p21
  $region23: #{image_compressor_forward.17} parent=0 // pred_check_branch
    %24 = sbr.rel (%p22) target = $region25
  $region24: #{image_compressor_forward.17} parent=0 // pred_region
    %25 = vst [vmem:[#allocation2] sm:$0xff] 0.0
    %26 = vst [vmem:[#allocation2 + $0x8] sm:$0xff] 0.0
    %27 = vst [vmem:[#allocation2 + $0x10] sm:$0xff] 0.0
    %28 = vst [vmem:[#allocation2 + $0x18] sm:$0xff] 0.0
    %29 = vst [vmem:[#allocation2 + $0x20] sm:$0xff] 0.0
    %30 = vst [vmem:[#allocation2 + $0x28] sm:$0xff] 0.0
    %31 = vst [vmem:[#allocation2 + $0x30] sm:$0xff] 0.0
    %32 = vst [vmem:[#allocation2 + $0x38] sm:$0xff] 0.0
    %33 = vst [vmem:[#allocation2 + $0x40] sm:$0xff] 0.0
    %34 = vst [vmem:[#allocation2 + $0x48] sm:$0xff] 0.0
    %35 = vst [vmem:[#allocation2 + $0x50] sm:$0xff] 0.0
    %36 = vst [vmem:[#allocation2 + $0x58] sm:$0xff] 0.0
    %37 = vst [vmem:[#allocation2 + $0x60] sm:$0xff] 0.0
    %38 = vst [vmem:[#allocation2 + $0x68] sm:$0xff] 0.0
    %39 = vst [vmem:[#allocation2 + $0x70] sm:$0xff] 0.0
    %40 = vst [vmem:[#allocation2 + $0x78] sm:$0xff] 0.0
  $region25: #{image_compressor_forward.17} parent=0 // pred_fallthru
    _
  %v41 = vld [vmem:[#allocation2] sm:$0xff]
  %v42 = vld [vmem:[#allocation2 + $0x8] sm:$0xff]
  %v43 = vld [vmem:[#allocation2 + $0x10] sm:$0xff]
  %v44 = vld [vmem:[#allocation2 + $0x18] sm:$0xff]
  %v45 = vld [vmem:[#allocation2 + $0x20] sm:$0xff]
  %v46 = vld [vmem:[#allocation2 + $0x28] sm:$0xff]
  %v47 = vld [vmem:[#allocation2 + $0x30] sm:$0xff]
  %v48 = vld [vmem:[#allocation2 + $0x38] sm:$0xff]
  %v49 = vld [vmem:[#allocation2 + $0x40] sm:$0xff]
  %v50 = vld [vmem:[#allocation2 + $0x48] sm:$0xff]
  %v51 = vld [vmem:[#allocation2 + $0x50] sm:$0xff]
  %v52 = vld [vmem:[#allocation2 + $0x58] sm:$0xff]
  %v53 = vld [vmem:[#allocation2 + $0x60] sm:$0xff]
  %v54 = vld [vmem:[#allocation2 + $0x68] sm:$0xff]
  %v55 = vld [vmem:[#allocation2 + $0x70] sm:$0xff]
  %v56 = vld [vmem:[#allocation2 + $0x78] sm:$0xff]
  %v57 = vld [vmem:[%s0] sm:$0xff]
  %v58 = vld [vmem:[%s0 + $0x8] sm:$0xff]
  %v59 = vld [vmem:[%s0 + $0x10] sm:$0xff]
  %v60 = vld [vmem:[%s0 + $0x18] sm:$0xff]
  %v61 = vld [vmem:[%s0 + $0x20] sm:$0xff]
  %v62 = vld [vmem:[%s0 + $0x28] sm:$0xff]
  %v63 = vld [vmem:[%s0 + $0x30] sm:$0xff]
  %v64 = vld [vmem:[%s0 + $0x38] sm:$0xff]
  %v65 = vld [vmem:[%s0 + $0x40] sm:$0xff]
  %v66 = vld [vmem:[%s0 + $0x48] sm:$0xff]
  %v67 = vld [vmem:[%s0 + $0x50] sm:$0xff]
  %v68 = vld [vmem:[%s0 + $0x58] sm:$0xff]
  %v69 = vld [vmem:[%s0 + $0x60] sm:$0xff]
  %v70 = vld [vmem:[%s0 + $0x68] sm:$0xff]
  %v71 = vld [vmem:[%s0 + $0x70] sm:$0xff]
  %v72 = vld [vmem:[%s0 + $0x78] sm:$0xff]
  %v73 = vld [vmem:[%s1] sm:$0xf]
  %v74 = vld [vmem:[%s1 + $0x4] sm:$0xf]
  %v75 = vld [vmem:[%s1 + $0x8] sm:$0xf]
  %v76 = vld [vmem:[%s1 + $0xc] sm:$0xf]
  %v77 = vld [vmem:[%s1 + $0x10] sm:$0xf]
  %v78 = vld [vmem:[%s1 + $0x14] sm:$0xf]
  %v79 = vld [vmem:[%s1 + $0x18] sm:$0xf]
  %v80 = vld [vmem:[%s1 + $0x1c] sm:$0xf]
  %v81 = vld [vmem:[%s1 + $0x20] sm:$0xf]
  %v82 = vld [vmem:[%s1 + $0x24] sm:$0xf]
  %v83 = vld [vmem:[%s1 + $0x28] sm:$0xf]
  %v84 = vld [vmem:[%s1 + $0x2c] sm:$0xf]
  %v85 = vld [vmem:[%s1 + $0x30] sm:$0xf]
  %v86 = vld [vmem:[%s1 + $0x34] sm:$0xf]
  %v87 = vld [vmem:[%s1 + $0x38] sm:$0xf]
  %v88 = vld [vmem:[%s1 + $0x3c] sm:$0xf]
  %v89 = vld [vmem:[%s1 + $0x40] sm:$0xf]
  %v90 = vld [vmem:[%s1 + $0x44] sm:$0xf]
  %v91 = vld [vmem:[%s1 + $0x48] sm:$0xf]
  %v92 = vld [vmem:[%s1 + $0x4c] sm:$0xf]
  %v93 = vld [vmem:[%s1 + $0x50] sm:$0xf]
  %v94 = vld [vmem:[%s1 + $0x54] sm:$0xf]
  %v95 = vld [vmem:[%s1 + $0x58] sm:$0xf]
  %v96 = vld [vmem:[%s1 + $0x5c] sm:$0xf]
  %v97 = vld [vmem:[%s1 + $0x60] sm:$0xf]
  %v98 = vld [vmem:[%s1 + $0x64] sm:$0xf]
  %v99 = vld [vmem:[%s1 + $0x68] sm:$0xf]
  %v100 = vld [vmem:[%s1 + $0x6c] sm:$0xf]
  %v101 = vld [vmem:[%s1 + $0x70] sm:$0xf]
  %v102 = vld [vmem:[%s1 + $0x74] sm:$0xf]
  %v103 = vld [vmem:[%s1 + $0x78] sm:$0xf]
  %v104 = vld [vmem:[%s1 + $0x7c] sm:$0xf]
  %v121 = vunpack.c.l.b16 %v57
  %v122 = vunpack.c.h.b16 %v57
  %v123 = vunpack.c.l.b16 %v58
  %v124 = vunpack.c.h.b16 %v58
  %v125 = vunpack.c.l.b16 %v59
  %v126 = vunpack.c.h.b16 %v59
  %v127 = vunpack.c.l.b16 %v60
  %v128 = vunpack.c.h.b16 %v60
  %v129 = vunpack.c.l.b16 %v61
  %v130 = vunpack.c.h.b16 %v61
  %v131 = vunpack.c.l.b16 %v62
  %v132 = vunpack.c.h.b16 %v62
  %v133 = vunpack.c.l.b16 %v63
  %v134 = vunpack.c.h.b16 %v63
  %v135 = vunpack.c.l.b16 %v64
  %v136 = vunpack.c.h.b16 %v64
  %v137 = vunpack.c.l.b16 %v65
  %v138 = vunpack.c.h.b16 %v65
  %v139 = vunpack.c.l.b16 %v66
  %v140 = vunpack.c.h.b16 %v66
  %v141 = vunpack.c.l.b16 %v67
  %v142 = vunpack.c.h.b16 %v67
  %v143 = vunpack.c.l.b16 %v68
  %v144 = vunpack.c.h.b16 %v68
  %v145 = vunpack.c.l.b16 %v69
  %v146 = vunpack.c.h.b16 %v69
  %v147 = vunpack.c.l.b16 %v70
  %v148 = vunpack.c.h.b16 %v70
  %v149 = vunpack.c.l.b16 %v71
  %v150 = vunpack.c.h.b16 %v71
  %v151 = vunpack.c.l.b16 %v72
  %v152 = vunpack.c.h.b16 %v72
  %v153 = vpack.c.b16 %v123, %v121
  %v154 = vpack.c.b16 %v124, %v122
  %v155 = vpack.c.b16 %v127, %v125
  %v156 = vpack.c.b16 %v128, %v126
  %v157 = vpack.c.b16 %v131, %v129
  %v158 = vpack.c.b16 %v132, %v130
  %v159 = vpack.c.b16 %v135, %v133
  %v160 = vpack.c.b16 %v136, %v134
  %v161 = vpack.c.b16 %v139, %v137
  %v162 = vpack.c.b16 %v140, %v138
  %v163 = vpack.c.b16 %v143, %v141
  %v164 = vpack.c.b16 %v144, %v142
  %v165 = vpack.c.b16 %v147, %v145
  %v166 = vpack.c.b16 %v148, %v146
  %v167 = vpack.c.b16 %v151, %v149
  %v168 = vpack.c.b16 %v152, %v150
  %v217 = vunpack.c.l.b16 %v73
  %v218 = vunpack.c.l.b16 %v74
  %v219 = vunpack.c.l.b16 %v75
  %v220 = vunpack.c.l.b16 %v76
  %v221 = vunpack.c.l.b16 %v77
  %v222 = vunpack.c.l.b16 %v78
  %v223 = vunpack.c.l.b16 %v79
  %v224 = vunpack.c.l.b16 %v80
  %v225 = vunpack.c.l.b16 %v81
  %v226 = vunpack.c.l.b16 %v82
  %v227 = vunpack.c.l.b16 %v83
  %v228 = vunpack.c.l.b16 %v84
  %v229 = vunpack.c.l.b16 %v85
  %v230 = vunpack.c.l.b16 %v86
  %v231 = vunpack.c.l.b16 %v87
  %v232 = vunpack.c.l.b16 %v88
  %v233 = vunpack.c.l.b16 %v89
  %v234 = vunpack.c.l.b16 %v90
  %v235 = vunpack.c.l.b16 %v91
  %v236 = vunpack.c.l.b16 %v92
  %v237 = vunpack.c.l.b16 %v93
  %v238 = vunpack.c.l.b16 %v94
  %v239 = vunpack.c.l.b16 %v95
  %v240 = vunpack.c.l.b16 %v96
  %v241 = vunpack.c.l.b16 %v97
  %v242 = vunpack.c.l.b16 %v98
  %v243 = vunpack.c.l.b16 %v99
  %v244 = vunpack.c.l.b16 %v100
  %v245 = vunpack.c.l.b16 %v101
  %v246 = vunpack.c.l.b16 %v102
  %v247 = vunpack.c.l.b16 %v103
  %v248 = vunpack.c.l.b16 %v104
  %v249 = vpack.c.b16 %v218, %v217
  %v250 = vpack.c.b16 %v220, %v219
  %v251 = vpack.c.b16 %v222, %v221
  %v252 = vpack.c.b16 %v224, %v223
  %v253 = vpack.c.b16 %v226, %v225
  %v254 = vpack.c.b16 %v228, %v227
  %v255 = vpack.c.b16 %v230, %v229
  %v256 = vpack.c.b16 %v232, %v231
  %v257 = vpack.c.b16 %v234, %v233
  %v258 = vpack.c.b16 %v236, %v235
  %v259 = vpack.c.b16 %v238, %v237
  %v260 = vpack.c.b16 %v240, %v239
  %v261 = vpack.c.b16 %v242, %v241
  %v262 = vpack.c.b16 %v244, %v243
  %v263 = vpack.c.b16 %v246, %v245
  %v264 = vpack.c.b16 %v248, %v247
  %281 = vmatprep.subr.bf16.mxu0 0
  %282 = vmatpush1.bf16.msra.mxu0 %v249
  %283 = vmatprep.subr.bf16.mxu0 0
  %284 = vmatpush1.bf16.msra.mxu0 %v250
  %285 = vmatprep.subr.bf16.mxu0 0
  %286 = vmatpush1.bf16.msra.mxu0 %v251
  %287 = vmatprep.subr.bf16.mxu0 0
  %288 = vmatpush1.bf16.msra.mxu0 %v252
  %289 = vmatprep.subr.bf16.mxu0 0
  %290 = vmatpush1.bf16.msra.mxu0 %v253
  %291 = vmatprep.subr.bf16.mxu0 0
  %292 = vmatpush1.bf16.msra.mxu0 %v254
  %293 = vmatprep.subr.bf16.mxu0 0
  %294 = vmatpush1.bf16.msra.mxu0 %v255
  %295 = vmatprep.subr.bf16.mxu0 0
  %296 = vmatpush1.bf16.msra.mxu0 %v256
  %297 = vmatprep.subr.bf16.mxu0 0
  %298 = vmatpush1.bf16.msra.mxu0 %v257
  %299 = vmatprep.subr.bf16.mxu0 0
  %300 = vmatpush1.bf16.msra.mxu0 %v258
  %301 = vmatprep.subr.bf16.mxu0 0
  %302 = vmatpush1.bf16.msra.mxu0 %v259
  %303 = vmatprep.subr.bf16.mxu0 0
  %304 = vmatpush1.bf16.msra.mxu0 %v260
  %305 = vmatprep.subr.bf16.mxu0 0
  %306 = vmatpush1.bf16.msra.mxu0 %v261
  %307 = vmatprep.subr.bf16.mxu0 0
  %308 = vmatpush1.bf16.msra.mxu0 %v262
  %309 = vmatprep.subr.bf16.mxu0 0
  %310 = vmatpush1.bf16.msra.mxu0 %v263
  %311 = vmatprep.subr.bf16.mxu0 0
  %312 = vmatpush1.bf16.msra.mxu0 %v264
  %313 = vmatprep.mubr.bf16.mxu0 %v154
  %314 = vmatmul.mubr.bf16.gmra.mrb[0].mxu0 %v153
  %v315 = vpop.f32.mrb[0].mxu0
  %v316 = vadd.f32 0.0, %v315
  %v317 = vpop.f32.mrb[0].mxu0
  %v318 = vpop.f32.mrb[0].mxu0
  %v319 = vadd.f32 0.0, %v318
  %v320 = vpop.f32.mrb[0].mxu0
  %321 = vmatprep.mubr.bf16.mxu0 %v156
  %322 = vmatmul.mubr.bf16.gmra.mrb[0].mxu0 %v155
  %v323 = vpop.f32.mrb[0].mxu0
  %v324 = vadd.f32 0.0, %v323
  %v325 = vpop.f32.mrb[0].mxu0
  %v326 = vpop.f32.mrb[0].mxu0
  %v327 = vadd.f32 0.0, %v326
  %v328 = vpop.f32.mrb[0].mxu0
  %329 = vmatprep.mubr.bf16.mxu0 %v158
  %330 = vmatmul.mubr.bf16.gmra.mrb[0].mxu0 %v157
  %v331 = vpop.f32.mrb[0].mxu0
  %v332 = vadd.f32 0.0, %v331
  %v333 = vpop.f32.mrb[0].mxu0
  %v334 = vpop.f32.mrb[0].mxu0
  %v335 = vadd.f32 0.0, %v334
  %v336 = vpop.f32.mrb[0].mxu0
  %337 = vmatprep.mubr.bf16.mxu0 %v160
  %338 = vmatmul.mubr.bf16.gmra.mrb[0].mxu0 %v159
  %v339 = vpop.f32.mrb[0].mxu0
  %v340 = vadd.f32 0.0, %v339
  %v341 = vpop.f32.mrb[0].mxu0
  %v342 = vpop.f32.mrb[0].mxu0
  %v343 = vadd.f32 0.0, %v342
  %v344 = vpop.f32.mrb[0].mxu0
  %345 = vmatprep.mubr.bf16.mxu0 %v162
  %346 = vmatmul.mubr.bf16.gmra.mrb[0].mxu0 %v161
  %v347 = vpop.f32.mrb[0].mxu0
  %v348 = vadd.f32 0.0, %v347
  %v349 = vpop.f32.mrb[0].mxu0
  %v350 = vpop.f32.mrb[0].mxu0
  %v351 = vadd.f32 0.0, %v350
  %v352 = vpop.f32.mrb[0].mxu0
  %353 = vmatprep.mubr.bf16.mxu0 %v164
  %354 = vmatmul.mubr.bf16.gmra.mrb[0].mxu0 %v163
  %v355 = vpop.f32.mrb[0].mxu0
  %v356 = vadd.f32 0.0, %v355
  %v357 = vpop.f32.mrb[0].mxu0
  %v358 = vpop.f32.mrb[0].mxu0
  %v359 = vadd.f32 0.0, %v358
  %v360 = vpop.f32.mrb[0].mxu0
  %361 = vmatprep.mubr.bf16.mxu0 %v166
  %362 = vmatmul.mubr.bf16.gmra.mrb[0].mxu0 %v165
  %v363 = vpop.f32.mrb[0].mxu0
  %v364 = vadd.f32 0.0, %v363
  %v365 = vpop.f32.mrb[0].mxu0
  %v366 = vpop.f32.mrb[0].mxu0
  %v367 = vadd.f32 0.0, %v366
  %v368 = vpop.f32.mrb[0].mxu0
  %369 = vmatprep.mubr.bf16.mxu0 %v168
  %370 = vmatmul.mubr.bf16.gmra.mrb[0].mxu0 %v167
  %v371 = vpop.f32.mrb[0].mxu0
  %v372 = vadd.f32 0.0, %v371
  %v373 = vpop.f32.mrb[0].mxu0
  %v374 = vpop.f32.mrb[0].mxu0
  %v375 = vadd.f32 0.0, %v374
  %v376 = vpop.f32.mrb[0].mxu0
  %377 = vdwg.mxu0
  %v378 = vadd.f32 %v41, %v316
  %v379 = vadd.f32 %v42, %v319
  %v380 = vadd.f32 %v43, %v324
  %v381 = vadd.f32 %v44, %v327
  %v382 = vadd.f32 %v45, %v332
  %v383 = vadd.f32 %v46, %v335
  %v384 = vadd.f32 %v47, %v340
  %v385 = vadd.f32 %v48, %v343
  %v386 = vadd.f32 %v49, %v348
  %v387 = vadd.f32 %v50, %v351
  %v388 = vadd.f32 %v51, %v356
  %v389 = vadd.f32 %v52, %v359
  %v390 = vadd.f32 %v53, %v364
  %v391 = vadd.f32 %v54, %v367
  %v392 = vadd.f32 %v55, %v372
  %v393 = vadd.f32 %v56, %v375
  %394 = vst [vmem:[#allocation2] sm:$0xff] %v378
  %395 = vst [vmem:[#allocation2 + $0x8] sm:$0xff] %v379
  %396 = vst [vmem:[#allocation2 + $0x10] sm:$0xff] %v380
  %397 = vst [vmem:[#allocation2 + $0x18] sm:$0xff] %v381
  %398 = vst [vmem:[#allocation2 + $0x20] sm:$0xff] %v382
  %399 = vst [vmem:[#allocation2 + $0x28] sm:$0xff] %v383
  %400 = vst [vmem:[#allocation2 + $0x30] sm:$0xff] %v384
  %401 = vst [vmem:[#allocation2 + $0x38] sm:$0xff] %v385
  %402 = vst [vmem:[#allocation2 + $0x40] sm:$0xff] %v386
  %403 = vst [vmem:[#allocation2 + $0x48] sm:$0xff] %v387
  %404 = vst [vmem:[#allocation2 + $0x50] sm:$0xff] %v388
  %405 = vst [vmem:[#allocation2 + $0x58] sm:$0xff] %v389
  %406 = vst [vmem:[#allocation2 + $0x60] sm:$0xff] %v390
  %407 = vst [vmem:[#allocation2 + $0x68] sm:$0xff] %v391
  %408 = vst [vmem:[#allocation2 + $0x70] sm:$0xff] %v392
  %409 = vst [vmem:[#allocation2 + $0x78] sm:$0xff] %v393
  // Predicated region
  $region26: #{image_compressor_forward.17} parent=0 // pred_check
    %p410 = pneg %p21
  $region27: #{image_compressor_forward.17} parent=0 // pred_check_branch
    %412 = sbr.rel (%p410) target = $region29
  $region28: #{image_compressor_forward.17} parent=0 // pred_region
    %v413 = vld [vmem:[#allocation2] sm:$0xff]
    %v414 = vld [vmem:[#allocation2 + $0x8] sm:$0xff]
    %v415 = vld [vmem:[#allocation2 + $0x10] sm:$0xff]
    %v416 = vld [vmem:[#allocation2 + $0x18] sm:$0xff]
    %v417 = vld [vmem:[#allocation2 + $0x20] sm:$0xff]
    %v418 = vld [vmem:[#allocation2 + $0x28] sm:$0xff]
    %v419 = vld [vmem:[#allocation2 + $0x30] sm:$0xff]
    %v420 = vld [vmem:[#allocation2 + $0x38] sm:$0xff]
    %v421 = vld [vmem:[#allocation2 + $0x40] sm:$0xff]
    %v422 = vld [vmem:[#allocation2 + $0x48] sm:$0xff]
    %v423 = vld [vmem:[#allocation2 + $0x50] sm:$0xff]
    %v424 = vld [vmem:[#allocation2 + $0x58] sm:$0xff]
    %v425 = vld [vmem:[#allocation2 + $0x60] sm:$0xff]
    %v426 = vld [vmem:[#allocation2 + $0x68] sm:$0xff]
    %v427 = vld [vmem:[#allocation2 + $0x70] sm:$0xff]
    %v428 = vld [vmem:[#allocation2 + $0x78] sm:$0xff]
    %v429 = vld [vmem:[%s2] sm:$0x1]
    %v431 = vlaneseq
    %v432 = vshrl.u32 %v431, 7
    %v433 = vsub.s32 0, %v432
    %v434 = vrot.slane %v429, %v433
    %v436 = vadd.f32 %v413, %v434
    %v437 = vadd.f32 %v414, %v434
    %v438 = vadd.f32 %v415, %v434
    %v439 = vadd.f32 %v416, %v434
    %v440 = vadd.f32 %v417, %v434
    %v441 = vadd.f32 %v418, %v434
    %v442 = vadd.f32 %v419, %v434
    %v443 = vadd.f32 %v420, %v434
    %v444 = vadd.f32 %v421, %v434
    %v445 = vadd.f32 %v422, %v434
    %v446 = vadd.f32 %v423, %v434
    %v447 = vadd.f32 %v424, %v434
    %v448 = vadd.f32 %v425, %v434
    %v449 = vadd.f32 %v426, %v434
    %v450 = vadd.f32 %v427, %v434
    %v451 = vadd.f32 %v428, %v434
    %v452 = vmul.f32 %v436, %v436
    %v453 = vmul.f32 %v437, %v437
    %v454 = vmul.f32 %v438, %v438
    %v455 = vmul.f32 %v439, %v439
    %v456 = vmul.f32 %v440, %v440
    %v457 = vmul.f32 %v441, %v441
    %v458 = vmul.f32 %v442, %v442
    %v459 = vmul.f32 %v443, %v443
    %v460 = vmul.f32 %v444, %v444
    %v461 = vmul.f32 %v445, %v445
    %v462 = vmul.f32 %v446, %v446
    %v463 = vmul.f32 %v447, %v447
    %v464 = vmul.f32 %v448, %v448
    %v465 = vmul.f32 %v449, %v449
    %v466 = vmul.f32 %v450, %v450
    %v467 = vmul.f32 %v451, %v451
    %v468 = vld [vmem:[%s3] sm:$0xff]
    %v469 = vld [vmem:[%s3 + $0x8] sm:$0xff]
    %v470 = vld [vmem:[%s3 + $0x10] sm:$0xff]
    %v471 = vld [vmem:[%s3 + $0x18] sm:$0xff]
    %v472 = vld [vmem:[%s3 + $0x20] sm:$0xff]
    %v473 = vld [vmem:[%s3 + $0x28] sm:$0xff]
    %v474 = vld [vmem:[%s3 + $0x30] sm:$0xff]
    %v475 = vld [vmem:[%s3 + $0x38] sm:$0xff]
    %v476 = vld [vmem:[%s3 + $0x40] sm:$0xff]
    %v477 = vld [vmem:[%s3 + $0x48] sm:$0xff]
    %v478 = vld [vmem:[%s3 + $0x50] sm:$0xff]
    %v479 = vld [vmem:[%s3 + $0x58] sm:$0xff]
    %v480 = vld [vmem:[%s3 + $0x60] sm:$0xff]
    %v481 = vld [vmem:[%s3 + $0x68] sm:$0xff]
    %v482 = vld [vmem:[%s3 + $0x70] sm:$0xff]
    %v483 = vld [vmem:[%s3 + $0x78] sm:$0xff]
    %v484 = vld [vmem:[%s4] sm:$0x1]
    %v486 = vlaneseq
    %v487 = vshrl.u32 %v486, 7
    %v488 = vsub.s32 0, %v487
    %v489 = vrot.slane %v484, %v488
    %491 = vmatprep.subr.mxu0 0.0
    %492 = vmatpush1.msra.mxu0 %v468
    %493 = vmatprep.subr.mxu0 0.0
    %494 = vmatpush1.msra.mxu0 %v469
    %495 = vmatprep.subr.mxu0 0.0
    %496 = vmatpush1.msra.mxu0 %v470
    %497 = vmatprep.subr.mxu0 0.0
    %498 = vmatpush1.msra.mxu0 %v471
    %499 = vmatprep.subr.mxu0 0.0
    %500 = vmatpush1.msra.mxu0 %v472
    %501 = vmatprep.subr.mxu0 0.0
    %502 = vmatpush1.msra.mxu0 %v473
    %503 = vmatprep.subr.mxu0 0.0
    %504 = vmatpush1.msra.mxu0 %v474
    %505 = vmatprep.subr.mxu0 0.0
    %506 = vmatpush1.msra.mxu0 %v475
    %507 = vmatprep.subr.mxu0 0.0
    %508 = vmatpush1.msra.mxu0 %v476
    %509 = vmatprep.subr.mxu0 0.0
    %510 = vmatpush1.msra.mxu0 %v477
    %511 = vmatprep.subr.mxu0 0.0
    %512 = vmatpush1.msra.mxu0 %v478
    %513 = vmatprep.subr.mxu0 0.0
    %514 = vmatpush1.msra.mxu0 %v479
    %515 = vmatprep.subr.mxu0 0.0
    %516 = vmatpush1.msra.mxu0 %v480
    %517 = vmatprep.subr.mxu0 0.0
    %518 = vmatpush1.msra.mxu0 %v481
    %519 = vmatprep.subr.mxu0 0.0
    %520 = vmatpush1.msra.mxu0 %v482
    %521 = vmatprep.subr.mxu0 0.0
    %522 = vmatpush1.msra.mxu0 %v483
    %523 = vmatprep.subr.mxu0 0.0
    %524 = vmatpush1.msra.mxu0 0.0
    %525 = vmatprep.subr.mxu0 0.0
    %526 = vmatpush1.msra.mxu0 0.0
    %527 = vmatprep.subr.mxu0 0.0
    %528 = vmatpush1.msra.mxu0 0.0
    %529 = vmatprep.subr.mxu0 0.0
    %530 = vmatpush1.msra.mxu0 0.0
    %531 = vmatprep.subr.mxu0 0.0
    %532 = vmatpush1.msra.mxu0 0.0
    %533 = vmatprep.subr.mxu0 0.0
    %534 = vmatpush1.msra.mxu0 0.0
    %535 = vmatprep.subr.mxu0 0.0
    %536 = vmatpush1.msra.mxu0 0.0
    %537 = vmatprep.subr.mxu0 0.0
    %538 = vmatpush1.msra.mxu0 0.0
    %539 = vmatprep.subr.mxu0 0.0
    %540 = vmatpush1.msra.mxu0 0.0
    %541 = vmatprep.subr.mxu0 0.0
    %542 = vmatpush1.msra.mxu0 0.0
    %543 = vmatprep.subr.mxu0 0.0
    %544 = vmatpush1.msra.mxu0 0.0
    %545 = vmatprep.subr.mxu0 0.0
    %546 = vmatpush1.msra.mxu0 0.0
    %547 = vmatprep.subr.mxu0 0.0
    %548 = vmatpush1.msra.mxu0 0.0
    %549 = vmatprep.subr.mxu0 0.0
    %550 = vmatpush1.msra.mxu0 0.0
    %551 = vmatprep.subr.mxu0 0.0
    %552 = vmatpush1.msra.mxu0 0.0
    %553 = vmatprep.subr.mxu0 0.0
    %554 = vmatpush1.msra.mxu0 0.0
    %555 = vmatprep.mubr.f32.mxu0 0.0
    %556 = vmatmul.mubr.f32.gmra.mrb[0].mxu0 %v452
    %v557 = vpop.f32.mrb[0].mxu0
    %v558 = vadd.f32 %v489, %v557
    %v559 = vpop.f32.mrb[0].mxu0
    %560 = vmatprep.mubr.f32.mxu0 0.0
    %561 = vmatmul.mubr.f32.gmra.mrb[0].mxu0 %v453
    %v562 = vpop.f32.mrb[0].mxu0
    %v563 = vadd.f32 %v489, %v562
    %v564 = vpop.f32.mrb[0].mxu0
    %565 = vmatprep.mubr.f32.mxu0 0.0
    %566 = vmatmul.mubr.f32.gmra.mrb[0].mxu0 %v454
    %v567 = vpop.f32.mrb[0].mxu0
    %v568 = vadd.f32 %v489, %v567
    %v569 = vpop.f32.mrb[0].mxu0
    %570 = vmatprep.mubr.f32.mxu0 0.0
    %571 = vmatmul.mubr.f32.gmra.mrb[0].mxu0 %v455
    %v572 = vpop.f32.mrb[0].mxu0
    %v573 = vadd.f32 %v489, %v572
    %v574 = vpop.f32.mrb[0].mxu0
    %575 = vmatprep.mubr.f32.mxu0 0.0
    %576 = vmatmul.mubr.f32.gmra.mrb[0].mxu0 %v456
    %v577 = vpop.f32.mrb[0].mxu0
    %v578 = vadd.f32 %v489, %v577
    %v579 = vpop.f32.mrb[0].mxu0
    %580 = vmatprep.mubr.f32.mxu0 0.0
    %581 = vmatmul.mubr.f32.gmra.mrb[0].mxu0 %v457
    %v582 = vpop.f32.mrb[0].mxu0
    %v583 = vadd.f32 %v489, %v582
    %v584 = vpop.f32.mrb[0].mxu0
    %585 = vmatprep.mubr.f32.mxu0 0.0
    %586 = vmatmul.mubr.f32.gmra.mrb[0].mxu0 %v458
    %v587 = vpop.f32.mrb[0].mxu0
    %v588 = vadd.f32 %v489, %v587
    %v589 = vpop.f32.mrb[0].mxu0
    %590 = vmatprep.mubr.f32.mxu0 0.0
    %591 = vmatmul.mubr.f32.gmra.mrb[0].mxu0 %v459
    %v592 = vpop.f32.mrb[0].mxu0
    %v593 = vadd.f32 %v489, %v592
    %v594 = vpop.f32.mrb[0].mxu0
    %595 = vmatprep.mubr.f32.mxu0 0.0
    %596 = vmatmul.mubr.f32.gmra.mrb[0].mxu0 %v460
    %v597 = vpop.f32.mrb[0].mxu0
    %v598 = vadd.f32 %v489, %v597
    %v599 = vpop.f32.mrb[0].mxu0
    %600 = vmatprep.mubr.f32.mxu0 0.0
    %601 = vmatmul.mubr.f32.gmra.mrb[0].mxu0 %v461
    %v602 = vpop.f32.mrb[0].mxu0
    %v603 = vadd.f32 %v489, %v602
    %v604 = vpop.f32.mrb[0].mxu0
    %605 = vmatprep.mubr.f32.mxu0 0.0
    %606 = vmatmul.mubr.f32.gmra.mrb[0].mxu0 %v462
    %v607 = vpop.f32.mrb[0].mxu0
    %v608 = vadd.f32 %v489, %v607
    %v609 = vpop.f32.mrb[0].mxu0
    %610 = vmatprep.mubr.f32.mxu0 0.0
    %611 = vmatmul.mubr.f32.gmra.mrb[0].mxu0 %v463
    %v612 = vpop.f32.mrb[0].mxu0
    %v613 = vadd.f32 %v489, %v612
    %v614 = vpop.f32.mrb[0].mxu0
    %615 = vmatprep.mubr.f32.mxu0 0.0
    %616 = vmatmul.mubr.f32.gmra.mrb[0].mxu0 %v464
    %v617 = vpop.f32.mrb[0].mxu0
    %v618 = vadd.f32 %v489, %v617
    %v619 = vpop.f32.mrb[0].mxu0
    %620 = vmatprep.mubr.f32.mxu0 0.0
    %621 = vmatmul.mubr.f32.gmra.mrb[0].mxu0 %v465
    %v622 = vpop.f32.mrb[0].mxu0
    %v623 = vadd.f32 %v489, %v622
    %v624 = vpop.f32.mrb[0].mxu0
    %625 = vmatprep.mubr.f32.mxu0 0.0
    %626 = vmatmul.mubr.f32.gmra.mrb[0].mxu0 %v466
    %v627 = vpop.f32.mrb[0].mxu0
    %v628 = vadd.f32 %v489, %v627
    %v629 = vpop.f32.mrb[0].mxu0
    %630 = vmatprep.mubr.f32.mxu0 0.0
    %631 = vmatmul.mubr.f32.gmra.mrb[0].mxu0 %v467
    %v632 = vpop.f32.mrb[0].mxu0
    %v633 = vadd.f32 %v489, %v632
    %v634 = vpop.f32.mrb[0].mxu0
    %635 = vdwg.mxu0
    %v636 = vrsqrt.pop %v558
    %v637 = vrsqrt.pop %v563
    %v638 = vrsqrt.pop %v568
    %v639 = vrsqrt.pop %v573
    %v640 = vrsqrt.pop %v578
    %v641 = vrsqrt.pop %v583
    %v642 = vrsqrt.pop %v588
    %v643 = vrsqrt.pop %v593
    %v644 = vrsqrt.pop %v598
    %v645 = vrsqrt.pop %v603
    %v646 = vrsqrt.pop %v608
    %v647 = vrsqrt.pop %v613
    %v648 = vrsqrt.pop %v618
    %v649 = vrsqrt.pop %v623
    %v650 = vrsqrt.pop %v628
    %v651 = vrsqrt.pop %v633
    %v652 = vmul.f32 %v436, %v636
    %v653 = vmul.f32 %v437, %v637
    %v654 = vmul.f32 %v438, %v638
    %v655 = vmul.f32 %v439, %v639
    %v656 = vmul.f32 %v440, %v640
    %v657 = vmul.f32 %v441, %v641
    %v658 = vmul.f32 %v442, %v642
    %v659 = vmul.f32 %v443, %v643
    %v660 = vmul.f32 %v444, %v644
    %v661 = vmul.f32 %v445, %v645
    %v662 = vmul.f32 %v446, %v646
    %v663 = vmul.f32 %v447, %v647
    %v664 = vmul.f32 %v448, %v648
    %v665 = vmul.f32 %v449, %v649
    %v666 = vmul.f32 %v450, %v650
    %v667 = vmul.f32 %v451, %v651
    %668 = vst [vmem:[%s5] sm:$0xff] %v652
    %669 = vst [vmem:[%s5 + $0x8] sm:$0xff] %v653
    %670 = vst [vmem:[%s5 + $0x10] sm:$0xff] %v654
    %671 = vst [vmem:[%s5 + $0x18] sm:$0xff] %v655
    %672 = vst [vmem:[%s5 + $0x20] sm:$0xff] %v656
    %673 = vst [vmem:[%s5 + $0x28] sm:$0xff] %v657
    %674 = vst [vmem:[%s5 + $0x30] sm:$0xff] %v658
    %675 = vst [vmem:[%s5 + $0x38] sm:$0xff] %v659
    %676 = vst [vmem:[%s5 + $0x40] sm:$0xff] %v660
    %677 = vst [vmem:[%s5 + $0x48] sm:$0xff] %v661
    %678 = vst [vmem:[%s5 + $0x50] sm:$0xff] %v662
    %679 = vst [vmem:[%s5 + $0x58] sm:$0xff] %v663
    %680 = vst [vmem:[%s5 + $0x60] sm:$0xff] %v664
    %681 = vst [vmem:[%s5 + $0x68] sm:$0xff] %v665
    %682 = vst [vmem:[%s5 + $0x70] sm:$0xff] %v666
    %683 = vst [vmem:[%s5 + $0x78] sm:$0xff] %v667
  $region29: #{image_compressor_forward.17} parent=0 // pred_fallthru
    _
  // Predicated region
  $region30: #{image_compressor_forward.17} parent=0 // pred_check
    _
  $region31: #{image_compressor_forward.17} parent=0 // pred_check_branch
    %685 = sbr.rel (0) target = $region33
  $region32: #{image_compressor_forward.17} parent=0 // pred_region
    _
  $region33: #{image_compressor_forward.17} parent=0 // pred_fallthru
    _
  // Predicated region
  $region34: #{image_compressor_forward.17} parent=0 // pred_check
    _
  $region35: #{image_compressor_forward.17} parent=0 // pred_check_branch
    %687 = sbr.rel (0) target = $region37
  $region36: #{image_compressor_forward.17} parent=0 // pred_region
    _
  $region37: #{image_compressor_forward.17} parent=0 // pred_fallthru
    _

// kernel: image_compressor_forward.18
$region0: #{image_compressor_forward.18}
  #allocation0 [shape = 'u32[]', space=smem, size = 0x4, offset = 0x4, fixed_abs, tag = 'smem constant byte address 0x4 - core index']
  #allocation1 [shape = 'u32[144,128]{1,0:T(1,128)}', space=vmem, size = 0x12000, scoped, tag = 'internal scratch']
  #allocation2 [shape = 'f32[32,128]{1,0:T(8,128)}', space=vmem, size = 0x4000, scoped, tag = 'scratch operand']
  %s0 = inlined_call_operand.vmem [shape: bf16[32,256], index: 0, kind: input, shape index: {}]
  %s1 = inlined_call_operand.vmem [shape: bf16[256,128], index: 1, kind: input, shape index: {}]
  %s2 = inlined_call_operand.vmem [shape: f32[1,128], index: 2, kind: input, shape index: {}]
  %s3 = inlined_call_operand.vmem [shape: f32[128,128], index: 3, kind: input, shape index: {}]
  %s4 = inlined_call_operand.vmem [shape: f32[1,128], index: 4, kind: input, shape index: {}]
  %s5 = inlined_call_operand.vmem [shape: f32[32,128], index: 5, kind: output, shape index: {}]
  %s6 = sld [smem:[#allocation0]]
  $region38: #{image_compressor_forward.18} parent=0
    _
  %s8 = ssub.s32 1, %s6
  %s9 = scalar_select 0, %s8, %s6
  // Predicated region
  $region2: #{image_compressor_forward.18} parent=0 // pred_check
    _
  $region3: #{image_compressor_forward.18} parent=0 // pred_check_branch
    %11 = sbr.rel (0) target = $region5
  $region4: #{image_compressor_forward.18} parent=0 // pred_region
    _
  $region5: #{image_compressor_forward.18} parent=0 // pred_fallthru
    _
  // Predicated region
  $region6: #{image_compressor_forward.18} parent=0 // pred_check
    _
  $region7: #{image_compressor_forward.18} parent=0 // pred_check_branch
    %13 = sbr.rel (0) target = $region9
  $region8: #{image_compressor_forward.18} parent=0 // pred_region
    _
  $region9: #{image_compressor_forward.18} parent=0 // pred_fallthru
    _
  // Predicated region
  $region10: #{image_compressor_forward.18} parent=0 // pred_check
    _
  $region11: #{image_compressor_forward.18} parent=0 // pred_check_branch
    %15 = sbr.rel (0) target = $region13
  $region12: #{image_compressor_forward.18} parent=0 // pred_region
    _
  $region13: #{image_compressor_forward.18} parent=0 // pred_fallthru
    _
  // Predicated region
  $region14: #{image_compressor_forward.18} parent=0 // pred_check
    _
  $region15: #{image_compressor_forward.18} parent=0 // pred_check_branch
    %17 = sbr.rel (0) target = $region17
  $region16: #{image_compressor_forward.18} parent=0 // pred_region
    _
  $region17: #{image_compressor_forward.18} parent=0 // pred_fallthru
    _
  // Predicated region
  $region18: #{image_compressor_forward.18} parent=0 // pred_check
    _
  $region19: #{image_compressor_forward.18} parent=0 // pred_check_branch
    %19 = sbr.rel (0) target = $region21
  $region20: #{image_compressor_forward.18} parent=0 // pred_region
    _
  $region21: #{image_compressor_forward.18} parent=0 // pred_fallthru
    _
  %p21 = scmp.eq.s32.totalorder 0, 0
  // Predicated region
  $region22: #{image_compressor_forward.18} parent=0 // pred_check
    %p22 = pneg %p21
  $region23: #{image_compressor_forward.18} parent=0 // pred_check_branch
    %24 = sbr.rel (%p22) target = $region25
  $region24: #{image_compressor_forward.18} parent=0 // pred_region
    %25 = vst [vmem:[#allocation2] sm:$0xff] 0.0
    %26 = vst [vmem:[#allocation2 + $0x8] sm:$0xff] 0.0
    %27 = vst [vmem:[#allocation2 + $0x10] sm:$0xff] 0.0
    %28 = vst [vmem:[#allocation2 + $0x18] sm:$0xff] 0.0
  $region25: #{image_compressor_forward.18} parent=0 // pred_fallthru
    _
  %v29 = vld [vmem:[#allocation2] sm:$0xff]
  %v30 = vld [vmem:[#allocation2 + $0x8] sm:$0xff]
  %v31 = vld [vmem:[#allocation2 + $0x10] sm:$0xff]
  %v32 = vld [vmem:[#allocation2 + $0x18] sm:$0xff]
  %v33 = vld [vmem:[%s0] sm:$0xff]
  %v34 = vld [vmem:[%s0 + $0x8] sm:$0xff]
  %v35 = vld [vmem:[%s0 + $0x10] sm:$0xff]
  %v36 = vld [vmem:[%s0 + $0x18] sm:$0xff]
  %v37 = vld [vmem:[%s1] sm:$0xf]
  %v38 = vld [vmem:[%s1 + $0x4] sm:$0xf]
  %v39 = vld [vmem:[%s1 + $0x8] sm:$0xf]
  %v40 = vld [vmem:[%s1 + $0xc] sm:$0xf]
  %v41 = vld [vmem:[%s1 + $0x10] sm:$0xf]
  %v42 = vld [vmem:[%s1 + $0x14] sm:$0xf]
  %v43 = vld [vmem:[%s1 + $0x18] sm:$0xf]
  %v44 = vld [vmem:[%s1 + $0x1c] sm:$0xf]
  %v45 = vld [vmem:[%s1 + $0x20] sm:$0xf]
  %v46 = vld [vmem:[%s1 + $0x24] sm:$0xf]
  %v47 = vld [vmem:[%s1 + $0x28] sm:$0xf]
  %v48 = vld [vmem:[%s1 + $0x2c] sm:$0xf]
  %v49 = vld [vmem:[%s1 + $0x30] sm:$0xf]
  %v50 = vld [vmem:[%s1 + $0x34] sm:$0xf]
  %v51 = vld [vmem:[%s1 + $0x38] sm:$0xf]
  %v52 = vld [vmem:[%s1 + $0x3c] sm:$0xf]
  %v53 = vld [vmem:[%s1 + $0x40] sm:$0xf]
  %v54 = vld [vmem:[%s1 + $0x44] sm:$0xf]
  %v55 = vld [vmem:[%s1 + $0x48] sm:$0xf]
  %v56 = vld [vmem:[%s1 + $0x4c] sm:$0xf]
  %v57 = vld [vmem:[%s1 + $0x50] sm:$0xf]
  %v58 = vld [vmem:[%s1 + $0x54] sm:$0xf]
  %v59 = vld [vmem:[%s1 + $0x58] sm:$0xf]
  %v60 = vld [vmem:[%s1 + $0x5c] sm:$0xf]
  %v61 = vld [vmem:[%s1 + $0x60] sm:$0xf]
  %v62 = vld [vmem:[%s1 + $0x64] sm:$0xf]
  %v63 = vld [vmem:[%s1 + $0x68] sm:$0xf]
  %v64 = vld [vmem:[%s1 + $0x6c] sm:$0xf]
  %v65 = vld [vmem:[%s1 + $0x70] sm:$0xf]
  %v66 = vld [vmem:[%s1 + $0x74] sm:$0xf]
  %v67 = vld [vmem:[%s1 + $0x78] sm:$0xf]
  %v68 = vld [vmem:[%s1 + $0x7c] sm:$0xf]
  %v73 = vunpack.c.l.b16 %v33
  %v74 = vunpack.c.h.b16 %v33
  %v75 = vunpack.c.l.b16 %v34
  %v76 = vunpack.c.h.b16 %v34
  %v77 = vunpack.c.l.b16 %v35
  %v78 = vunpack.c.h.b16 %v35
  %v79 = vunpack.c.l.b16 %v36
  %v80 = vunpack.c.h.b16 %v36
  %v81 = vpack.c.b16 %v75, %v73
  %v82 = vpack.c.b16 %v76, %v74
  %v83 = vpack.c.b16 %v79, %v77
  %v84 = vpack.c.b16 %v80, %v78
  %v121 = vunpack.c.l.b16 %v37
  %v122 = vunpack.c.l.b16 %v38
  %v123 = vunpack.c.l.b16 %v39
  %v124 = vunpack.c.l.b16 %v40
  %v125 = vunpack.c.l.b16 %v41
  %v126 = vunpack.c.l.b16 %v42
  %v127 = vunpack.c.l.b16 %v43
  %v128 = vunpack.c.l.b16 %v44
  %v129 = vunpack.c.l.b16 %v45
  %v130 = vunpack.c.l.b16 %v46
  %v131 = vunpack.c.l.b16 %v47
  %v132 = vunpack.c.l.b16 %v48
  %v133 = vunpack.c.l.b16 %v49
  %v134 = vunpack.c.l.b16 %v50
  %v135 = vunpack.c.l.b16 %v51
  %v136 = vunpack.c.l.b16 %v52
  %v137 = vunpack.c.l.b16 %v53
  %v138 = vunpack.c.l.b16 %v54
  %v139 = vunpack.c.l.b16 %v55
  %v140 = vunpack.c.l.b16 %v56
  %v141 = vunpack.c.l.b16 %v57
  %v142 = vunpack.c.l.b16 %v58
  %v143 = vunpack.c.l.b16 %v59
  %v144 = vunpack.c.l.b16 %v60
  %v145 = vunpack.c.l.b16 %v61
  %v146 = vunpack.c.l.b16 %v62
  %v147 = vunpack.c.l.b16 %v63
  %v148 = vunpack.c.l.b16 %v64
  %v149 = vunpack.c.l.b16 %v65
  %v150 = vunpack.c.l.b16 %v66
  %v151 = vunpack.c.l.b16 %v67
  %v152 = vunpack.c.l.b16 %v68
  %v153 = vpack.c.b16 %v122, %v121
  %v154 = vpack.c.b16 %v124, %v123
  %v155 = vpack.c.b16 %v126, %v125
  %v156 = vpack.c.b16 %v128, %v127
  %v157 = vpack.c.b16 %v130, %v129
  %v158 = vpack.c.b16 %v132, %v131
  %v159 = vpack.c.b16 %v134, %v133
  %v160 = vpack.c.b16 %v136, %v135
  %v161 = vpack.c.b16 %v138, %v137
  %v162 = vpack.c.b16 %v140, %v139
  %v163 = vpack.c.b16 %v142, %v141
  %v164 = vpack.c.b16 %v144, %v143
  %v165 = vpack.c.b16 %v146, %v145
  %v166 = vpack.c.b16 %v148, %v147
  %v167 = vpack.c.b16 %v150, %v149
  %v168 = vpack.c.b16 %v152, %v151
  %185 = vmatprep.subr.bf16.mxu0 0
  %186 = vmatpush1.bf16.msra.mxu0 %v153
  %187 = vmatprep.subr.bf16.mxu0 0
  %188 = vmatpush1.bf16.msra.mxu0 %v154
  %189 = vmatprep.subr.bf16.mxu0 0
  %190 = vmatpush1.bf16.msra.mxu0 %v155
  %191 = vmatprep.subr.bf16.mxu0 0
  %192 = vmatpush1.bf16.msra.mxu0 %v156
  %193 = vmatprep.subr.bf16.mxu0 0
  %194 = vmatpush1.bf16.msra.mxu0 %v157
  %195 = vmatprep.subr.bf16.mxu0 0
  %196 = vmatpush1.bf16.msra.mxu0 %v158
  %197 = vmatprep.subr.bf16.mxu0 0
  %198 = vmatpush1.bf16.msra.mxu0 %v159
  %199 = vmatprep.subr.bf16.mxu0 0
  %200 = vmatpush1.bf16.msra.mxu0 %v160
  %201 = vmatprep.subr.bf16.mxu0 0
  %202 = vmatpush1.bf16.msra.mxu0 %v161
  %203 = vmatprep.subr.bf16.mxu0 0
  %204 = vmatpush1.bf16.msra.mxu0 %v162
  %205 = vmatprep.subr.bf16.mxu0 0
  %206 = vmatpush1.bf16.msra.mxu0 %v163
  %207 = vmatprep.subr.bf16.mxu0 0
  %208 = vmatpush1.bf16.msra.mxu0 %v164
  %209 = vmatprep.subr.bf16.mxu0 0
  %210 = vmatpush1.bf16.msra.mxu0 %v165
  %211 = vmatprep.subr.bf16.mxu0 0
  %212 = vmatpush1.bf16.msra.mxu0 %v166
  %213 = vmatprep.subr.bf16.mxu0 0
  %214 = vmatpush1.bf16.msra.mxu0 %v167
  %215 = vmatprep.subr.bf16.mxu0 0
  %216 = vmatpush1.bf16.msra.mxu0 %v168
  %217 = vmatprep.mubr.bf16.mxu0 %v82
  %218 = vmatmul.mubr.bf16.gmra.mrb[0].mxu0 %v81
  %v219 = vpop.f32.mrb[0].mxu0
  %v220 = vadd.f32 0.0, %v219
  %v221 = vpop.f32.mrb[0].mxu0
  %v222 = vpop.f32.mrb[0].mxu0
  %v223 = vadd.f32 0.0, %v222
  %v224 = vpop.f32.mrb[0].mxu0
  %225 = vmatprep.mubr.bf16.mxu0 %v84
  %226 = vmatmul.mubr.bf16.gmra.mrb[0].mxu0 %v83
  %v227 = vpop.f32.mrb[0].mxu0
  %v228 = vadd.f32 0.0, %v227
  %v229 = vpop.f32.mrb[0].mxu0
  %v230 = vpop.f32.mrb[0].mxu0
  %v231 = vadd.f32 0.0, %v230
  %v232 = vpop.f32.mrb[0].mxu0
  %233 = vdwg.mxu0
  %v234 = vadd.f32 %v29, %v220
  %v235 = vadd.f32 %v30, %v223
  %v236 = vadd.f32 %v31, %v228
  %v237 = vadd.f32 %v32, %v231
  %238 = vst [vmem:[#allocation2] sm:$0xff] %v234
  %239 = vst [vmem:[#allocation2 + $0x8] sm:$0xff] %v235
  %240 = vst [vmem:[#allocation2 + $0x10] sm:$0xff] %v236
  %241 = vst [vmem:[#allocation2 + $0x18] sm:$0xff] %v237
  // Predicated region
  $region26: #{image_compressor_forward.18} parent=0 // pred_check
    %p242 = pneg %p21
  $region27: #{image_compressor_forward.18} parent=0 // pred_check_branch
    %244 = sbr.rel (%p242) target = $region29
  $region28: #{image_compressor_forward.18} parent=0 // pred_region
    %v245 = vld [vmem:[#allocation2] sm:$0xff]
    %v246 = vld [vmem:[#allocation2 + $0x8] sm:$0xff]
    %v247 = vld [vmem:[#allocation2 + $0x10] sm:$0xff]
    %v248 = vld [vmem:[#allocation2 + $0x18] sm:$0xff]
    %v249 = vld [vmem:[%s2] sm:$0x1]
    %v251 = vlaneseq
    %v252 = vshrl.u32 %v251, 7
    %v253 = vsub.s32 0, %v252
    %v254 = vrot.slane %v249, %v253
    %v256 = vadd.f32 %v245, %v254
    %v257 = vadd.f32 %v246, %v254
    %v258 = vadd.f32 %v247, %v254
    %v259 = vadd.f32 %v248, %v254
    %v260 = vmul.f32 %v256, %v256
    %v261 = vmul.f32 %v257, %v257
    %v262 = vmul.f32 %v258, %v258
    %v263 = vmul.f32 %v259, %v259
    %v264 = vld [vmem:[%s3] sm:$0xff]
    %v265 = vld [vmem:[%s3 + $0x8] sm:$0xff]
    %v266 = vld [vmem:[%s3 + $0x10] sm:$0xff]
    %v267 = vld [vmem:[%s3 + $0x18] sm:$0xff]
    %v268 = vld [vmem:[%s3 + $0x20] sm:$0xff]
    %v269 = vld [vmem:[%s3 + $0x28] sm:$0xff]
    %v270 = vld [vmem:[%s3 + $0x30] sm:$0xff]
    %v271 = vld [vmem:[%s3 + $0x38] sm:$0xff]
    %v272 = vld [vmem:[%s3 + $0x40] sm:$0xff]
    %v273 = vld [vmem:[%s3 + $0x48] sm:$0xff]
    %v274 = vld [vmem:[%s3 + $0x50] sm:$0xff]
    %v275 = vld [vmem:[%s3 + $0x58] sm:$0xff]
    %v276 = vld [vmem:[%s3 + $0x60] sm:$0xff]
    %v277 = vld [vmem:[%s3 + $0x68] sm:$0xff]
    %v278 = vld [vmem:[%s3 + $0x70] sm:$0xff]
    %v279 = vld [vmem:[%s3 + $0x78] sm:$0xff]
    %v280 = vld [vmem:[%s4] sm:$0x1]
    %v282 = vlaneseq
    %v283 = vshrl.u32 %v282, 7
    %v284 = vsub.s32 0, %v283
    %v285 = vrot.slane %v280, %v284
    %287 = vmatprep.subr.mxu0 0.0
    %288 = vmatpush1.msra.mxu0 %v264
    %289 = vmatprep.subr.mxu0 0.0
    %290 = vmatpush1.msra.mxu0 %v265
    %291 = vmatprep.subr.mxu0 0.0
    %292 = vmatpush1.msra.mxu0 %v266
    %293 = vmatprep.subr.mxu0 0.0
    %294 = vmatpush1.msra.mxu0 %v267
    %295 = vmatprep.subr.mxu0 0.0
    %296 = vmatpush1.msra.mxu0 %v268
    %297 = vmatprep.subr.mxu0 0.0
    %298 = vmatpush1.msra.mxu0 %v269
    %299 = vmatprep.subr.mxu0 0.0
    %300 = vmatpush1.msra.mxu0 %v270
    %301 = vmatprep.subr.mxu0 0.0
    %302 = vmatpush1.msra.mxu0 %v271
    %303 = vmatprep.subr.mxu0 0.0
    %304 = vmatpush1.msra.mxu0 %v272
    %305 = vmatprep.subr.mxu0 0.0
    %306 = vmatpush1.msra.mxu0 %v273
    %307 = vmatprep.subr.mxu0 0.0
    %308 = vmatpush1.msra.mxu0 %v274
    %309 = vmatprep.subr.mxu0 0.0
    %310 = vmatpush1.msra.mxu0 %v275
    %311 = vmatprep.subr.mxu0 0.0
    %312 = vmatpush1.msra.mxu0 %v276
    %313 = vmatprep.subr.mxu0 0.0
    %314 = vmatpush1.msra.mxu0 %v277
    %315 = vmatprep.subr.mxu0 0.0
    %316 = vmatpush1.msra.mxu0 %v278
    %317 = vmatprep.subr.mxu0 0.0
    %318 = vmatpush1.msra.mxu0 %v279
    %319 = vmatprep.subr.mxu0 0.0
    %320 = vmatpush1.msra.mxu0 0.0
    %321 = vmatprep.subr.mxu0 0.0
    %322 = vmatpush1.msra.mxu0 0.0
    %323 = vmatprep.subr.mxu0 0.0
    %324 = vmatpush1.msra.mxu0 0.0
    %325 = vmatprep.subr.mxu0 0.0
    %326 = vmatpush1.msra.mxu0 0.0
    %327 = vmatprep.subr.mxu0 0.0
    %328 = vmatpush1.msra.mxu0 0.0
    %329 = vmatprep.subr.mxu0 0.0
    %330 = vmatpush1.msra.mxu0 0.0
    %331 = vmatprep.subr.mxu0 0.0
    %332 = vmatpush1.msra.mxu0 0.0
    %333 = vmatprep.subr.mxu0 0.0
    %334 = vmatpush1.msra.mxu0 0.0
    %335 = vmatprep.subr.mxu0 0.0
    %336 = vmatpush1.msra.mxu0 0.0
    %337 = vmatprep.subr.mxu0 0.0
    %338 = vmatpush1.msra.mxu0 0.0
    %339 = vmatprep.subr.mxu0 0.0
    %340 = vmatpush1.msra.mxu0 0.0
    %341 = vmatprep.subr.mxu0 0.0
    %342 = vmatpush1.msra.mxu0 0.0
    %343 = vmatprep.subr.mxu0 0.0
    %344 = vmatpush1.msra.mxu0 0.0
    %345 = vmatprep.subr.mxu0 0.0
    %346 = vmatpush1.msra.mxu0 0.0
    %347 = vmatprep.subr.mxu0 0.0
    %348 = vmatpush1.msra.mxu0 0.0
    %349 = vmatprep.subr.mxu0 0.0
    %350 = vmatpush1.msra.mxu0 0.0
    %351 = vmatprep.mubr.f32.mxu0 0.0
    %352 = vmatmul.mubr.f32.gmra.mrb[0].mxu0 %v260
    %v353 = vpop.f32.mrb[0].mxu0
    %v354 = vadd.f32 %v285, %v353
    %v355 = vpop.f32.mrb[0].mxu0
    %356 = vmatprep.mubr.f32.mxu0 0.0
    %357 = vmatmul.mubr.f32.gmra.mrb[0].mxu0 %v261
    %v358 = vpop.f32.mrb[0].mxu0
    %v359 = vadd.f32 %v285, %v358
    %v360 = vpop.f32.mrb[0].mxu0
    %361 = vmatprep.mubr.f32.mxu0 0.0
    %362 = vmatmul.mubr.f32.gmra.mrb[0].mxu0 %v262
    %v363 = vpop.f32.mrb[0].mxu0
    %v364 = vadd.f32 %v285, %v363
    %v365 = vpop.f32.mrb[0].mxu0
    %366 = vmatprep.mubr.f32.mxu0 0.0
    %367 = vmatmul.mubr.f32.gmra.mrb[0].mxu0 %v263
    %v368 = vpop.f32.mrb[0].mxu0
    %v369 = vadd.f32 %v285, %v368
    %v370 = vpop.f32.mrb[0].mxu0
    %371 = vdwg.mxu0
    %v372 = vrsqrt.pop %v354
    %v373 = vrsqrt.pop %v359
    %v374 = vrsqrt.pop %v364
    %v375 = vrsqrt.pop %v369
    %v376 = vmul.f32 %v256, %v372
    %v377 = vmul.f32 %v257, %v373
    %v378 = vmul.f32 %v258, %v374
    %v379 = vmul.f32 %v259, %v375
    %380 = vst [vmem:[%s5] sm:$0xff] %v376
    %381 = vst [vmem:[%s5 + $0x8] sm:$0xff] %v377
    %382 = vst [vmem:[%s5 + $0x10] sm:$0xff] %v378
    %383 = vst [vmem:[%s5 + $0x18] sm:$0xff] %v379
  $region29: #{image_compressor_forward.18} parent=0 // pred_fallthru
    _
  // Predicated region
  $region30: #{image_compressor_forward.18} parent=0 // pred_check
    _
  $region31: #{image_compressor_forward.18} parent=0 // pred_check_branch
    %385 = sbr.rel (0) target = $region33
  $region32: #{image_compressor_forward.18} parent=0 // pred_region
    _
  $region33: #{image_compressor_forward.18} parent=0 // pred_fallthru
    _
  // Predicated region
  $region34: #{image_compressor_forward.18} parent=0 // pred_check
    _
  $region35: #{image_compressor_forward.18} parent=0 // pred_check_branch
    %387 = sbr.rel (0) target = $region37
  $region36: #{image_compressor_forward.18} parent=0 // pred_region
    _
  $region37: #{image_compressor_forward.18} parent=0 // pred_fallthru
    _

// kernel: image_compressor_forward.19
$region0: #{image_compressor_forward.19}
  #allocation0 [shape = 'u32[]', space=smem, size = 0x4, offset = 0x4, fixed_abs, tag = 'smem constant byte address 0x4 - core index']
  #allocation1 [shape = 'u32[144,128]{1,0:T(1,128)}', space=vmem, size = 0x12000, scoped, tag = 'internal scratch']
  #allocation2 [shape = 'f32[8,128]{1,0:T(8,128)}', space=vmem, size = 0x1000, scoped, tag = 'scratch operand']
  %s0 = inlined_call_operand.vmem [shape: bf16[8,256], index: 0, kind: input, shape index: {}]
  %s1 = inlined_call_operand.vmem [shape: bf16[256,128], index: 1, kind: input, shape index: {}]
  %s2 = inlined_call_operand.vmem [shape: f32[1,128], index: 2, kind: input, shape index: {}]
  %s3 = inlined_call_operand.vmem [shape: f32[8,128], index: 3, kind: output, shape index: {}]
  %s4 = sld [smem:[#allocation0]]
  $region30: #{image_compressor_forward.19} parent=0
    _
  %s6 = ssub.s32 1, %s4
  %s7 = scalar_select 0, %s6, %s4
  // Predicated region
  $region2: #{image_compressor_forward.19} parent=0 // pred_check
    _
  $region3: #{image_compressor_forward.19} parent=0 // pred_check_branch
    %9 = sbr.rel (0) target = $region5
  $region4: #{image_compressor_forward.19} parent=0 // pred_region
    _
  $region5: #{image_compressor_forward.19} parent=0 // pred_fallthru
    _
  // Predicated region
  $region6: #{image_compressor_forward.19} parent=0 // pred_check
    _
  $region7: #{image_compressor_forward.19} parent=0 // pred_check_branch
    %11 = sbr.rel (0) target = $region9
  $region8: #{image_compressor_forward.19} parent=0 // pred_region
    _
  $region9: #{image_compressor_forward.19} parent=0 // pred_fallthru
    _
  // Predicated region
  $region10: #{image_compressor_forward.19} parent=0 // pred_check
    _
  $region11: #{image_compressor_forward.19} parent=0 // pred_check_branch
    %13 = sbr.rel (0) target = $region13
  $region12: #{image_compressor_forward.19} parent=0 // pred_region
    _
  $region13: #{image_compressor_forward.19} parent=0 // pred_fallthru
    _
  %p15 = scmp.eq.s32.totalorder 0, 0
  // Predicated region
  $region14: #{image_compressor_forward.19} parent=0 // pred_check
    %p16 = pneg %p15
  $region15: #{image_compressor_forward.19} parent=0 // pred_check_branch
    %18 = sbr.rel (%p16) target = $region17
  $region16: #{image_compressor_forward.19} parent=0 // pred_region
    %19 = vst [vmem:[#allocation2] sm:$0xff] 0.0
  $region17: #{image_compressor_forward.19} parent=0 // pred_fallthru
    _
  %v20 = vld [vmem:[#allocation2] sm:$0xff]
  %v21 = vld [vmem:[%s0] sm:$0xff]
  %v22 = vld [vmem:[%s1] sm:$0xf]
  %v23 = vld [vmem:[%s1 + $0x4] sm:$0xf]
  %v24 = vld [vmem:[%s1 + $0x8] sm:$0xf]
  %v25 = vld [vmem:[%s1 + $0xc] sm:$0xf]
  %v26 = vld [vmem:[%s1 + $0x10] sm:$0xf]
  %v27 = vld [vmem:[%s1 + $0x14] sm:$0xf]
  %v28 = vld [vmem:[%s1 + $0x18] sm:$0xf]
  %v29 = vld [vmem:[%s1 + $0x1c] sm:$0xf]
  %v30 = vld [vmem:[%s1 + $0x20] sm:$0xf]
  %v31 = vld [vmem:[%s1 + $0x24] sm:$0xf]
  %v32 = vld [vmem:[%s1 + $0x28] sm:$0xf]
  %v33 = vld [vmem:[%s1 + $0x2c] sm:$0xf]
  %v34 = vld [vmem:[%s1 + $0x30] sm:$0xf]
  %v35 = vld [vmem:[%s1 + $0x34] sm:$0xf]
  %v36 = vld [vmem:[%s1 + $0x38] sm:$0xf]
  %v37 = vld [vmem:[%s1 + $0x3c] sm:$0xf]
  %v38 = vld [vmem:[%s1 + $0x40] sm:$0xf]
  %v39 = vld [vmem:[%s1 + $0x44] sm:$0xf]
  %v40 = vld [vmem:[%s1 + $0x48] sm:$0xf]
  %v41 = vld [vmem:[%s1 + $0x4c] sm:$0xf]
  %v42 = vld [vmem:[%s1 + $0x50] sm:$0xf]
  %v43 = vld [vmem:[%s1 + $0x54] sm:$0xf]
  %v44 = vld [vmem:[%s1 + $0x58] sm:$0xf]
  %v45 = vld [vmem:[%s1 + $0x5c] sm:$0xf]
  %v46 = vld [vmem:[%s1 + $0x60] sm:$0xf]
  %v47 = vld [vmem:[%s1 + $0x64] sm:$0xf]
  %v48 = vld [vmem:[%s1 + $0x68] sm:$0xf]
  %v49 = vld [vmem:[%s1 + $0x6c] sm:$0xf]
  %v50 = vld [vmem:[%s1 + $0x70] sm:$0xf]
  %v51 = vld [vmem:[%s1 + $0x74] sm:$0xf]
  %v52 = vld [vmem:[%s1 + $0x78] sm:$0xf]
  %v53 = vld [vmem:[%s1 + $0x7c] sm:$0xf]
  %v55 = vunpack.c.l.b16 %v21
  %v56 = vunpack.c.h.b16 %v21
  %v57 = vpack.c.b16 %v55, %v55
  %v58 = vpack.c.b16 %v56, %v56
  %v93 = vunpack.c.l.b16 %v22
  %v94 = vunpack.c.l.b16 %v23
  %v95 = vunpack.c.l.b16 %v24
  %v96 = vunpack.c.l.b16 %v25
  %v97 = vunpack.c.l.b16 %v26
  %v98 = vunpack.c.l.b16 %v27
  %v99 = vunpack.c.l.b16 %v28
  %v100 = vunpack.c.l.b16 %v29
  %v101 = vunpack.c.l.b16 %v30
  %v102 = vunpack.c.l.b16 %v31
  %v103 = vunpack.c.l.b16 %v32
  %v104 = vunpack.c.l.b16 %v33
  %v105 = vunpack.c.l.b16 %v34
  %v106 = vunpack.c.l.b16 %v35
  %v107 = vunpack.c.l.b16 %v36
  %v108 = vunpack.c.l.b16 %v37
  %v109 = vunpack.c.l.b16 %v38
  %v110 = vunpack.c.l.b16 %v39
  %v111 = vunpack.c.l.b16 %v40
  %v112 = vunpack.c.l.b16 %v41
  %v113 = vunpack.c.l.b16 %v42
  %v114 = vunpack.c.l.b16 %v43
  %v115 = vunpack.c.l.b16 %v44
  %v116 = vunpack.c.l.b16 %v45
  %v117 = vunpack.c.l.b16 %v46
  %v118 = vunpack.c.l.b16 %v47
  %v119 = vunpack.c.l.b16 %v48
  %v120 = vunpack.c.l.b16 %v49
  %v121 = vunpack.c.l.b16 %v50
  %v122 = vunpack.c.l.b16 %v51
  %v123 = vunpack.c.l.b16 %v52
  %v124 = vunpack.c.l.b16 %v53
  %v125 = vpack.c.b16 %v94, %v93
  %v126 = vpack.c.b16 %v96, %v95
  %v127 = vpack.c.b16 %v98, %v97
  %v128 = vpack.c.b16 %v100, %v99
  %v129 = vpack.c.b16 %v102, %v101
  %v130 = vpack.c.b16 %v104, %v103
  %v131 = vpack.c.b16 %v106, %v105
  %v132 = vpack.c.b16 %v108, %v107
  %v133 = vpack.c.b16 %v110, %v109
  %v134 = vpack.c.b16 %v112, %v111
  %v135 = vpack.c.b16 %v114, %v113
  %v136 = vpack.c.b16 %v116, %v115
  %v137 = vpack.c.b16 %v118, %v117
  %v138 = vpack.c.b16 %v120, %v119
  %v139 = vpack.c.b16 %v122, %v121
  %v140 = vpack.c.b16 %v124, %v123
  %157 = vmatprep.subr.bf16.mxu0 0
  %158 = vmatpush1.bf16.msra.mxu0 %v125
  %159 = vmatprep.subr.bf16.mxu0 0
  %160 = vmatpush1.bf16.msra.mxu0 %v126
  %161 = vmatprep.subr.bf16.mxu0 0
  %162 = vmatpush1.bf16.msra.mxu0 %v127
  %163 = vmatprep.subr.bf16.mxu0 0
  %164 = vmatpush1.bf16.msra.mxu0 %v128
  %165 = vmatprep.subr.bf16.mxu0 0
  %166 = vmatpush1.bf16.msra.mxu0 %v129
  %167 = vmatprep.subr.bf16.mxu0 0
  %168 = vmatpush1.bf16.msra.mxu0 %v130
  %169 = vmatprep.subr.bf16.mxu0 0
  %170 = vmatpush1.bf16.msra.mxu0 %v131
  %171 = vmatprep.subr.bf16.mxu0 0
  %172 = vmatpush1.bf16.msra.mxu0 %v132
  %173 = vmatprep.subr.bf16.mxu0 0
  %174 = vmatpush1.bf16.msra.mxu0 %v133
  %175 = vmatprep.subr.bf16.mxu0 0
  %176 = vmatpush1.bf16.msra.mxu0 %v134
  %177 = vmatprep.subr.bf16.mxu0 0
  %178 = vmatpush1.bf16.msra.mxu0 %v135
  %179 = vmatprep.subr.bf16.mxu0 0
  %180 = vmatpush1.bf16.msra.mxu0 %v136
  %181 = vmatprep.subr.bf16.mxu0 0
  %182 = vmatpush1.bf16.msra.mxu0 %v137
  %183 = vmatprep.subr.bf16.mxu0 0
  %184 = vmatpush1.bf16.msra.mxu0 %v138
  %185 = vmatprep.subr.bf16.mxu0 0
  %186 = vmatpush1.bf16.msra.mxu0 %v139
  %187 = vmatprep.subr.bf16.mxu0 0
  %188 = vmatpush1.bf16.msra.mxu0 %v140
  %189 = vmatprep.mubr.bf16.mxu0 %v58
  %190 = vmatmul.mubr.bf16.gmra.mrb[0].mxu0 %v57
  %v191 = vpop.f32.mrb[0].mxu0
  %v192 = vadd.f32 0.0, %v191
  %v193 = vpop.f32.mrb[0].mxu0
  %v194 = vpop.f32.mrb[0].mxu0
  %v195 = vpop.f32.mrb[0].mxu0
  %196 = vdwg.mxu0
  %v197 = vadd.f32 %v20, %v192
  %198 = vst [vmem:[#allocation2] sm:$0xff] %v197
  // Predicated region
  $region18: #{image_compressor_forward.19} parent=0 // pred_check
    %p199 = pneg %p15
  $region19: #{image_compressor_forward.19} parent=0 // pred_check_branch
    %201 = sbr.rel (%p199) target = $region21
  $region20: #{image_compressor_forward.19} parent=0 // pred_region
    %v202 = vld [vmem:[#allocation2] sm:$0xff]
    %v203 = vld [vmem:[%s2] sm:$0x1]
    %v205 = vlaneseq
    %v206 = vshrl.u32 %v205, 7
    %v207 = vsub.s32 0, %v206
    %v208 = vrot.slane %v203, %v207
    %v210 = vadd.f32 %v202, %v208
    %v211 = vround.ne.pseudo %v210
    %212 = vst [vmem:[%s3] sm:$0xff] %v211
  $region21: #{image_compressor_forward.19} parent=0 // pred_fallthru
    _
  // Predicated region
  $region22: #{image_compressor_forward.19} parent=0 // pred_check
    _
  $region23: #{image_compressor_forward.19} parent=0 // pred_check_branch
    %214 = sbr.rel (0) target = $region25
  $region24: #{image_compressor_forward.19} parent=0 // pred_region
    _
  $region25: #{image_compressor_forward.19} parent=0 // pred_fallthru
    _
  // Predicated region
  $region26: #{image_compressor_forward.19} parent=0 // pred_check
    _
  $region27: #{image_compressor_forward.19} parent=0 // pred_check_branch
    %216 = sbr.rel (0) target = $region29
  $region28: #{image_compressor_forward.19} parent=0 // pred_region
    _
  $region29: #{image_compressor_forward.19} parent=0 // pred_fallthru
    _

// kernel: image_compressor_forward.23
$region0: #{image_compressor_forward.23}
  #allocation0 [shape = 'u32[]', space=smem, size = 0x4, offset = 0x4, fixed_abs, tag = 'smem constant byte address 0x4 - core index']
  #allocation1 [shape = 'u32[144,128]{1,0:T(1,128)}', space=vmem, size = 0x12000, scoped, tag = 'internal scratch']
  #allocation2 [shape = 'f32[8,128]{1,0:T(8,128)}', space=vmem, size = 0x1000, scoped, tag = 'scratch operand']
  %s0 = inlined_call_operand.vmem [shape: bf16[8,128], index: 0, kind: input, shape index: {}]
  %s1 = inlined_call_operand.vmem [shape: bf16[128,128], index: 1, kind: input, shape index: {}]
  %s2 = inlined_call_operand.vmem [shape: f32[1,128], index: 2, kind: input, shape index: {}]
  %s3 = inlined_call_operand.vmem [shape: f32[128,128], index: 3, kind: input, shape index: {}]
  %s4 = inlined_call_operand.vmem [shape: f32[1,128], index: 4, kind: input, shape index: {}]
  %s5 = inlined_call_operand.vmem [shape: f32[8,128], index: 5, kind: output, shape index: {}]
  %s6 = sld [smem:[#allocation0]]
  $region38: #{image_compressor_forward.23} parent=0
    _
  %s8 = ssub.s32 1, %s6
  %s9 = scalar_select 0, %s8, %s6
  // Predicated region
  $region2: #{image_compressor_forward.23} parent=0 // pred_check
    _
  $region3: #{image_compressor_forward.23} parent=0 // pred_check_branch
    %11 = sbr.rel (0) target = $region5
  $region4: #{image_compressor_forward.23} parent=0 // pred_region
    _
  $region5: #{image_compressor_forward.23} parent=0 // pred_fallthru
    _
  // Predicated region
  $region6: #{image_compressor_forward.23} parent=0 // pred_check
    _
  $region7: #{image_compressor_forward.23} parent=0 // pred_check_branch
    %13 = sbr.rel (0) target = $region9
  $region8: #{image_compressor_forward.23} parent=0 // pred_region
    _
  $region9: #{image_compressor_forward.23} parent=0 // pred_fallthru
    _
  // Predicated region
  $region10: #{image_compressor_forward.23} parent=0 // pred_check
    _
  $region11: #{image_compressor_forward.23} parent=0 // pred_check_branch
    %15 = sbr.rel (0) target = $region13
  $region12: #{image_compressor_forward.23} parent=0 // pred_region
    _
  $region13: #{image_compressor_forward.23} parent=0 // pred_fallthru
    _
  // Predicated region
  $region14: #{image_compressor_forward.23} parent=0 // pred_check
    _
  $region15: #{image_compressor_forward.23} parent=0 // pred_check_branch
    %17 = sbr.rel (0) target = $region17
  $region16: #{image_compressor_forward.23} parent=0 // pred_region
    _
  $region17: #{image_compressor_forward.23} parent=0 // pred_fallthru
    _
  // Predicated region
  $region18: #{image_compressor_forward.23} parent=0 // pred_check
    _
  $region19: #{image_compressor_forward.23} parent=0 // pred_check_branch
    %19 = sbr.rel (0) target = $region21
  $region20: #{image_compressor_forward.23} parent=0 // pred_region
    _
  $region21: #{image_compressor_forward.23} parent=0 // pred_fallthru
    _
  %p21 = scmp.eq.s32.totalorder 0, 0
  // Predicated region
  $region22: #{image_compressor_forward.23} parent=0 // pred_check
    %p22 = pneg %p21
  $region23: #{image_compressor_forward.23} parent=0 // pred_check_branch
    %24 = sbr.rel (%p22) target = $region25
  $region24: #{image_compressor_forward.23} parent=0 // pred_region
    %25 = vst [vmem:[#allocation2] sm:$0xff] 0.0
  $region25: #{image_compressor_forward.23} parent=0 // pred_fallthru
    _
  %v26 = vld [vmem:[#allocation2] sm:$0xff]
  %v27 = vld [vmem:[%s0] sm:$0xf]
  %v28 = vld [vmem:[%s1] sm:$0xf]
  %v29 = vld [vmem:[%s1 + $0x4] sm:$0xf]
  %v30 = vld [vmem:[%s1 + $0x8] sm:$0xf]
  %v31 = vld [vmem:[%s1 + $0xc] sm:$0xf]
  %v32 = vld [vmem:[%s1 + $0x10] sm:$0xf]
  %v33 = vld [vmem:[%s1 + $0x14] sm:$0xf]
  %v34 = vld [vmem:[%s1 + $0x18] sm:$0xf]
  %v35 = vld [vmem:[%s1 + $0x1c] sm:$0xf]
  %v36 = vld [vmem:[%s1 + $0x20] sm:$0xf]
  %v37 = vld [vmem:[%s1 + $0x24] sm:$0xf]
  %v38 = vld [vmem:[%s1 + $0x28] sm:$0xf]
  %v39 = vld [vmem:[%s1 + $0x2c] sm:$0xf]
  %v40 = vld [vmem:[%s1 + $0x30] sm:$0xf]
  %v41 = vld [vmem:[%s1 + $0x34] sm:$0xf]
  %v42 = vld [vmem:[%s1 + $0x38] sm:$0xf]
  %v43 = vld [vmem:[%s1 + $0x3c] sm:$0xf]
  %v60 = vunpack.c.l.b16 %v28
  %v61 = vunpack.c.l.b16 %v29
  %v62 = vunpack.c.l.b16 %v30
  %v63 = vunpack.c.l.b16 %v31
  %v64 = vunpack.c.l.b16 %v32
  %v65 = vunpack.c.l.b16 %v33
  %v66 = vunpack.c.l.b16 %v34
  %v67 = vunpack.c.l.b16 %v35
  %v68 = vunpack.c.l.b16 %v36
  %v69 = vunpack.c.l.b16 %v37
  %v70 = vunpack.c.l.b16 %v38
  %v71 = vunpack.c.l.b16 %v39
  %v72 = vunpack.c.l.b16 %v40
  %v73 = vunpack.c.l.b16 %v41
  %v74 = vunpack.c.l.b16 %v42
  %v75 = vunpack.c.l.b16 %v43
  %v76 = vpack.c.b16 %v61, %v60
  %v77 = vpack.c.b16 %v63, %v62
  %v78 = vpack.c.b16 %v65, %v64
  %v79 = vpack.c.b16 %v67, %v66
  %v80 = vpack.c.b16 %v69, %v68
  %v81 = vpack.c.b16 %v71, %v70
  %v82 = vpack.c.b16 %v73, %v72
  %v83 = vpack.c.b16 %v75, %v74
  %92 = vmatprep.subr.bf16.mxu0 0
  %93 = vmatpush1.bf16.msra.mxu0 %v76
  %94 = vmatprep.subr.bf16.mxu0 0
  %95 = vmatpush1.bf16.msra.mxu0 %v77
  %96 = vmatprep.subr.bf16.mxu0 0
  %97 = vmatpush1.bf16.msra.mxu0 %v78
  %98 = vmatprep.subr.bf16.mxu0 0
  %99 = vmatpush1.bf16.msra.mxu0 %v79
  %100 = vmatprep.subr.bf16.mxu0 0
  %101 = vmatpush1.bf16.msra.mxu0 %v80
  %102 = vmatprep.subr.bf16.mxu0 0
  %103 = vmatpush1.bf16.msra.mxu0 %v81
  %104 = vmatprep.subr.bf16.mxu0 0
  %105 = vmatpush1.bf16.msra.mxu0 %v82
  %106 = vmatprep.subr.bf16.mxu0 0
  %107 = vmatpush1.bf16.msra.mxu0 %v83
  %108 = vmatprep.subr.bf16.mxu0 0
  %109 = vmatpush1.bf16.msra.mxu0 0
  %110 = vmatprep.subr.bf16.mxu0 0
  %111 = vmatpush1.bf16.msra.mxu0 0
  %112 = vmatprep.subr.bf16.mxu0 0
  %113 = vmatpush1.bf16.msra.mxu0 0
  %114 = vmatprep.subr.bf16.mxu0 0
  %115 = vmatpush1.bf16.msra.mxu0 0
  %116 = vmatprep.subr.bf16.mxu0 0
  %117 = vmatpush1.bf16.msra.mxu0 0
  %118 = vmatprep.subr.bf16.mxu0 0
  %119 = vmatpush1.bf16.msra.mxu0 0
  %120 = vmatprep.subr.bf16.mxu0 0
  %121 = vmatpush1.bf16.msra.mxu0 0
  %122 = vmatprep.subr.bf16.mxu0 0
  %123 = vmatpush1.bf16.msra.mxu0 0
  %124 = vmatprep.mubr.bf16.mxu0 0
  %125 = vmatmul.mubr.bf16.gmra.mrb[0].mxu0 %v27
  %v126 = vpop.f32.mrb[0].mxu0
  %v127 = vadd.f32 0.0, %v126
  %v128 = vpop.f32.mrb[0].mxu0
  %v129 = vpop.f32.mrb[0].mxu0
  %v130 = vpop.f32.mrb[0].mxu0
  %131 = vdwg.mxu0
  %v132 = vadd.f32 %v26, %v127
  %133 = vst [vmem:[#allocation2] sm:$0xff] %v132
  // Predicated region
  $region26: #{image_compressor_forward.23} parent=0 // pred_check
    %p134 = pneg %p21
  $region27: #{image_compressor_forward.23} parent=0 // pred_check_branch
    %136 = sbr.rel (%p134) target = $region29
  $region28: #{image_compressor_forward.23} parent=0 // pred_region
    %v137 = vld [vmem:[#allocation2] sm:$0xff]
    %v138 = vld [vmem:[%s2] sm:$0x1]
    %v140 = vlaneseq
    %v141 = vshrl.u32 %v140, 7
    %v142 = vsub.s32 0, %v141
    %v143 = vrot.slane %v138, %v142
    %v145 = vadd.f32 %v137, %v143
    %v146 = vmul.f32 %v145, %v145
    %v147 = vld [vmem:[%s3] sm:$0xff]
    %v148 = vld [vmem:[%s3 + $0x8] sm:$0xff]
    %v149 = vld [vmem:[%s3 + $0x10] sm:$0xff]
    %v150 = vld [vmem:[%s3 + $0x18] sm:$0xff]
    %v151 = vld [vmem:[%s3 + $0x20] sm:$0xff]
    %v152 = vld [vmem:[%s3 + $0x28] sm:$0xff]
    %v153 = vld [vmem:[%s3 + $0x30] sm:$0xff]
    %v154 = vld [vmem:[%s3 + $0x38] sm:$0xff]
    %v155 = vld [vmem:[%s3 + $0x40] sm:$0xff]
    %v156 = vld [vmem:[%s3 + $0x48] sm:$0xff]
    %v157 = vld [vmem:[%s3 + $0x50] sm:$0xff]
    %v158 = vld [vmem:[%s3 + $0x58] sm:$0xff]
    %v159 = vld [vmem:[%s3 + $0x60] sm:$0xff]
    %v160 = vld [vmem:[%s3 + $0x68] sm:$0xff]
    %v161 = vld [vmem:[%s3 + $0x70] sm:$0xff]
    %v162 = vld [vmem:[%s3 + $0x78] sm:$0xff]
    %v163 = vld [vmem:[%s4] sm:$0x1]
    %v165 = vlaneseq
    %v166 = vshrl.u32 %v165, 7
    %v167 = vsub.s32 0, %v166
    %v168 = vrot.slane %v163, %v167
    %170 = vmatprep.subr.mxu0 0.0
    %171 = vmatpush1.msra.mxu0 %v147
    %172 = vmatprep.subr.mxu0 0.0
    %173 = vmatpush1.msra.mxu0 %v148
    %174 = vmatprep.subr.mxu0 0.0
    %175 = vmatpush1.msra.mxu0 %v149
    %176 = vmatprep.subr.mxu0 0.0
    %177 = vmatpush1.msra.mxu0 %v150
    %178 = vmatprep.subr.mxu0 0.0
    %179 = vmatpush1.msra.mxu0 %v151
    %180 = vmatprep.subr.mxu0 0.0
    %181 = vmatpush1.msra.mxu0 %v152
    %182 = vmatprep.subr.mxu0 0.0
    %183 = vmatpush1.msra.mxu0 %v153
    %184 = vmatprep.subr.mxu0 0.0
    %185 = vmatpush1.msra.mxu0 %v154
    %186 = vmatprep.subr.mxu0 0.0
    %187 = vmatpush1.msra.mxu0 %v155
    %188 = vmatprep.subr.mxu0 0.0
    %189 = vmatpush1.msra.mxu0 %v156
    %190 = vmatprep.subr.mxu0 0.0
    %191 = vmatpush1.msra.mxu0 %v157
    %192 = vmatprep.subr.mxu0 0.0
    %193 = vmatpush1.msra.mxu0 %v158
    %194 = vmatprep.subr.mxu0 0.0
    %195 = vmatpush1.msra.mxu0 %v159
    %196 = vmatprep.subr.mxu0 0.0
    %197 = vmatpush1.msra.mxu0 %v160
    %198 = vmatprep.subr.mxu0 0.0
    %199 = vmatpush1.msra.mxu0 %v161
    %200 = vmatprep.subr.mxu0 0.0
    %201 = vmatpush1.msra.mxu0 %v162
    %202 = vmatprep.subr.mxu0 0.0
    %203 = vmatpush1.msra.mxu0 0.0
    %204 = vmatprep.subr.mxu0 0.0
    %205 = vmatpush1.msra.mxu0 0.0
    %206 = vmatprep.subr.mxu0 0.0
    %207 = vmatpush1.msra.mxu0 0.0
    %208 = vmatprep.subr.mxu0 0.0
    %209 = vmatpush1.msra.mxu0 0.0
    %210 = vmatprep.subr.mxu0 0.0
    %211 = vmatpush1.msra.mxu0 0.0
    %212 = vmatprep.subr.mxu0 0.0
    %213 = vmatpush1.msra.mxu0 0.0
    %214 = vmatprep.subr.mxu0 0.0
    %215 = vmatpush1.msra.mxu0 0.0
    %216 = vmatprep.subr.mxu0 0.0
    %217 = vmatpush1.msra.mxu0 0.0
    %218 = vmatprep.subr.mxu0 0.0
    %219 = vmatpush1.msra.mxu0 0.0
    %220 = vmatprep.subr.mxu0 0.0
    %221 = vmatpush1.msra.mxu0 0.0
    %222 = vmatprep.subr.mxu0 0.0
    %223 = vmatpush1.msra.mxu0 0.0
    %224 = vmatprep.subr.mxu0 0.0
    %225 = vmatpush1.msra.mxu0 0.0
    %226 = vmatprep.subr.mxu0 0.0
    %227 = vmatpush1.msra.mxu0 0.0
    %228 = vmatprep.subr.mxu0 0.0
    %229 = vmatpush1.msra.mxu0 0.0
    %230 = vmatprep.subr.mxu0 0.0
    %231 = vmatpush1.msra.mxu0 0.0
    %232 = vmatprep.subr.mxu0 0.0
    %233 = vmatpush1.msra.mxu0 0.0
    %234 = vmatprep.mubr.f32.mxu0 0.0
    %235 = vmatmul.mubr.f32.gmra.mrb[0].mxu0 %v146
    %v236 = vpop.f32.mrb[0].mxu0
    %v237 = vadd.f32 %v168, %v236
    %v238 = vpop.f32.mrb[0].mxu0
    %239 = vdwg.mxu0
    %v240 = vrsqrt.pop %v237
    %v241 = vmul.f32 %v237, %v240
    %vm242 = vcmp.eq.f32.partialorder %v237, inf
    %v243 = vsel %vm242, %v237, %v241
    %vm244 = vcmp.eq.f32.partialorder %v237, 0.0
    %v245 = vand.u32 %v237, 2147483648
    %v246 = vsel %vm244, %v245, %v243
    %v247 = vmul.f32 %v145, %v246
    %248 = vst [vmem:[%s5] sm:$0xff] %v247
  $region29: #{image_compressor_forward.23} parent=0 // pred_fallthru
    _
  // Predicated region
  $region30: #{image_compressor_forward.23} parent=0 // pred_check
    _
  $region31: #{image_compressor_forward.23} parent=0 // pred_check_branch
    %250 = sbr.rel (0) target = $region33
  $region32: #{image_compressor_forward.23} parent=0 // pred_region
    _
  $region33: #{image_compressor_forward.23} parent=0 // pred_fallthru
    _
  // Predicated region
  $region34: #{image_compressor_forward.23} parent=0 // pred_check
    _
  $region35: #{image_compressor_forward.23} parent=0 // pred_check_branch
    %252 = sbr.rel (0) target = $region37
  $region36: #{image_compressor_forward.23} parent=0 // pred_region
    _
  $region37: #{image_compressor_forward.23} parent=0 // pred_fallthru
    _

// kernel: image_compressor_forward.27
$region0: #{image_compressor_forward.27}
  #allocation0 [shape = 'u32[]', space=smem, size = 0x4, offset = 0x4, fixed_abs, tag = 'smem constant byte address 0x4 - core index']
  #allocation1 [shape = 'u32[144,128]{1,0:T(1,128)}', space=vmem, size = 0x12000, scoped, tag = 'internal scratch']
  #allocation2 [shape = 'f32[32,128]{1,0:T(8,128)}', space=vmem, size = 0x4000, scoped, tag = 'scratch operand']
  %s0 = inlined_call_operand.vmem [shape: bf16[32,128], index: 0, kind: input, shape index: {}]
  %s1 = inlined_call_operand.vmem [shape: bf16[128,128], index: 1, kind: input, shape index: {}]
  %s2 = inlined_call_operand.vmem [shape: f32[1,128], index: 2, kind: input, shape index: {}]
  %s3 = inlined_call_operand.vmem [shape: f32[128,128], index: 3, kind: input, shape index: {}]
  %s4 = inlined_call_operand.vmem [shape: f32[1,128], index: 4, kind: input, shape index: {}]
  %s5 = inlined_call_operand.vmem [shape: f32[32,128], index: 5, kind: output, shape index: {}]
  %s6 = sld [smem:[#allocation0]]
  $region38: #{image_compressor_forward.27} parent=0
    _
  %s8 = ssub.s32 1, %s6
  %s9 = scalar_select 0, %s8, %s6
  // Predicated region
  $region2: #{image_compressor_forward.27} parent=0 // pred_check
    _
  $region3: #{image_compressor_forward.27} parent=0 // pred_check_branch
    %11 = sbr.rel (0) target = $region5
  $region4: #{image_compressor_forward.27} parent=0 // pred_region
    _
  $region5: #{image_compressor_forward.27} parent=0 // pred_fallthru
    _
  // Predicated region
  $region6: #{image_compressor_forward.27} parent=0 // pred_check
    _
  $region7: #{image_compressor_forward.27} parent=0 // pred_check_branch
    %13 = sbr.rel (0) target = $region9
  $region8: #{image_compressor_forward.27} parent=0 // pred_region
    _
  $region9: #{image_compressor_forward.27} parent=0 // pred_fallthru
    _
  // Predicated region
  $region10: #{image_compressor_forward.27} parent=0 // pred_check
    _
  $region11: #{image_compressor_forward.27} parent=0 // pred_check_branch
    %15 = sbr.rel (0) target = $region13
  $region12: #{image_compressor_forward.27} parent=0 // pred_region
    _
  $region13: #{image_compressor_forward.27} parent=0 // pred_fallthru
    _
  // Predicated region
  $region14: #{image_compressor_forward.27} parent=0 // pred_check
    _
  $region15: #{image_compressor_forward.27} parent=0 // pred_check_branch
    %17 = sbr.rel (0) target = $region17
  $region16: #{image_compressor_forward.27} parent=0 // pred_region
    _
  $region17: #{image_compressor_forward.27} parent=0 // pred_fallthru
    _
  // Predicated region
  $region18: #{image_compressor_forward.27} parent=0 // pred_check
    _
  $region19: #{image_compressor_forward.27} parent=0 // pred_check_branch
    %19 = sbr.rel (0) target = $region21
  $region20: #{image_compressor_forward.27} parent=0 // pred_region
    _
  $region21: #{image_compressor_forward.27} parent=0 // pred_fallthru
    _
  %p21 = scmp.eq.s32.totalorder 0, 0
  // Predicated region
  $region22: #{image_compressor_forward.27} parent=0 // pred_check
    %p22 = pneg %p21
  $region23: #{image_compressor_forward.27} parent=0 // pred_check_branch
    %24 = sbr.rel (%p22) target = $region25
  $region24: #{image_compressor_forward.27} parent=0 // pred_region
    %25 = vst [vmem:[#allocation2] sm:$0xff] 0.0
    %26 = vst [vmem:[#allocation2 + $0x8] sm:$0xff] 0.0
    %27 = vst [vmem:[#allocation2 + $0x10] sm:$0xff] 0.0
    %28 = vst [vmem:[#allocation2 + $0x18] sm:$0xff] 0.0
  $region25: #{image_compressor_forward.27} parent=0 // pred_fallthru
    _
  %v29 = vld [vmem:[#allocation2] sm:$0xff]
  %v30 = vld [vmem:[#allocation2 + $0x8] sm:$0xff]
  %v31 = vld [vmem:[#allocation2 + $0x10] sm:$0xff]
  %v32 = vld [vmem:[#allocation2 + $0x18] sm:$0xff]
  %v33 = vld [vmem:[%s0] sm:$0xf]
  %v34 = vld [vmem:[%s0 + $0x4] sm:$0xf]
  %v35 = vld [vmem:[%s0 + $0x8] sm:$0xf]
  %v36 = vld [vmem:[%s0 + $0xc] sm:$0xf]
  %v37 = vld [vmem:[%s1] sm:$0xf]
  %v38 = vld [vmem:[%s1 + $0x4] sm:$0xf]
  %v39 = vld [vmem:[%s1 + $0x8] sm:$0xf]
  %v40 = vld [vmem:[%s1 + $0xc] sm:$0xf]
  %v41 = vld [vmem:[%s1 + $0x10] sm:$0xf]
  %v42 = vld [vmem:[%s1 + $0x14] sm:$0xf]
  %v43 = vld [vmem:[%s1 + $0x18] sm:$0xf]
  %v44 = vld [vmem:[%s1 + $0x1c] sm:$0xf]
  %v45 = vld [vmem:[%s1 + $0x20] sm:$0xf]
  %v46 = vld [vmem:[%s1 + $0x24] sm:$0xf]
  %v47 = vld [vmem:[%s1 + $0x28] sm:$0xf]
  %v48 = vld [vmem:[%s1 + $0x2c] sm:$0xf]
  %v49 = vld [vmem:[%s1 + $0x30] sm:$0xf]
  %v50 = vld [vmem:[%s1 + $0x34] sm:$0xf]
  %v51 = vld [vmem:[%s1 + $0x38] sm:$0xf]
  %v52 = vld [vmem:[%s1 + $0x3c] sm:$0xf]
  %v57 = vunpack.c.l.b16 %v33
  %v58 = vunpack.c.l.b16 %v34
  %v59 = vunpack.c.l.b16 %v35
  %v60 = vunpack.c.l.b16 %v36
  %v61 = vpack.c.b16 %v58, %v57
  %v62 = vpack.c.b16 %v60, %v59
  %v81 = vunpack.c.l.b16 %v37
  %v82 = vunpack.c.l.b16 %v38
  %v83 = vunpack.c.l.b16 %v39
  %v84 = vunpack.c.l.b16 %v40
  %v85 = vunpack.c.l.b16 %v41
  %v86 = vunpack.c.l.b16 %v42
  %v87 = vunpack.c.l.b16 %v43
  %v88 = vunpack.c.l.b16 %v44
  %v89 = vunpack.c.l.b16 %v45
  %v90 = vunpack.c.l.b16 %v46
  %v91 = vunpack.c.l.b16 %v47
  %v92 = vunpack.c.l.b16 %v48
  %v93 = vunpack.c.l.b16 %v49
  %v94 = vunpack.c.l.b16 %v50
  %v95 = vunpack.c.l.b16 %v51
  %v96 = vunpack.c.l.b16 %v52
  %v97 = vpack.c.b16 %v82, %v81
  %v98 = vpack.c.b16 %v84, %v83
  %v99 = vpack.c.b16 %v86, %v85
  %v100 = vpack.c.b16 %v88, %v87
  %v101 = vpack.c.b16 %v90, %v89
  %v102 = vpack.c.b16 %v92, %v91
  %v103 = vpack.c.b16 %v94, %v93
  %v104 = vpack.c.b16 %v96, %v95
  %113 = vmatprep.subr.bf16.mxu0 0
  %114 = vmatpush1.bf16.msra.mxu0 %v97
  %115 = vmatprep.subr.bf16.mxu0 0
  %116 = vmatpush1.bf16.msra.mxu0 %v98
  %117 = vmatprep.subr.bf16.mxu0 0
  %118 = vmatpush1.bf16.msra.mxu0 %v99
  %119 = vmatprep.subr.bf16.mxu0 0
  %120 = vmatpush1.bf16.msra.mxu0 %v100
  %121 = vmatprep.subr.bf16.mxu0 0
  %122 = vmatpush1.bf16.msra.mxu0 %v101
  %123 = vmatprep.subr.bf16.mxu0 0
  %124 = vmatpush1.bf16.msra.mxu0 %v102
  %125 = vmatprep.subr.bf16.mxu0 0
  %126 = vmatpush1.bf16.msra.mxu0 %v103
  %127 = vmatprep.subr.bf16.mxu0 0
  %128 = vmatpush1.bf16.msra.mxu0 %v104
  %129 = vmatprep.subr.bf16.mxu0 0
  %130 = vmatpush1.bf16.msra.mxu0 0
  %131 = vmatprep.subr.bf16.mxu0 0
  %132 = vmatpush1.bf16.msra.mxu0 0
  %133 = vmatprep.subr.bf16.mxu0 0
  %134 = vmatpush1.bf16.msra.mxu0 0
  %135 = vmatprep.subr.bf16.mxu0 0
  %136 = vmatpush1.bf16.msra.mxu0 0
  %137 = vmatprep.subr.bf16.mxu0 0
  %138 = vmatpush1.bf16.msra.mxu0 0
  %139 = vmatprep.subr.bf16.mxu0 0
  %140 = vmatpush1.bf16.msra.mxu0 0
  %141 = vmatprep.subr.bf16.mxu0 0
  %142 = vmatpush1.bf16.msra.mxu0 0
  %143 = vmatprep.subr.bf16.mxu0 0
  %144 = vmatpush1.bf16.msra.mxu0 0
  %145 = vmatprep.mubr.bf16.mxu0 0
  %146 = vmatmul.mubr.bf16.gmra.mrb[0].mxu0 %v61
  %v147 = vpop.f32.mrb[0].mxu0
  %v148 = vadd.f32 0.0, %v147
  %v149 = vpop.f32.mrb[0].mxu0
  %v150 = vpop.f32.mrb[0].mxu0
  %v151 = vadd.f32 0.0, %v150
  %v152 = vpop.f32.mrb[0].mxu0
  %153 = vmatprep.mubr.bf16.mxu0 0
  %154 = vmatmul.mubr.bf16.gmra.mrb[0].mxu0 %v62
  %v155 = vpop.f32.mrb[0].mxu0
  %v156 = vadd.f32 0.0, %v155
  %v157 = vpop.f32.mrb[0].mxu0
  %v158 = vpop.f32.mrb[0].mxu0
  %v159 = vadd.f32 0.0, %v158
  %v160 = vpop.f32.mrb[0].mxu0
  %161 = vdwg.mxu0
  %v162 = vadd.f32 %v29, %v148
  %v163 = vadd.f32 %v30, %v151
  %v164 = vadd.f32 %v31, %v156
  %v165 = vadd.f32 %v32, %v159
  %166 = vst [vmem:[#allocation2] sm:$0xff] %v162
  %167 = vst [vmem:[#allocation2 + $0x8] sm:$0xff] %v163
  %168 = vst [vmem:[#allocation2 + $0x10] sm:$0xff] %v164
  %169 = vst [vmem:[#allocation2 + $0x18] sm:$0xff] %v165
  // Predicated region
  $region26: #{image_compressor_forward.27} parent=0 // pred_check
    %p170 = pneg %p21
  $region27: #{image_compressor_forward.27} parent=0 // pred_check_branch
    %172 = sbr.rel (%p170) target = $region29
  $region28: #{image_compressor_forward.27} parent=0 // pred_region
    %v173 = vld [vmem:[#allocation2] sm:$0xff]
    %v174 = vld [vmem:[#allocation2 + $0x8] sm:$0xff]
    %v175 = vld [vmem:[#allocation2 + $0x10] sm:$0xff]
    %v176 = vld [vmem:[#allocation2 + $0x18] sm:$0xff]
    %v177 = vld [vmem:[%s2] sm:$0x1]
    %v179 = vlaneseq
    %v180 = vshrl.u32 %v179, 7
    %v181 = vsub.s32 0, %v180
    %v182 = vrot.slane %v177, %v181
    %v184 = vadd.f32 %v173, %v182
    %v185 = vadd.f32 %v174, %v182
    %v186 = vadd.f32 %v175, %v182
    %v187 = vadd.f32 %v176, %v182
    %v188 = vmul.f32 %v184, %v184
    %v189 = vmul.f32 %v185, %v185
    %v190 = vmul.f32 %v186, %v186
    %v191 = vmul.f32 %v187, %v187
    %v192 = vld [vmem:[%s3] sm:$0xff]
    %v193 = vld [vmem:[%s3 + $0x8] sm:$0xff]
    %v194 = vld [vmem:[%s3 + $0x10] sm:$0xff]
    %v195 = vld [vmem:[%s3 + $0x18] sm:$0xff]
    %v196 = vld [vmem:[%s3 + $0x20] sm:$0xff]
    %v197 = vld [vmem:[%s3 + $0x28] sm:$0xff]
    %v198 = vld [vmem:[%s3 + $0x30] sm:$0xff]
    %v199 = vld [vmem:[%s3 + $0x38] sm:$0xff]
    %v200 = vld [vmem:[%s3 + $0x40] sm:$0xff]
    %v201 = vld [vmem:[%s3 + $0x48] sm:$0xff]
    %v202 = vld [vmem:[%s3 + $0x50] sm:$0xff]
    %v203 = vld [vmem:[%s3 + $0x58] sm:$0xff]
    %v204 = vld [vmem:[%s3 + $0x60] sm:$0xff]
    %v205 = vld [vmem:[%s3 + $0x68] sm:$0xff]
    %v206 = vld [vmem:[%s3 + $0x70] sm:$0xff]
    %v207 = vld [vmem:[%s3 + $0x78] sm:$0xff]
    %v208 = vld [vmem:[%s4] sm:$0x1]
    %v210 = vlaneseq
    %v211 = vshrl.u32 %v210, 7
    %v212 = vsub.s32 0, %v211
    %v213 = vrot.slane %v208, %v212
    %215 = vmatprep.subr.mxu0 0.0
    %216 = vmatpush1.msra.mxu0 %v192
    %217 = vmatprep.subr.mxu0 0.0
    %218 = vmatpush1.msra.mxu0 %v193
    %219 = vmatprep.subr.mxu0 0.0
    %220 = vmatpush1.msra.mxu0 %v194
    %221 = vmatprep.subr.mxu0 0.0
    %222 = vmatpush1.msra.mxu0 %v195
    %223 = vmatprep.subr.mxu0 0.0
    %224 = vmatpush1.msra.mxu0 %v196
    %225 = vmatprep.subr.mxu0 0.0
    %226 = vmatpush1.msra.mxu0 %v197
    %227 = vmatprep.subr.mxu0 0.0
    %228 = vmatpush1.msra.mxu0 %v198
    %229 = vmatprep.subr.mxu0 0.0
    %230 = vmatpush1.msra.mxu0 %v199
    %231 = vmatprep.subr.mxu0 0.0
    %232 = vmatpush1.msra.mxu0 %v200
    %233 = vmatprep.subr.mxu0 0.0
    %234 = vmatpush1.msra.mxu0 %v201
    %235 = vmatprep.subr.mxu0 0.0
    %236 = vmatpush1.msra.mxu0 %v202
    %237 = vmatprep.subr.mxu0 0.0
    %238 = vmatpush1.msra.mxu0 %v203
    %239 = vmatprep.subr.mxu0 0.0
    %240 = vmatpush1.msra.mxu0 %v204
    %241 = vmatprep.subr.mxu0 0.0
    %242 = vmatpush1.msra.mxu0 %v205
    %243 = vmatprep.subr.mxu0 0.0
    %244 = vmatpush1.msra.mxu0 %v206
    %245 = vmatprep.subr.mxu0 0.0
    %246 = vmatpush1.msra.mxu0 %v207
    %247 = vmatprep.subr.mxu0 0.0
    %248 = vmatpush1.msra.mxu0 0.0
    %249 = vmatprep.subr.mxu0 0.0
    %250 = vmatpush1.msra.mxu0 0.0
    %251 = vmatprep.subr.mxu0 0.0
    %252 = vmatpush1.msra.mxu0 0.0
    %253 = vmatprep.subr.mxu0 0.0
    %254 = vmatpush1.msra.mxu0 0.0
    %255 = vmatprep.subr.mxu0 0.0
    %256 = vmatpush1.msra.mxu0 0.0
    %257 = vmatprep.subr.mxu0 0.0
    %258 = vmatpush1.msra.mxu0 0.0
    %259 = vmatprep.subr.mxu0 0.0
    %260 = vmatpush1.msra.mxu0 0.0
    %261 = vmatprep.subr.mxu0 0.0
    %262 = vmatpush1.msra.mxu0 0.0
    %263 = vmatprep.subr.mxu0 0.0
    %264 = vmatpush1.msra.mxu0 0.0
    %265 = vmatprep.subr.mxu0 0.0
    %266 = vmatpush1.msra.mxu0 0.0
    %267 = vmatprep.subr.mxu0 0.0
    %268 = vmatpush1.msra.mxu0 0.0
    %269 = vmatprep.subr.mxu0 0.0
    %270 = vmatpush1.msra.mxu0 0.0
    %271 = vmatprep.subr.mxu0 0.0
    %272 = vmatpush1.msra.mxu0 0.0
    %273 = vmatprep.subr.mxu0 0.0
    %274 = vmatpush1.msra.mxu0 0.0
    %275 = vmatprep.subr.mxu0 0.0
    %276 = vmatpush1.msra.mxu0 0.0
    %277 = vmatprep.subr.mxu0 0.0
    %278 = vmatpush1.msra.mxu0 0.0
    %279 = vmatprep.mubr.f32.mxu0 0.0
    %280 = vmatmul.mubr.f32.gmra.mrb[0].mxu0 %v188
    %v281 = vpop.f32.mrb[0].mxu0
    %v282 = vadd.f32 %v213, %v281
    %v283 = vpop.f32.mrb[0].mxu0
    %284 = vmatprep.mubr.f32.mxu0 0.0
    %285 = vmatmul.mubr.f32.gmra.mrb[0].mxu0 %v189
    %v286 = vpop.f32.mrb[0].mxu0
    %v287 = vadd.f32 %v213, %v286
    %v288 = vpop.f32.mrb[0].mxu0
    %289 = vmatprep.mubr.f32.mxu0 0.0
    %290 = vmatmul.mubr.f32.gmra.mrb[0].mxu0 %v190
    %v291 = vpop.f32.mrb[0].mxu0
    %v292 = vadd.f32 %v213, %v291
    %v293 = vpop.f32.mrb[0].mxu0
    %294 = vmatprep.mubr.f32.mxu0 0.0
    %295 = vmatmul.mubr.f32.gmra.mrb[0].mxu0 %v191
    %v296 = vpop.f32.mrb[0].mxu0
    %v297 = vadd.f32 %v213, %v296
    %v298 = vpop.f32.mrb[0].mxu0
    %299 = vdwg.mxu0
    %v300 = vrsqrt.pop %v282
    %v301 = vmul.f32 %v282, %v300
    %vm302 = vcmp.eq.f32.partialorder %v282, inf
    %v303 = vsel %vm302, %v282, %v301
    %vm304 = vcmp.eq.f32.partialorder %v282, 0.0
    %v305 = vand.u32 %v282, 2147483648
    %v306 = vsel %vm304, %v305, %v303
    %v307 = vrsqrt.pop %v287
    %v308 = vmul.f32 %v287, %v307
    %vm309 = vcmp.eq.f32.partialorder %v287, inf
    %v310 = vsel %vm309, %v287, %v308
    %vm311 = vcmp.eq.f32.partialorder %v287, 0.0
    %v312 = vand.u32 %v287, 2147483648
    %v313 = vsel %vm311, %v312, %v310
    %v314 = vrsqrt.pop %v292
    %v315 = vmul.f32 %v292, %v314
    %vm316 = vcmp.eq.f32.partialorder %v292, inf
    %v317 = vsel %vm316, %v292, %v315
    %vm318 = vcmp.eq.f32.partialorder %v292, 0.0
    %v319 = vand.u32 %v292, 2147483648
    %v320 = vsel %vm318, %v319, %v317
    %v321 = vrsqrt.pop %v297
    %v322 = vmul.f32 %v297, %v321
    %vm323 = vcmp.eq.f32.partialorder %v297, inf
    %v324 = vsel %vm323, %v297, %v322
    %vm325 = vcmp.eq.f32.partialorder %v297, 0.0
    %v326 = vand.u32 %v297, 2147483648
    %v327 = vsel %vm325, %v326, %v324
    %v328 = vmul.f32 %v184, %v306
    %v329 = vmul.f32 %v185, %v313
    %v330 = vmul.f32 %v186, %v320
    %v331 = vmul.f32 %v187, %v327
    %332 = vst [vmem:[%s5] sm:$0xff] %v328
    %333 = vst [vmem:[%s5 + $0x8] sm:$0xff] %v329
    %334 = vst [vmem:[%s5 + $0x10] sm:$0xff] %v330
    %335 = vst [vmem:[%s5 + $0x18] sm:$0xff] %v331
  $region29: #{image_compressor_forward.27} parent=0 // pred_fallthru
    _
  // Predicated region
  $region30: #{image_compressor_forward.27} parent=0 // pred_check
    _
  $region31: #{image_compressor_forward.27} parent=0 // pred_check_branch
    %337 = sbr.rel (0) target = $region33
  $region32: #{image_compressor_forward.27} parent=0 // pred_region
    _
  $region33: #{image_compressor_forward.27} parent=0 // pred_fallthru
    _
  // Predicated region
  $region34: #{image_compressor_forward.27} parent=0 // pred_check
    _
  $region35: #{image_compressor_forward.27} parent=0 // pred_check_branch
    %339 = sbr.rel (0) target = $region37
  $region36: #{image_compressor_forward.27} parent=0 // pred_region
    _
  $region37: #{image_compressor_forward.27} parent=0 // pred_fallthru
    _

// kernel: tile.117
$region0: #{tile.117}
  #allocation0 [shape = 's32[1]{0}', space=sflag, size = 0x4, scoped, tag = 'scoped memory for tile.117']
  %s0 = inlined_call_operand.vmem [shape: f32[3], index: 0, kind: input, shape index: {}]
  %s1 = inlined_call_operand.vmem [shape: f32[9,3], index: 1, kind: output, shape index: {}]
  // Predicated region
  $region2: #{tile.117} parent=0 // pred_check
    _
  $region3: #{tile.117} parent=0 // pred_check_branch
    %3 = sbr.rel (0) target = $region5
  $region4: #{tile.117} parent=0 // pred_region
    _
  $region5: #{tile.117} parent=0 // pred_fallthru
    _
  %v4 = vld [vmem:[%s0] ss:$0 sm:$0xff]
  %5 = vst [vmem:[%s1] sm:$0xff] %v4
  %s6 = scalar_lea.vmem %s1, 8
  %7 = vst [vmem:[%s6] sm:$0xff] %v4

// kernel: tile.118
$region0: #{tile.118}
  %s0 = inlined_call_operand.vmem [shape: f32[9,3], index: 0, kind: input, shape index: {}]
  %s1 = inlined_call_operand.vmem [shape: f32[1,27], index: 1, kind: output, shape index: {}]
  $region1: #{tile.118} parent=0
    #allocation0 [shape = 'u8[4096]{0}', space=vmem, size = 0x1000, scoped, tag = 'scoped mem for output reshape']
    %v2 = vld [vmem:[%s0] sm:$0x1]
    %vm3 = vcmask 23552
    %4 = vst.msk [vmem:[#allocation0] sm:$0x1] %vm3, %v2
    %s5 = scalar_lea.vmem %s0, 8
    %v6 = vld [vmem:[%s5] sm:$0x1]
    %7 = vrot.lane.b32.xlu0 %v6, 24
    %v8 = vpop.permute.xlu0 %7
    %vm9 = vcmask 220352
    %10 = vst.msk [vmem:[#allocation0] sm:$0x1] %vm9, %v8
    %s11 = scalar_lea.vmem %s0, 7
    %v12 = vld [vmem:[%s11] sm:$0x1]
    %13 = vrot.lane.b32.xlu0 %v12, 21
    %v14 = vpop.permute.xlu0 %13
    %vm15 = vcmask 195752
    %16 = vst.msk [vmem:[#allocation0] sm:$0x1] %vm15, %v14
    %s17 = scalar_lea.vmem %s0, 6
    %v18 = vld [vmem:[%s17] sm:$0x1]
    %19 = vrot.lane.b32.xlu0 %v18, 18
    %v20 = vpop.permute.xlu0 %19
    %vm21 = vcmask 171152
    %22 = vst.msk [vmem:[#allocation0] sm:$0x1] %vm21, %v20
    %s23 = scalar_lea.vmem %s0, 5
    %v24 = vld [vmem:[%s23] sm:$0x1]
    %25 = vrot.lane.b32.xlu0 %v24, 15
    %v26 = vpop.permute.xlu0 %25
    %vm27 = vcmask 146552
    %28 = vst.msk [vmem:[#allocation0] sm:$0x1] %vm27, %v26
    %s29 = scalar_lea.vmem %s0, 4
    %v30 = vld [vmem:[%s29] sm:$0x1]
    %31 = vrot.lane.b32.xlu0 %v30, 12
    %v32 = vpop.permute.xlu0 %31
    %vm33 = vcmask 121952
    %34 = vst.msk [vmem:[#allocation0] sm:$0x1] %vm33, %v32
    %s35 = scalar_lea.vmem %s0, 3
    %v36 = vld [vmem:[%s35] sm:$0x1]
    %37 = vrot.lane.b32.xlu0 %v36, 9
    %v38 = vpop.permute.xlu0 %37
    %vm39 = vcmask 97352
    %40 = vst.msk [vmem:[#allocation0] sm:$0x1] %vm39, %v38
    %s41 = scalar_lea.vmem %s0, 2
    %v42 = vld [vmem:[%s41] sm:$0x1]
    %43 = vrot.lane.b32.xlu0 %v42, 6
    %v44 = vpop.permute.xlu0 %43
    %vm45 = vcmask 72752
    %46 = vst.msk [vmem:[#allocation0] sm:$0x1] %vm45, %v44
    %s47 = scalar_lea.vmem %s0, 1
    %v48 = vld [vmem:[%s47] sm:$0x1]
    %49 = vrot.lane.b32.xlu0 %v48, 3
    %v50 = vpop.permute.xlu0 %49
    %vm51 = vcmask 48152
    %52 = vst.msk [vmem:[#allocation0] sm:$0x1] %vm51, %v50
    %s54 = sshllo.u32 0, 1
    %v56 = vld [vmem:[#allocation0] sm:%s54]
    %s57 = sshllo.u32 0, 1
    %58 = vst [vmem:[%s1] sm:%s57] %v56

// kernel: image_compressor_forward.31
$region0: #{image_compressor_forward.31}
  #allocation0 [shape = 'u32[]', space=smem, size = 0x4, offset = 0x4, fixed_abs, tag = 'smem constant byte address 0x4 - core index']
  #allocation1 [shape = 'u32[144,128]{1,0:T(1,128)}', space=vmem, size = 0x12000, scoped, tag = 'internal scratch']
  #allocation2 [shape = 'f32[128,128]{1,0:T(8,128)}', space=vmem, size = 0x10000, scoped, tag = 'scratch operand']
  %s0 = inlined_call_operand.vmem [shape: bf16[128,128], index: 0, kind: input, shape index: {}]
  %s1 = inlined_call_operand.vmem [shape: bf16[128,128], index: 1, kind: input, shape index: {}]
  %s2 = inlined_call_operand.vmem [shape: f32[1,128], index: 2, kind: input, shape index: {}]
  %s3 = inlined_call_operand.vmem [shape: f32[128,128], index: 3, kind: output, shape index: {}]
  %s4 = sld [smem:[#allocation0]]
  $region30: #{image_compressor_forward.31} parent=0
    _
  %s6 = ssub.s32 1, %s4
  %s7 = scalar_select 0, %s6, %s4
  // Predicated region
  $region2: #{image_compressor_forward.31} parent=0 // pred_check
    _
  $region3: #{image_compressor_forward.31} parent=0 // pred_check_branch
    %9 = sbr.rel (0) target = $region5
  $region4: #{image_compressor_forward.31} parent=0 // pred_region
    _
  $region5: #{image_compressor_forward.31} parent=0 // pred_fallthru
    _
  // Predicated region
  $region6: #{image_compressor_forward.31} parent=0 // pred_check
    _
  $region7: #{image_compressor_forward.31} parent=0 // pred_check_branch
    %11 = sbr.rel (0) target = $region9
  $region8: #{image_compressor_forward.31} parent=0 // pred_region
    _
  $region9: #{image_compressor_forward.31} parent=0 // pred_fallthru
    _
  // Predicated region
  $region10: #{image_compressor_forward.31} parent=0 // pred_check
    _
  $region11: #{image_compressor_forward.31} parent=0 // pred_check_branch
    %13 = sbr.rel (0) target = $region13
  $region12: #{image_compressor_forward.31} parent=0 // pred_region
    _
  $region13: #{image_compressor_forward.31} parent=0 // pred_fallthru
    _
  %p15 = scmp.eq.s32.totalorder 0, 0
  // Predicated region
  $region14: #{image_compressor_forward.31} parent=0 // pred_check
    %p16 = pneg %p15
  $region15: #{image_compressor_forward.31} parent=0 // pred_check_branch
    %18 = sbr.rel (%p16) target = $region17
  $region16: #{image_compressor_forward.31} parent=0 // pred_region
    %19 = vst [vmem:[#allocation2] sm:$0xff] 0.0
    %20 = vst [vmem:[#allocation2 + $0x8] sm:$0xff] 0.0
    %21 = vst [vmem:[#allocation2 + $0x10] sm:$0xff] 0.0
    %22 = vst [vmem:[#allocation2 + $0x18] sm:$0xff] 0.0
    %23 = vst [vmem:[#allocation2 + $0x20] sm:$0xff] 0.0
    %24 = vst [vmem:[#allocation2 + $0x28] sm:$0xff] 0.0
    %25 = vst [vmem:[#allocation2 + $0x30] sm:$0xff] 0.0
    %26 = vst [vmem:[#allocation2 + $0x38] sm:$0xff] 0.0
    %27 = vst [vmem:[#allocation2 + $0x40] sm:$0xff] 0.0
    %28 = vst [vmem:[#allocation2 + $0x48] sm:$0xff] 0.0
    %29 = vst [vmem:[#allocation2 + $0x50] sm:$0xff] 0.0
    %30 = vst [vmem:[#allocation2 + $0x58] sm:$0xff] 0.0
    %31 = vst [vmem:[#allocation2 + $0x60] sm:$0xff] 0.0
    %32 = vst [vmem:[#allocation2 + $0x68] sm:$0xff] 0.0
    %33 = vst [vmem:[#allocation2 + $0x70] sm:$0xff] 0.0
    %34 = vst [vmem:[#allocation2 + $0x78] sm:$0xff] 0.0
  $region17: #{image_compressor_forward.31} parent=0 // pred_fallthru
    _
  %v35 = vld [vmem:[#allocation2] sm:$0xff]
  %v36 = vld [vmem:[#allocation2 + $0x8] sm:$0xff]
  %v37 = vld [vmem:[#allocation2 + $0x10] sm:$0xff]
  %v38 = vld [vmem:[#allocation2 + $0x18] sm:$0xff]
  %v39 = vld [vmem:[#allocation2 + $0x20] sm:$0xff]
  %v40 = vld [vmem:[#allocation2 + $0x28] sm:$0xff]
  %v41 = vld [vmem:[#allocation2 + $0x30] sm:$0xff]
  %v42 = vld [vmem:[#allocation2 + $0x38] sm:$0xff]
  %v43 = vld [vmem:[#allocation2 + $0x40] sm:$0xff]
  %v44 = vld [vmem:[#allocation2 + $0x48] sm:$0xff]
  %v45 = vld [vmem:[#allocation2 + $0x50] sm:$0xff]
  %v46 = vld [vmem:[#allocation2 + $0x58] sm:$0xff]
  %v47 = vld [vmem:[#allocation2 + $0x60] sm:$0xff]
  %v48 = vld [vmem:[#allocation2 + $0x68] sm:$0xff]
  %v49 = vld [vmem:[#allocation2 + $0x70] sm:$0xff]
  %v50 = vld [vmem:[#allocation2 + $0x78] sm:$0xff]
  %v51 = vld [vmem:[%s0] sm:$0xf]
  %v52 = vld [vmem:[%s0 + $0x4] sm:$0xf]
  %v53 = vld [vmem:[%s0 + $0x8] sm:$0xf]
  %v54 = vld [vmem:[%s0 + $0xc] sm:$0xf]
  %v55 = vld [vmem:[%s0 + $0x10] sm:$0xf]
  %v56 = vld [vmem:[%s0 + $0x14] sm:$0xf]
  %v57 = vld [vmem:[%s0 + $0x18] sm:$0xf]
  %v58 = vld [vmem:[%s0 + $0x1c] sm:$0xf]
  %v59 = vld [vmem:[%s0 + $0x20] sm:$0xf]
  %v60 = vld [vmem:[%s0 + $0x24] sm:$0xf]
  %v61 = vld [vmem:[%s0 + $0x28] sm:$0xf]
  %v62 = vld [vmem:[%s0 + $0x2c] sm:$0xf]
  %v63 = vld [vmem:[%s0 + $0x30] sm:$0xf]
  %v64 = vld [vmem:[%s0 + $0x34] sm:$0xf]
  %v65 = vld [vmem:[%s0 + $0x38] sm:$0xf]
  %v66 = vld [vmem:[%s0 + $0x3c] sm:$0xf]
  %v67 = vld [vmem:[%s1] sm:$0xf]
  %v68 = vld [vmem:[%s1 + $0x4] sm:$0xf]
  %v69 = vld [vmem:[%s1 + $0x8] sm:$0xf]
  %v70 = vld [vmem:[%s1 + $0xc] sm:$0xf]
  %v71 = vld [vmem:[%s1 + $0x10] sm:$0xf]
  %v72 = vld [vmem:[%s1 + $0x14] sm:$0xf]
  %v73 = vld [vmem:[%s1 + $0x18] sm:$0xf]
  %v74 = vld [vmem:[%s1 + $0x1c] sm:$0xf]
  %v75 = vld [vmem:[%s1 + $0x20] sm:$0xf]
  %v76 = vld [vmem:[%s1 + $0x24] sm:$0xf]
  %v77 = vld [vmem:[%s1 + $0x28] sm:$0xf]
  %v78 = vld [vmem:[%s1 + $0x2c] sm:$0xf]
  %v79 = vld [vmem:[%s1 + $0x30] sm:$0xf]
  %v80 = vld [vmem:[%s1 + $0x34] sm:$0xf]
  %v81 = vld [vmem:[%s1 + $0x38] sm:$0xf]
  %v82 = vld [vmem:[%s1 + $0x3c] sm:$0xf]
  %v99 = vunpack.c.l.b16 %v51
  %v100 = vunpack.c.l.b16 %v52
  %v101 = vunpack.c.l.b16 %v53
  %v102 = vunpack.c.l.b16 %v54
  %v103 = vunpack.c.l.b16 %v55
  %v104 = vunpack.c.l.b16 %v56
  %v105 = vunpack.c.l.b16 %v57
  %v106 = vunpack.c.l.b16 %v58
  %v107 = vunpack.c.l.b16 %v59
  %v108 = vunpack.c.l.b16 %v60
  %v109 = vunpack.c.l.b16 %v61
  %v110 = vunpack.c.l.b16 %v62
  %v111 = vunpack.c.l.b16 %v63
  %v112 = vunpack.c.l.b16 %v64
  %v113 = vunpack.c.l.b16 %v65
  %v114 = vunpack.c.l.b16 %v66
  %v115 = vpack.c.b16 %v100, %v99
  %v116 = vpack.c.b16 %v102, %v101
  %v117 = vpack.c.b16 %v104, %v103
  %v118 = vpack.c.b16 %v106, %v105
  %v119 = vpack.c.b16 %v108, %v107
  %v120 = vpack.c.b16 %v110, %v109
  %v121 = vpack.c.b16 %v112, %v111
  %v122 = vpack.c.b16 %v114, %v113
  %v147 = vunpack.c.l.b16 %v67
  %v148 = vunpack.c.l.b16 %v68
  %v149 = vunpack.c.l.b16 %v69
  %v150 = vunpack.c.l.b16 %v70
  %v151 = vunpack.c.l.b16 %v71
  %v152 = vunpack.c.l.b16 %v72
  %v153 = vunpack.c.l.b16 %v73
  %v154 = vunpack.c.l.b16 %v74
  %v155 = vunpack.c.l.b16 %v75
  %v156 = vunpack.c.l.b16 %v76
  %v157 = vunpack.c.l.b16 %v77
  %v158 = vunpack.c.l.b16 %v78
  %v159 = vunpack.c.l.b16 %v79
  %v160 = vunpack.c.l.b16 %v80
  %v161 = vunpack.c.l.b16 %v81
  %v162 = vunpack.c.l.b16 %v82
  %v163 = vpack.c.b16 %v148, %v147
  %v164 = vpack.c.b16 %v150, %v149
  %v165 = vpack.c.b16 %v152, %v151
  %v166 = vpack.c.b16 %v154, %v153
  %v167 = vpack.c.b16 %v156, %v155
  %v168 = vpack.c.b16 %v158, %v157
  %v169 = vpack.c.b16 %v160, %v159
  %v170 = vpack.c.b16 %v162, %v161
  %179 = vmatprep.subr.bf16.mxu0 0
  %180 = vmatpush1.bf16.msra.mxu0 %v163
  %181 = vmatprep.subr.bf16.mxu0 0
  %182 = vmatpush1.bf16.msra.mxu0 %v164
  %183 = vmatprep.subr.bf16.mxu0 0
  %184 = vmatpush1.bf16.msra.mxu0 %v165
  %185 = vmatprep.subr.bf16.mxu0 0
  %186 = vmatpush1.bf16.msra.mxu0 %v166
  %187 = vmatprep.subr.bf16.mxu0 0
  %188 = vmatpush1.bf16.msra.mxu0 %v167
  %189 = vmatprep.subr.bf16.mxu0 0
  %190 = vmatpush1.bf16.msra.mxu0 %v168
  %191 = vmatprep.subr.bf16.mxu0 0
  %192 = vmatpush1.bf16.msra.mxu0 %v169
  %193 = vmatprep.subr.bf16.mxu0 0
  %194 = vmatpush1.bf16.msra.mxu0 %v170
  %195 = vmatprep.subr.bf16.mxu0 0
  %196 = vmatpush1.bf16.msra.mxu0 0
  %197 = vmatprep.subr.bf16.mxu0 0
  %198 = vmatpush1.bf16.msra.mxu0 0
  %199 = vmatprep.subr.bf16.mxu0 0
  %200 = vmatpush1.bf16.msra.mxu0 0
  %201 = vmatprep.subr.bf16.mxu0 0
  %202 = vmatpush1.bf16.msra.mxu0 0
  %203 = vmatprep.subr.bf16.mxu0 0
  %204 = vmatpush1.bf16.msra.mxu0 0
  %205 = vmatprep.subr.bf16.mxu0 0
  %206 = vmatpush1.bf16.msra.mxu0 0
  %207 = vmatprep.subr.bf16.mxu0 0
  %208 = vmatpush1.bf16.msra.mxu0 0
  %209 = vmatprep.subr.bf16.mxu0 0
  %210 = vmatpush1.bf16.msra.mxu0 0
  %211 = vmatprep.mubr.bf16.mxu0 0
  %212 = vmatmul.mubr.bf16.gmra.mrb[0].mxu0 %v115
  %v213 = vpop.f32.mrb[0].mxu0
  %v214 = vadd.f32 0.0, %v213
  %v215 = vpop.f32.mrb[0].mxu0
  %v216 = vpop.f32.mrb[0].mxu0
  %v217 = vadd.f32 0.0, %v216
  %v218 = vpop.f32.mrb[0].mxu0
  %219 = vmatprep.mubr.bf16.mxu0 0
  %220 = vmatmul.mubr.bf16.gmra.mrb[0].mxu0 %v116
  %v221 = vpop.f32.mrb[0].mxu0
  %v222 = vadd.f32 0.0, %v221
  %v223 = vpop.f32.mrb[0].mxu0
  %v224 = vpop.f32.mrb[0].mxu0
  %v225 = vadd.f32 0.0, %v224
  %v226 = vpop.f32.mrb[0].mxu0
  %227 = vmatprep.mubr.bf16.mxu0 0
  %228 = vmatmul.mubr.bf16.gmra.mrb[0].mxu0 %v117
  %v229 = vpop.f32.mrb[0].mxu0
  %v230 = vadd.f32 0.0, %v229
  %v231 = vpop.f32.mrb[0].mxu0
  %v232 = vpop.f32.mrb[0].mxu0
  %v233 = vadd.f32 0.0, %v232
  %v234 = vpop.f32.mrb[0].mxu0
  %235 = vmatprep.mubr.bf16.mxu0 0
  %236 = vmatmul.mubr.bf16.gmra.mrb[0].mxu0 %v118
  %v237 = vpop.f32.mrb[0].mxu0
  %v238 = vadd.f32 0.0, %v237
  %v239 = vpop.f32.mrb[0].mxu0
  %v240 = vpop.f32.mrb[0].mxu0
  %v241 = vadd.f32 0.0, %v240
  %v242 = vpop.f32.mrb[0].mxu0
  %243 = vmatprep.mubr.bf16.mxu0 0
  %244 = vmatmul.mubr.bf16.gmra.mrb[0].mxu0 %v119
  %v245 = vpop.f32.mrb[0].mxu0
  %v246 = vadd.f32 0.0, %v245
  %v247 = vpop.f32.mrb[0].mxu0
  %v248 = vpop.f32.mrb[0].mxu0
  %v249 = vadd.f32 0.0, %v248
  %v250 = vpop.f32.mrb[0].mxu0
  %251 = vmatprep.mubr.bf16.mxu0 0
  %252 = vmatmul.mubr.bf16.gmra.mrb[0].mxu0 %v120
  %v253 = vpop.f32.mrb[0].mxu0
  %v254 = vadd.f32 0.0, %v253
  %v255 = vpop.f32.mrb[0].mxu0
  %v256 = vpop.f32.mrb[0].mxu0
  %v257 = vadd.f32 0.0, %v256
  %v258 = vpop.f32.mrb[0].mxu0
  %259 = vmatprep.mubr.bf16.mxu0 0
  %260 = vmatmul.mubr.bf16.gmra.mrb[0].mxu0 %v121
  %v261 = vpop.f32.mrb[0].mxu0
  %v262 = vadd.f32 0.0, %v261
  %v263 = vpop.f32.mrb[0].mxu0
  %v264 = vpop.f32.mrb[0].mxu0
  %v265 = vadd.f32 0.0, %v264
  %v266 = vpop.f32.mrb[0].mxu0
  %267 = vmatprep.mubr.bf16.mxu0 0
  %268 = vmatmul.mubr.bf16.gmra.mrb[0].mxu0 %v122
  %v269 = vpop.f32.mrb[0].mxu0
  %v270 = vadd.f32 0.0, %v269
  %v271 = vpop.f32.mrb[0].mxu0
  %v272 = vpop.f32.mrb[0].mxu0
  %v273 = vadd.f32 0.0, %v272
  %v274 = vpop.f32.mrb[0].mxu0
  %275 = vdwg.mxu0
  %v276 = vadd.f32 %v35, %v214
  %v277 = vadd.f32 %v36, %v217
  %v278 = vadd.f32 %v37, %v222
  %v279 = vadd.f32 %v38, %v225
  %v280 = vadd.f32 %v39, %v230
  %v281 = vadd.f32 %v40, %v233
  %v282 = vadd.f32 %v41, %v238
  %v283 = vadd.f32 %v42, %v241
  %v284 = vadd.f32 %v43, %v246
  %v285 = vadd.f32 %v44, %v249
  %v286 = vadd.f32 %v45, %v254
  %v287 = vadd.f32 %v46, %v257
  %v288 = vadd.f32 %v47, %v262
  %v289 = vadd.f32 %v48, %v265
  %v290 = vadd.f32 %v49, %v270
  %v291 = vadd.f32 %v50, %v273
  %292 = vst [vmem:[#allocation2] sm:$0xff] %v276
  %293 = vst [vmem:[#allocation2 + $0x8] sm:$0xff] %v277
  %294 = vst [vmem:[#allocation2 + $0x10] sm:$0xff] %v278
  %295 = vst [vmem:[#allocation2 + $0x18] sm:$0xff] %v279
  %296 = vst [vmem:[#allocation2 + $0x20] sm:$0xff] %v280
  %297 = vst [vmem:[#allocation2 + $0x28] sm:$0xff] %v281
  %298 = vst [vmem:[#allocation2 + $0x30] sm:$0xff] %v282
  %299 = vst [vmem:[#allocation2 + $0x38] sm:$0xff] %v283
  %300 = vst [vmem:[#allocation2 + $0x40] sm:$0xff] %v284
  %301 = vst [vmem:[#allocation2 + $0x48] sm:$0xff] %v285
  %302 = vst [vmem:[#allocation2 + $0x50] sm:$0xff] %v286
  %303 = vst [vmem:[#allocation2 + $0x58] sm:$0xff] %v287
  %304 = vst [vmem:[#allocation2 + $0x60] sm:$0xff] %v288
  %305 = vst [vmem:[#allocation2 + $0x68] sm:$0xff] %v289
  %306 = vst [vmem:[#allocation2 + $0x70] sm:$0xff] %v290
  %307 = vst [vmem:[#allocation2 + $0x78] sm:$0xff] %v291
  // Predicated region
  $region18: #{image_compressor_forward.31} parent=0 // pred_check
    %p308 = pneg %p15
  $region19: #{image_compressor_forward.31} parent=0 // pred_check_branch
    %310 = sbr.rel (%p308) target = $region21
  $region20: #{image_compressor_forward.31} parent=0 // pred_region
    %v311 = vld [vmem:[#allocation2] sm:$0xff]
    %v312 = vld [vmem:[#allocation2 + $0x8] sm:$0xff]
    %v313 = vld [vmem:[#allocation2 + $0x10] sm:$0xff]
    %v314 = vld [vmem:[#allocation2 + $0x18] sm:$0xff]
    %v315 = vld [vmem:[#allocation2 + $0x20] sm:$0xff]
    %v316 = vld [vmem:[#allocation2 + $0x28] sm:$0xff]
    %v317 = vld [vmem:[#allocation2 + $0x30] sm:$0xff]
    %v318 = vld [vmem:[#allocation2 + $0x38] sm:$0xff]
    %v319 = vld [vmem:[#allocation2 + $0x40] sm:$0xff]
    %v320 = vld [vmem:[#allocation2 + $0x48] sm:$0xff]
    %v321 = vld [vmem:[#allocation2 + $0x50] sm:$0xff]
    %v322 = vld [vmem:[#allocation2 + $0x58] sm:$0xff]
    %v323 = vld [vmem:[#allocation2 + $0x60] sm:$0xff]
    %v324 = vld [vmem:[#allocation2 + $0x68] sm:$0xff]
    %v325 = vld [vmem:[#allocation2 + $0x70] sm:$0xff]
    %v326 = vld [vmem:[#allocation2 + $0x78] sm:$0xff]
    %v327 = vld [vmem:[%s2] sm:$0x1]
    %v329 = vlaneseq
    %v330 = vshrl.u32 %v329, 7
    %v331 = vsub.s32 0, %v330
    %v332 = vrot.slane %v327, %v331
    %v334 = vadd.f32 %v311, %v332
    %v335 = vadd.f32 %v312, %v332
    %v336 = vadd.f32 %v313, %v332
    %v337 = vadd.f32 %v314, %v332
    %v338 = vadd.f32 %v315, %v332
    %v339 = vadd.f32 %v316, %v332
    %v340 = vadd.f32 %v317, %v332
    %v341 = vadd.f32 %v318, %v332
    %v342 = vadd.f32 %v319, %v332
    %v343 = vadd.f32 %v320, %v332
    %v344 = vadd.f32 %v321, %v332
    %v345 = vadd.f32 %v322, %v332
    %v346 = vadd.f32 %v323, %v332
    %v347 = vadd.f32 %v324, %v332
    %v348 = vadd.f32 %v325, %v332
    %v349 = vadd.f32 %v326, %v332
    %350 = vst [vmem:[%s3] sm:$0xff] %v334
    %351 = vst [vmem:[%s3 + $0x8] sm:$0xff] %v335
    %352 = vst [vmem:[%s3 + $0x10] sm:$0xff] %v336
    %353 = vst [vmem:[%s3 + $0x18] sm:$0xff] %v337
    %354 = vst [vmem:[%s3 + $0x20] sm:$0xff] %v338
    %355 = vst [vmem:[%s3 + $0x28] sm:$0xff] %v339
    %356 = vst [vmem:[%s3 + $0x30] sm:$0xff] %v340
    %357 = vst [vmem:[%s3 + $0x38] sm:$0xff] %v341
    %358 = vst [vmem:[%s3 + $0x40] sm:$0xff] %v342
    %359 = vst [vmem:[%s3 + $0x48] sm:$0xff] %v343
    %360 = vst [vmem:[%s3 + $0x50] sm:$0xff] %v344
    %361 = vst [vmem:[%s3 + $0x58] sm:$0xff] %v345
    %362 = vst [vmem:[%s3 + $0x60] sm:$0xff] %v346
    %363 = vst [vmem:[%s3 + $0x68] sm:$0xff] %v347
    %364 = vst [vmem:[%s3 + $0x70] sm:$0xff] %v348
    %365 = vst [vmem:[%s3 + $0x78] sm:$0xff] %v349
  $region21: #{image_compressor_forward.31} parent=0 // pred_fallthru
    _
  // Predicated region
  $region22: #{image_compressor_forward.31} parent=0 // pred_check
    _
  $region23: #{image_compressor_forward.31} parent=0 // pred_check_branch
    %367 = sbr.rel (0) target = $region25
  $region24: #{image_compressor_forward.31} parent=0 // pred_region
    _
  $region25: #{image_compressor_forward.31} parent=0 // pred_fallthru
    _
  // Predicated region
  $region26: #{image_compressor_forward.31} parent=0 // pred_check
    _
  $region27: #{image_compressor_forward.31} parent=0 // pred_check_branch
    %369 = sbr.rel (0) target = $region29
  $region28: #{image_compressor_forward.31} parent=0 // pred_region
    _
  $region29: #{image_compressor_forward.31} parent=0 // pred_fallthru
    _

// kernel: tile.107
$region0: #{tile.107}
  #allocation0 [shape = 's32[1]{0}', space=sflag, size = 0x4, scoped, tag = 'scoped memory for tile.107']
  %s0 = inlined_call_operand.vmem [shape: f32[3], index: 0, kind: input, shape index: {}]
  %s1 = inlined_call_operand.vmem [shape: f32[3,3], index: 1, kind: output, shape index: {}]
  // Predicated region
  $region2: #{tile.107} parent=0 // pred_check
    _
  $region3: #{tile.107} parent=0 // pred_check_branch
    %3 = sbr.rel (0) target = $region5
  $region4: #{tile.107} parent=0 // pred_region
    _
  $region5: #{tile.107} parent=0 // pred_fallthru
    _
  %v4 = vld [vmem:[%s0] ss:$0 sm:$0xff]
  %5 = vst [vmem:[%s1] sm:$0xf] %v4

// kernel: tile.108
$region0: #{tile.108}
  %s0 = inlined_call_operand.vmem [shape: f32[3,3], index: 0, kind: input, shape index: {}]
  %s1 = inlined_call_operand.vmem [shape: f32[1,9], index: 1, kind: output, shape index: {}]
  $region1: #{tile.108} parent=0
    #allocation0 [shape = 'u8[4096]{0}', space=vmem, size = 0x1000, scoped, tag = 'scoped mem for output reshape']
    #allocation1 [shape = 'u8[4096]{0}', space=vmem, size = 0x1000, scoped, tag = 'scoped mem for input reshape']
    %s3 = sshllo.u32 0, 4
    %v4 = vld [vmem:[%s0] sm:%s3]
    %5 = vst [vmem:[#allocation1] sm:%s3] %v4
    %v6 = vld [vmem:[#allocation1] sm:$0x1]
    %vm7 = vcmask 23552
    %8 = vst.msk [vmem:[#allocation0] sm:$0x1] %vm7, %v6
    %s9 = scalar_lea.vmem [#allocation1], 2
    %v10 = vld [vmem:[%s9] sm:$0x1]
    %11 = vrot.lane.b32.xlu0 %v10, 6
    %v12 = vpop.permute.xlu0 %11
    %vm13 = vcmask 72752
    %14 = vst.msk [vmem:[#allocation0] sm:$0x1] %vm13, %v12
    %s15 = scalar_lea.vmem [#allocation1], 1
    %v16 = vld [vmem:[%s15] sm:$0x1]
    %17 = vrot.lane.b32.xlu0 %v16, 3
    %v18 = vpop.permute.xlu0 %17
    %vm19 = vcmask 48152
    %20 = vst.msk [vmem:[#allocation0] sm:$0x1] %vm19, %v18
    %s22 = sshllo.u32 0, 1
    %v24 = vld [vmem:[#allocation0] sm:%s22]
    %s25 = sshllo.u32 0, 1
    %26 = vst [vmem:[%s1] sm:%s25] %v24

// kernel: image_compressor_forward.32
$region0: #{image_compressor_forward.32}
  #allocation0 [shape = 'u32[]', space=smem, size = 0x4, offset = 0x4, fixed_abs, tag = 'smem constant byte address 0x4 - core index']
  #allocation1 [shape = 'u32[144,128]{1,0:T(1,128)}', space=vmem, size = 0x12000, scoped, tag = 'internal scratch']
  %s0 = inlined_call_operand.vmem [shape: f32[48,128], index: 0, kind: input, shape index: {}]
  %s1 = inlined_call_operand.vmem [shape: f32[48,128], index: 1, kind: input, shape index: {}]
  %s2 = inlined_call_operand.vmem [shape: f32[48,128], index: 2, kind: output, shape index: {0}]
  %s3 = inlined_call_operand.hbm [shape: f32[1,1], index: 3, kind: output, shape index: {1}]
  %4 = xla_tuple %s2, %s3
  %s5 = sld [smem:[#allocation0]]
  $region30: #{image_compressor_forward.32} parent=0
    _
  %s7 = ssub.s32 1, %s5
  %s8 = scalar_select 0, %s7, %s5
  $region1: #{image_compressor_forward.32} parent=0
    #allocation2 [shape = 'u8[512]{0}', space=vmem, size = 0x400, scoped, tag = 'output window, operand 1, single buffered']
    #allocation3 [shape = 's32[1]{0}', space=sflag, size = 0x4, scoped, tag = 'scoped memory for image_compressor_forward.32']
    %9 = vsyncpa [#allocation3], 0
    // Predicated region
    $region2: #{image_compressor_forward.32} parent=1 // pred_check
      _
    $region3: #{image_compressor_forward.32} parent=1 // pred_check_branch
      %11 = sbr.rel (0) target = $region5
    $region4: #{image_compressor_forward.32} parent=1 // pred_region
      _
    $region5: #{image_compressor_forward.32} parent=1 // pred_fallthru
      _
    // Predicated region
    $region6: #{image_compressor_forward.32} parent=1 // pred_check
      _
    $region7: #{image_compressor_forward.32} parent=1 // pred_check_branch
      %13 = sbr.rel (0) target = $region9
    $region8: #{image_compressor_forward.32} parent=1 // pred_region
      _
    $region9: #{image_compressor_forward.32} parent=1 // pred_fallthru
      _
    %v14 = vld [vmem:[%s0] sm:$0xff]
    %v15 = vld [vmem:[%s0 + $0x8] sm:$0xff]
    %v16 = vld [vmem:[%s0 + $0x10] sm:$0xff]
    %v17 = vld [vmem:[%s0 + $0x18] sm:$0xff]
    %v18 = vld [vmem:[%s0 + $0x20] sm:$0xff]
    %v19 = vld [vmem:[%s0 + $0x28] sm:$0xff]
    %v20 = vmax.f32 %v14, 0.0
    %v21 = vmax.f32 %v15, 0.0
    %v22 = vmax.f32 %v16, 0.0
    %v23 = vmax.f32 %v17, 0.0
    %v24 = vmax.f32 %v18, 0.0
    %v25 = vmax.f32 %v19, 0.0
    %v26 = vmin.f32 %v20, 1.0
    %v27 = vmin.f32 %v21, 1.0
    %v28 = vmin.f32 %v22, 1.0
    %v29 = vmin.f32 %v23, 1.0
    %v30 = vmin.f32 %v24, 1.0
    %v31 = vmin.f32 %v25, 1.0
    %32 = vst [vmem:[%s2] sm:$0xff] %v26
    %33 = vst [vmem:[%s2 + $0x8] sm:$0xff] %v27
    %34 = vst [vmem:[%s2 + $0x10] sm:$0xff] %v28
    %35 = vst [vmem:[%s2 + $0x18] sm:$0xff] %v29
    %36 = vst [vmem:[%s2 + $0x20] sm:$0xff] %v30
    %37 = vst [vmem:[%s2 + $0x28] sm:$0xff] %v31
    %v38 = vld [vmem:[%s1] sm:$0xff]
    %v39 = vld [vmem:[%s1 + $0x8] sm:$0xff]
    %v40 = vld [vmem:[%s1 + $0x10] sm:$0xff]
    %v41 = vld [vmem:[%s1 + $0x18] sm:$0xff]
    %v42 = vld [vmem:[%s1 + $0x20] sm:$0xff]
    %v43 = vld [vmem:[%s1 + $0x28] sm:$0xff]
    %v44 = vsub.f32 %v14, %v38
    %v45 = vsub.f32 %v15, %v39
    %v46 = vsub.f32 %v16, %v40
    %v47 = vsub.f32 %v17, %v41
    %v48 = vsub.f32 %v18, %v42
    %v49 = vsub.f32 %v19, %v43
    %v50 = vmul.f32 %v44, %v44
    %v51 = vmul.f32 %v45, %v45
    %v52 = vmul.f32 %v46, %v46
    %v53 = vmul.f32 %v47, %v47
    %v54 = vmul.f32 %v48, %v48
    %v55 = vmul.f32 %v49, %v49
    %v56 = vadd.f32 %v50, %v51
    %v57 = vadd.f32 %v56, %v52
    %v58 = vadd.f32 %v57, %v53
    %v59 = vadd.f32 %v58, %v54
    %v60 = vadd.f32 %v59, %v55
    %v61 = vrot.slane %v60, 4
    %v62 = vadd.f32 %v60, %v61
    %v63 = vrot.slane %v62, 2
    %v64 = vadd.f32 %v62, %v63
    %v65 = vrot.slane %v64, 1
    %v66 = vadd.f32 %v64, %v65
    %67 = vadd.xlane.f32.xlu0 %v66
    %v68 = vpop.xlane.xlu0 %67
    %p69 = scmp.eq.s32.totalorder 0, 0
    // Predicated region
    $region10: #{image_compressor_forward.32} parent=1 // pred_check
      %p70 = pneg %p69
    $region11: #{image_compressor_forward.32} parent=1 // pred_check_branch
      %72 = sbr.rel (%p70) target = $region13
    $region12: #{image_compressor_forward.32} parent=1 // pred_region
      %vm73 = vcmask 0
      %74 = vst.msk [vmem:[#allocation2] sm:$0x1] %vm73, 0.0
    $region13: #{image_compressor_forward.32} parent=1 // pred_fallthru
      _
    %v75 = vld [vmem:[#allocation2] sm:$0x1]
    %v76 = vadd.f32 %v75, %v68
    %vm77 = vcmask 0
    %78 = vst.msk [vmem:[#allocation2] sm:$0x1] %vm77, %v76
    // Predicated region
    $region14: #{image_compressor_forward.32} parent=1 // pred_check
      _
    $region15: #{image_compressor_forward.32} parent=1 // pred_check_branch
      %80 = sbr.rel (0) target = $region17
    $region16: #{image_compressor_forward.32} parent=1 // pred_region
      _
    $region17: #{image_compressor_forward.32} parent=1 // pred_fallthru
      _
    // Predicated region
    $region18: #{image_compressor_forward.32} parent=1 // pred_check
      _
    $region19: #{image_compressor_forward.32} parent=1 // pred_check_branch
      %82 = sbr.rel (0) target = $region21
    $region20: #{image_compressor_forward.32} parent=1 // pred_region
      %s84 = ssub.s32 16, 16
      %85 = vsyncadd [#allocation3], %s84
      %s87 = sshll.u32 [#allocation2], 4
      %s88 = int_to_ptr.vmem [resolvable:$true] %s87
      %90 = dma.vmem_to_hbm [thread:$0]  %s88, 16, %s3, [#allocation3]
    $region21: #{image_compressor_forward.32} parent=1 // pred_fallthru
      _
    // Predicated region
    $region22: #{image_compressor_forward.32} parent=1 // pred_check
      _
    $region23: #{image_compressor_forward.32} parent=1 // pred_check_branch
      %92 = sbr.rel (0) target = $region25
    $region24: #{image_compressor_forward.32} parent=1 // pred_region
      _
    $region25: #{image_compressor_forward.32} parent=1 // pred_fallthru
      _
    // Predicated region
    $region26: #{image_compressor_forward.32} parent=1 // pred_check
      _
    $region27: #{image_compressor_forward.32} parent=1 // pred_check_branch
      %94 = sbr.rel (0) target = $region29
    $region28: #{image_compressor_forward.32} parent=1 // pred_region
      %95 = dma.done [#allocation3], 16
    $region29: #{image_compressor_forward.32} parent=1 // pred_fallthru
      _
    %96 = vsyncpa [#allocation3], 1

// kernel: image_compressor_forward.33
$region0: #{image_compressor_forward.33}
  #allocation0 [shape = 'u32[]', space=smem, size = 0x4, offset = 0x4, fixed_abs, tag = 'smem constant byte address 0x4 - core index']
  #allocation1 [shape = 'u32[144,128]{1,0:T(1,128)}', space=vmem, size = 0x12000, scoped, tag = 'internal scratch']
  %s0 = inlined_call_operand.vmem [shape: f32[8,128], index: 0, kind: input, shape index: {}]
  %s1 = inlined_call_operand.vmem [shape: f32[1,128], index: 1, kind: input, shape index: {}]
  %s2 = inlined_call_operand.vmem [shape: f32[1,128], index: 2, kind: input, shape index: {}]
  %s3 = inlined_call_operand.vmem [shape: f32[1,128], index: 3, kind: input, shape index: {}]
  %s4 = inlined_call_operand.vmem [shape: f32[1,128], index: 4, kind: input, shape index: {}]
  %s5 = inlined_call_operand.vmem [shape: f32[1,128], index: 5, kind: input, shape index: {}]
  %s6 = inlined_call_operand.vmem [shape: f32[1,128], index: 6, kind: input, shape index: {}]
  %s7 = inlined_call_operand.vmem [shape: f32[1,128], index: 7, kind: input, shape index: {}]
  %s8 = inlined_call_operand.vmem [shape: f32[1,128], index: 8, kind: input, shape index: {}]
  %s9 = inlined_call_operand.vmem [shape: f32[1,128], index: 9, kind: input, shape index: {}]
  %s10 = inlined_call_operand.vmem [shape: f32[1,128], index: 10, kind: input, shape index: {}]
  %s11 = inlined_call_operand.vmem [shape: f32[1,128], index: 11, kind: input, shape index: {}]
  %s12 = inlined_call_operand.hbm [shape: f32[1,1], index: 12, kind: output, shape index: {}]
  %s13 = sld [smem:[#allocation0]]
  $region62: #{image_compressor_forward.33} parent=0
    _
  %s15 = ssub.s32 1, %s13
  %s16 = scalar_select 0, %s15, %s13
  $region1: #{image_compressor_forward.33} parent=0
    #allocation2 [shape = 'u8[512]{0}', space=vmem, size = 0x400, scoped, tag = 'output window, operand 0, single buffered']
    #allocation3 [shape = 's32[1]{0}', space=sflag, size = 0x4, scoped, tag = 'scoped memory for image_compressor_forward.33']
    %17 = vsyncpa [#allocation3], 0
    // Predicated region
    $region2: #{image_compressor_forward.33} parent=1 // pred_check
      _
    $region3: #{image_compressor_forward.33} parent=1 // pred_check_branch
      %19 = sbr.rel (0) target = $region5
    $region4: #{image_compressor_forward.33} parent=1 // pred_region
      _
    $region5: #{image_compressor_forward.33} parent=1 // pred_fallthru
      _
    // Predicated region
    $region6: #{image_compressor_forward.33} parent=1 // pred_check
      _
    $region7: #{image_compressor_forward.33} parent=1 // pred_check_branch
      %21 = sbr.rel (0) target = $region9
    $region8: #{image_compressor_forward.33} parent=1 // pred_region
      _
    $region9: #{image_compressor_forward.33} parent=1 // pred_fallthru
      _
    // Predicated region
    $region10: #{image_compressor_forward.33} parent=1 // pred_check
      _
    $region11: #{image_compressor_forward.33} parent=1 // pred_check_branch
      %23 = sbr.rel (0) target = $region13
    $region12: #{image_compressor_forward.33} parent=1 // pred_region
      _
    $region13: #{image_compressor_forward.33} parent=1 // pred_fallthru
      _
    // Predicated region
    $region14: #{image_compressor_forward.33} parent=1 // pred_check
      _
    $region15: #{image_compressor_forward.33} parent=1 // pred_check_branch
      %25 = sbr.rel (0) target = $region17
    $region16: #{image_compressor_forward.33} parent=1 // pred_region
      _
    $region17: #{image_compressor_forward.33} parent=1 // pred_fallthru
      _
    // Predicated region
    $region18: #{image_compressor_forward.33} parent=1 // pred_check
      _
    $region19: #{image_compressor_forward.33} parent=1 // pred_check_branch
      %27 = sbr.rel (0) target = $region21
    $region20: #{image_compressor_forward.33} parent=1 // pred_region
      _
    $region21: #{image_compressor_forward.33} parent=1 // pred_fallthru
      _
    // Predicated region
    $region22: #{image_compressor_forward.33} parent=1 // pred_check
      _
    $region23: #{image_compressor_forward.33} parent=1 // pred_check_branch
      %29 = sbr.rel (0) target = $region25
    $region24: #{image_compressor_forward.33} parent=1 // pred_region
      _
    $region25: #{image_compressor_forward.33} parent=1 // pred_fallthru
      _
    // Predicated region
    $region26: #{image_compressor_forward.33} parent=1 // pred_check
      _
    $region27: #{image_compressor_forward.33} parent=1 // pred_check_branch
      %31 = sbr.rel (0) target = $region29
    $region28: #{image_compressor_forward.33} parent=1 // pred_region
      _
    $region29: #{image_compressor_forward.33} parent=1 // pred_fallthru
      _
    // Predicated region
    $region30: #{image_compressor_forward.33} parent=1 // pred_check
      _
    $region31: #{image_compressor_forward.33} parent=1 // pred_check_branch
      %33 = sbr.rel (0) target = $region33
    $region32: #{image_compressor_forward.33} parent=1 // pred_region
      _
    $region33: #{image_compressor_forward.33} parent=1 // pred_fallthru
      _
    // Predicated region
    $region34: #{image_compressor_forward.33} parent=1 // pred_check
      _
    $region35: #{image_compressor_forward.33} parent=1 // pred_check_branch
      %35 = sbr.rel (0) target = $region37
    $region36: #{image_compressor_forward.33} parent=1 // pred_region
      _
    $region37: #{image_compressor_forward.33} parent=1 // pred_fallthru
      _
    // Predicated region
    $region38: #{image_compressor_forward.33} parent=1 // pred_check
      _
    $region39: #{image_compressor_forward.33} parent=1 // pred_check_branch
      %37 = sbr.rel (0) target = $region41
    $region40: #{image_compressor_forward.33} parent=1 // pred_region
      _
    $region41: #{image_compressor_forward.33} parent=1 // pred_fallthru
      _
    // Predicated region
    $region42: #{image_compressor_forward.33} parent=1 // pred_check
      _
    $region43: #{image_compressor_forward.33} parent=1 // pred_check_branch
      %39 = sbr.rel (0) target = $region45
    $region44: #{image_compressor_forward.33} parent=1 // pred_region
      _
    $region45: #{image_compressor_forward.33} parent=1 // pred_fallthru
      _
    // Predicated region
    $region46: #{image_compressor_forward.33} parent=1 // pred_check
      _
    $region47: #{image_compressor_forward.33} parent=1 // pred_check_branch
      %41 = sbr.rel (0) target = $region49
    $region48: #{image_compressor_forward.33} parent=1 // pred_region
      _
    $region49: #{image_compressor_forward.33} parent=1 // pred_fallthru
      _
    %v42 = vld [vmem:[%s0] sm:$0xff]
    %v43 = vadd.f32 %v42, 0.5
    %v44 = vld [vmem:[%s1] sm:$0x1]
    %v46 = vlaneseq
    %v47 = vshrl.u32 %v46, 7
    %v48 = vsub.s32 0, %v47
    %v49 = vrot.slane %v44, %v48
    %v51 = vmul.f32 %v43, %v49
    %v52 = vld [vmem:[%s2] sm:$0x1]
    %v54 = vlaneseq
    %v55 = vshrl.u32 %v54, 7
    %v56 = vsub.s32 0, %v55
    %v57 = vrot.slane %v52, %v56
    %v59 = vadd.f32 %v51, %v57
    %v60 = vtanh.pop %v59
    %v61 = vld [vmem:[%s3] sm:$0x1]
    %v63 = vlaneseq
    %v64 = vshrl.u32 %v63, 7
    %v65 = vsub.s32 0, %v64
    %v66 = vrot.slane %v61, %v65
    %v68 = vmul.f32 %v60, %v66
    %v69 = vadd.f32 %v59, %v68
    %v70 = vld [vmem:[%s4] sm:$0x1]
    %v72 = vlaneseq
    %v73 = vshrl.u32 %v72, 7
    %v74 = vsub.s32 0, %v73
    %v75 = vrot.slane %v70, %v74
    %v77 = vmul.f32 %v69, %v75
    %v78 = vld [vmem:[%s5] sm:$0x1]
    %v80 = vlaneseq
    %v81 = vshrl.u32 %v80, 7
    %v82 = vsub.s32 0, %v81
    %v83 = vrot.slane %v78, %v82
    %v85 = vadd.f32 %v77, %v83
    %v86 = vtanh.pop %v85
    %v87 = vld [vmem:[%s6] sm:$0x1]
    %v89 = vlaneseq
    %v90 = vshrl.u32 %v89, 7
    %v91 = vsub.s32 0, %v90
    %v92 = vrot.slane %v87, %v91
    %v94 = vmul.f32 %v86, %v92
    %v95 = vadd.f32 %v85, %v94
    %v96 = vld [vmem:[%s7] sm:$0x1]
    %v98 = vlaneseq
    %v99 = vshrl.u32 %v98, 7
    %v100 = vsub.s32 0, %v99
    %v101 = vrot.slane %v96, %v100
    %v103 = vmul.f32 %v95, %v101
    %v104 = vld [vmem:[%s8] sm:$0x1]
    %v106 = vlaneseq
    %v107 = vshrl.u32 %v106, 7
    %v108 = vsub.s32 0, %v107
    %v109 = vrot.slane %v104, %v108
    %v111 = vadd.f32 %v103, %v109
    %v112 = vtanh.pop %v111
    %v113 = vld [vmem:[%s9] sm:$0x1]
    %v115 = vlaneseq
    %v116 = vshrl.u32 %v115, 7
    %v117 = vsub.s32 0, %v116
    %v118 = vrot.slane %v113, %v117
    %v120 = vmul.f32 %v112, %v118
    %v121 = vadd.f32 %v111, %v120
    %v122 = vld [vmem:[%s10] sm:$0x1]
    %v124 = vlaneseq
    %v125 = vshrl.u32 %v124, 7
    %v126 = vsub.s32 0, %v125
    %v127 = vrot.slane %v122, %v126
    %v129 = vmul.f32 %v121, %v127
    %v130 = vld [vmem:[%s11] sm:$0x1]
    %v132 = vlaneseq
    %v133 = vshrl.u32 %v132, 7
    %v134 = vsub.s32 0, %v133
    %v135 = vrot.slane %v130, %v134
    %v137 = vadd.f32 %v129, %v135
    %v138 = vxor.u32 %v137, 2147483648
    %v139 = vmul.f32 %v138, 1.442695
    %v140 = vpow.pop %v139
    %v141 = vadd.f32 %v140, 1.0
    %v142 = vrcp.pop %v141
    %v143 = vmul.f32 1.0, %v142
    %v144 = vsub.f32 %v42, 0.5
    %v145 = vmul.f32 %v144, %v49
    %v146 = vadd.f32 %v145, %v57
    %v147 = vtanh.pop %v146
    %v148 = vmul.f32 %v147, %v66
    %v149 = vadd.f32 %v146, %v148
    %v150 = vmul.f32 %v149, %v75
    %v151 = vadd.f32 %v150, %v83
    %v152 = vtanh.pop %v151
    %v153 = vmul.f32 %v152, %v92
    %v154 = vadd.f32 %v151, %v153
    %v155 = vmul.f32 %v154, %v101
    %v156 = vadd.f32 %v155, %v109
    %v157 = vtanh.pop %v156
    %v158 = vmul.f32 %v157, %v118
    %v159 = vadd.f32 %v156, %v158
    %v160 = vmul.f32 %v159, %v127
    %v161 = vadd.f32 %v160, %v135
    %v162 = vxor.u32 %v161, 2147483648
    %v163 = vmul.f32 %v162, 1.442695
    %v164 = vpow.pop %v163
    %v165 = vadd.f32 %v164, 1.0
    %v166 = vrcp.pop %v165
    %v167 = vmul.f32 1.0, %v166
    %v168 = vsub.f32 %v143, %v167
    %v169 = vadd.f32 %v168, 1e-10
    %v170 = vlog2.pop %v169
    %v171 = vmul.f32 %v170, 0.6931472
    %v172 = vsub.f32 0.0, %v171
    %v173 = vmul.f32 %v172, 1.442695
    %v174 = vmax.f32 %v173, 0.0
    %v175 = vmin.f32 %v174, 50.0
    %v176 = vlaneseq
    %v177 = vshrl.u32 %v176, 7
    %v178 = vlaneseq
    %v179 = vand.u32 %v178, 127
    %s180 = smul.u32 0, 8
    %v181 = vstv %s180
    %v182 = vadd.s32 %v181, %v177
    %v183 = vmul.u32 %v182, 128
    %v184 = vadd.s32 %v183, %v179
    %vm185 = vcmp.lt.s32.totalorder %v184, 64
    %v186 = vsel %vm185, %v175, 0.0
    %v187 = vrot.slane %v186, 4
    %v188 = vadd.f32 %v186, %v187
    %v189 = vrot.slane %v188, 2
    %v190 = vadd.f32 %v188, %v189
    %v191 = vrot.slane %v190, 1
    %v192 = vadd.f32 %v190, %v191
    %193 = vadd.xlane.f32.xlu0 %v192
    %v194 = vpop.xlane.xlu0 %193
    %p195 = scmp.eq.s32.totalorder 0, 0
    // Predicated region
    $region50: #{image_compressor_forward.33} parent=1 // pred_check
      %p196 = pneg %p195
    $region51: #{image_compressor_forward.33} parent=1 // pred_check_branch
      %198 = sbr.rel (%p196) target = $region53
    $region52: #{image_compressor_forward.33} parent=1 // pred_region
      %vm199 = vcmask 0
      %200 = vst.msk [vmem:[#allocation2] sm:$0x1] %vm199, 0.0
    $region53: #{image_compressor_forward.33} parent=1 // pred_fallthru
      _
    %v201 = vld [vmem:[#allocation2] sm:$0x1]
    %v202 = vadd.f32 %v201, %v194
    %vm203 = vcmask 0
    %204 = vst.msk [vmem:[#allocation2] sm:$0x1] %vm203, %v202
    // Predicated region
    $region54: #{image_compressor_forward.33} parent=1 // pred_check
      _
    $region55: #{image_compressor_forward.33} parent=1 // pred_check_branch
      %206 = sbr.rel (0) target = $region57
    $region56: #{image_compressor_forward.33} parent=1 // pred_region
      %s208 = ssub.s32 16, 16
      %209 = vsyncadd [#allocation3], %s208
      %s211 = sshll.u32 [#allocation2], 4
      %s212 = int_to_ptr.vmem [resolvable:$true] %s211
      %214 = dma.vmem_to_hbm [thread:$0]  %s212, 16, %s12, [#allocation3]
    $region57: #{image_compressor_forward.33} parent=1 // pred_fallthru
      _
    // Predicated region
    $region58: #{image_compressor_forward.33} parent=1 // pred_check
      _
    $region59: #{image_compressor_forward.33} parent=1 // pred_check_branch
      %216 = sbr.rel (0) target = $region61
    $region60: #{image_compressor_forward.33} parent=1 // pred_region
      %217 = dma.done [#allocation3], 16
    $region61: #{image_compressor_forward.33} parent=1 // pred_fallthru
      _
    %218 = vsyncpa [#allocation3], 1

</llo_original>
